<compile_context>
chip_gen: v7x
topology: tpu7x:2x2x1
jax: 0.10.0
libtpu: 0.0.40
codegen_flags: <defaults>
</compile_context>

<pallas_src>
import jax
import jax.numpy as jnp
from jax.experimental import pallas as pl
from jax.experimental.pallas import tpu as pltpu


def _make_fused_kernel(H, W, Cin, C1, C2):
    HW = H * W

    def kernel(xim_ref, w1p_ref, b1_ref, w2p_ref, b2_ref, out_ref):
        # ---------------- conv1: one packed matmul, K = 9*Cin --------------------
        # im2col (built in wrapper): (H*W, 9*Cin); weights packed to (9*Cin, C1).
        t1 = jnp.dot(xim_ref[0], w1p_ref[...],
                     preferred_element_type=jnp.float32) + b1_ref[...]      # (HW, C1)

        # max over W for the t1 half of the output (done early, before the big
        # conv2 patch is built, to reduce vreg pressure in the hot region).
        t1m = jnp.max(t1.reshape(H, W, C1), axis=1)                         # (H, C1)

        # ---------------- conv2 im2col, built in-kernel ---------------------------
        # Flat (HW, C1) layout.  Row (dy) shifts are W-row, sublane-aligned slices
        # of a zero-row-padded copy; column (dx) shifts are +-1 sublane shifts with
        # a wrap mask.  No padded VMEM scratch / halo maintenance needed.
        zW = jnp.zeros((W, C1), jnp.float32)
        t1f = jnp.concatenate([zW, t1, zW], axis=0)                         # (HW+2W, C1)

        col = jax.lax.broadcasted_iota(jnp.int32, (HW, 1), 0) % W
        first_col = col == 0
        last_col = col == W - 1
        z1 = jnp.zeros((1, C1), jnp.float32)

        pieces = []
        for oy in (-1, 0, 1):                       # tap row offset (dy - 1)
            r = t1f[(oy + 1) * W:(oy + 1) * W + HW, :]                      # (HW, C1)
            left = jnp.where(first_col, 0.0,
                             jnp.concatenate([z1, r[:HW - 1, :]], axis=0))  # ox = -1
            right = jnp.where(last_col, 0.0,
                              jnp.concatenate([r[1:, :], z1], axis=0))      # ox = +1
            pieces += [left, r, right]              # tap order (dy, dx), c1 fastest
        patch = jnp.concatenate(pieces, axis=-1)                            # (HW, 9*C1)

        # ---------------- conv2: ONE matmul, K = 9*C1 -----------------------------
        t2 = jnp.dot(patch, w2p_ref[...],
                     preferred_element_type=jnp.float32)                    # (HW, C2)

        # bias applied after the W-max (per-channel constant commutes with max)
        t3 = jnp.max(t2.reshape(H, W, C2), axis=1) + b2_ref[...]            # (H, C2)

        # single lane-denser output slab: channels [t1m | t3] along the minor axis
        out_ref[0] = jnp.concatenate([t1m, t3], axis=-1)                    # (H, C1+C2)

    return kernel


def fused_forward(x_nchw, w1, b1, w2, b2):
    """x_nchw: (N, Cin, H, W) f32; weights OIHW; returns (N, C1 + C2, H) f32."""
    N, Cin, H, W = x_nchw.shape
    C1 = w1.shape[0]
    C2 = w2.shape[0]
    K1 = 9 * Cin
    K2 = 9 * C1
    HW = H * W

    # ---- wrapper-side layout plumbing (no arithmetic) ----------------------------
    x_nhwc = jnp.transpose(x_nchw, (0, 2, 3, 1)).astype(jnp.float32)
    xpad = jnp.pad(x_nhwc, ((0, 0), (1, 1), (1, 1), (0, 0)))
    # conv1 im2col: tap order (dy, dx, cin) matches the packed-weight reshape below.
    patches = [xpad[:, dy:dy + H, dx:dx + W, :] for dy in range(3) for dx in range(3)]
    x_im = jnp.concatenate(patches, axis=-1).reshape(N, HW, K1)

    w1p = jnp.transpose(w1, (2, 3, 1, 0)).astype(jnp.float32).reshape(K1, C1)  # (27, C1)
    w2p = jnp.transpose(w2, (2, 3, 1, 0)).astype(jnp.float32).reshape(K2, C2)  # (288, C2)
    b1_2d = b1.reshape(1, C1).astype(jnp.float32)
    b2_2d = b2.reshape(1, C2).astype(jnp.float32)

    kernel = _make_fused_kernel(H, W, Cin, C1, C2)

    out = pl.pallas_call(
        kernel,
        out_shape=jax.ShapeDtypeStruct((N, H, C1 + C2), jnp.float32),
        grid_spec=pltpu.PrefetchScalarGridSpec(
            num_scalar_prefetch=0,
            grid=(N,),
            in_specs=[
                pl.BlockSpec((1, HW, K1), lambda n: (n, 0, 0)),
                pl.BlockSpec((K1, C1), lambda n: (0, 0)),
                pl.BlockSpec((1, C1), lambda n: (0, 0)),
                pl.BlockSpec((K2, C2), lambda n: (0, 0)),
                pl.BlockSpec((1, C2), lambda n: (0, 0)),
            ],
            out_specs=pl.BlockSpec((1, H, C1 + C2), lambda n: (n, 0, 0)),
        ),
        compiler_params=pltpu.CompilerParams(
            dimension_semantics=("parallel",)),   # batch independent -> 2 TCs on v7x
    )(x_im, w1p, b1_2d, w2p, b2_2d)

    # (N, H, C1+C2) -> (N, C1+C2, H); channel order is already [t1m | t3].
    return jnp.transpose(out, (0, 2, 1))


def ref_forward(x, w1, b1, w2, b2):
    """Pure-JAX f32 reference (NCHW / OIHW, same semantics as the kernel)."""
    dn = ("NCHW", "OIHW", "NCHW")
    t1 = jax.lax.conv_general_dilated(
        x, w1, (1, 1), "SAME", dimension_numbers=dn,
        precision=jax.lax.Precision.HIGHEST) + b1[None, :, None, None]
    t2 = jax.lax.conv_general_dilated(
        t1, w2, (1, 1), "SAME", dimension_numbers=dn,
        precision=jax.lax.Precision.HIGHEST) + b2[None, :, None, None]
    t1m = jnp.max(t1, axis=-1)
    t3 = jnp.max(t2, axis=-1)
    return jnp.concatenate([t1m, t3], axis=1)


if __name__ == "__main__":
    # Small shapes consistent with the module: channels fixed by __init__ (3->32->64),
    # batch/spatial kept small.
    N, Cin, H, W = 2, 3, 16, 16
    C1, C2 = 32, 64

    key = jax.random.PRNGKey(0)
    k1, k2, k3, k4, k5 = jax.random.split(key, 5)
    x = jax.random.normal(k1, (N, Cin, H, W), jnp.float32)
    w1 = jax.random.normal(k2, (C1, Cin, 3, 3), jnp.float32) * 0.1
    b1 = jax.random.normal(k3, (C1,), jnp.float32) * 0.1
    w2 = jax.random.normal(k4, (C2, C1, 3, 3), jnp.float32) * 0.05
    b2 = jax.random.normal(k5, (C2,), jnp.float32) * 0.1

    out = jax.jit(fused_forward)(x, w1, b1, w2, b2)
    out = jax.block_until_ready(out)

    ref = ref_forward(x, w1, b1, w2, b2)
    assert out.shape == (N, C1 + C2, H), out.shape
    err = float(jnp.max(jnp.abs(out - ref)))
    # Tolerance loosened vs. the f32-HIGHEST reference: the kernel uses the MXU's
    # default single-pass bf16 path with f32 accumulation (re-validated after the
    # K=288 packing of conv2).
    assert jnp.allclose(out, ref, rtol=3e-2, atol=3e-2), f"max abs err = {err}"
    print("KERNEL_OK")
</pallas_src>

<mosaic_0001>
module attributes {stable_mosaic.version = 11 : i64} {
  func.func @kernel(%arg0: i32, %arg1: memref<1x256x27xf32, #tpu.memory_space<vmem>>, %arg2: memref<27x32xf32, #tpu.memory_space<vmem>>, %arg3: memref<1x32xf32, #tpu.memory_space<vmem>>, %arg4: memref<288x64xf32, #tpu.memory_space<vmem>>, %arg5: memref<1x64xf32, #tpu.memory_space<vmem>>, %arg6: memref<1x16x96xf32, #tpu.memory_space<vmem>>) attributes {dimension_semantics = [#tpu.dimension_semantics<parallel>], iteration_bounds = array<i64: 2>, scalar_prefetch = 0 : i64, scratch_operands = 0 : i64, tpu.core_type = #tpu.core_type<tc>, window_params = [{transform_indices = @transform_0, window_bounds = array<i64: 1, 256, 27>}, {pipeline_mode = #tpu.pipeline_mode<synchronous>, transform_indices = @transform_1, window_bounds = array<i64: 27, 32>}, {pipeline_mode = #tpu.pipeline_mode<synchronous>, transform_indices = @transform_2, window_bounds = array<i64: 1, 32>}, {pipeline_mode = #tpu.pipeline_mode<synchronous>, transform_indices = @transform_3, window_bounds = array<i64: 288, 64>}, {pipeline_mode = #tpu.pipeline_mode<synchronous>, transform_indices = @transform_4, window_bounds = array<i64: 1, 64>}, {transform_indices = @transform_5, window_bounds = array<i64: 1, 16, 96>}]} {
    %c0 = arith.constant 0 : index
    %c0_0 = arith.constant 0 : index
    %c0_1 = arith.constant 0 : index
    %0 = vector.load %arg1[%c0, %c0_0, %c0_1] : memref<1x256x27xf32, #tpu.memory_space<vmem>>, vector<1x256x27xf32>
    %1 = vector.shape_cast %0 : vector<1x256x27xf32> to vector<256x27xf32>
    %c0_2 = arith.constant 0 : index
    %c0_3 = arith.constant 0 : index
    %2 = vector.load %arg2[%c0_2, %c0_3] : memref<27x32xf32, #tpu.memory_space<vmem>>, vector<27x32xf32>
    %cst = arith.constant dense<0.000000e+00> : vector<256x32xf32>
    %3 = tpu.matmul %1, %2, %cst {dimension_numbers = #tpu.dot_dimension_numbers<[1], [0], [0], [1], [0, 0, 1, 1], [], []>} : vector<256x27xf32>, vector<27x32xf32>, vector<256x32xf32> -> vector<256x32xf32>
    %c0_4 = arith.constant 0 : index
    %c0_5 = arith.constant 0 : index
    %4 = vector.load %arg3[%c0_4, %c0_5] : memref<1x32xf32, #tpu.memory_space<vmem>>, vector<1x32xf32>
    %5 = vector.broadcast %4 : vector<1x32xf32> to vector<256x32xf32>
    %6 = arith.addf %3, %5 : vector<256x32xf32>
    %7 = vector.shape_cast %6 : vector<256x32xf32> to vector<16x16x32xf32>
    %cst_6 = arith.constant dense<0xFF800000> : vector<16x32xf32>
    %8 = vector.multi_reduction <maximumf>, %7, %cst_6 [1] : vector<16x16x32xf32> to vector<16x32xf32>
    %cst_7 = arith.constant 0.000000e+00 : f32
    %9 = vector.broadcast %cst_7 : f32 to vector<16x32xf32>
    %10 = tpu.concatenate %9, %6, %9 in 0 : vector<16x32xf32>, vector<256x32xf32>, vector<16x32xf32> -> vector<288x32xf32>
    %11 = tpu.iota {dimensions = array<i32: 0>} : vector<256x1xi32>
    %c16_i32 = arith.constant 16 : i32
    %c0_i32 = arith.constant 0 : i32
    %12 = arith.cmpi eq, %c16_i32, %c0_i32 : i32
    %c1_i32 = arith.constant 1 : i32
    %13 = arith.select %12, %c1_i32, %c16_i32 : i32
    %14 = vector.broadcast %13 : i32 to vector<256x1xi32>
    %15 = arith.remsi %11, %14 : vector<256x1xi32>
    %c0_i32_8 = arith.constant 0 : i32
    %16 = vector.broadcast %c0_i32_8 : i32 to vector<256x1xi32>
    %17 = arith.cmpi ne, %15, %16 : vector<256x1xi32>
    %c0_i32_9 = arith.constant 0 : i32
    %18 = vector.broadcast %c0_i32_9 : i32 to vector<256x1xi32>
    %19 = arith.cmpi slt, %15, %18 : vector<256x1xi32>
    %c0_i32_10 = arith.constant 0 : i32
    %20 = arith.cmpi slt, %13, %c0_i32_10 : i32
    %21 = vector.broadcast %20 : i1 to vector<256x1xi1>
    %22 = vector.broadcast %21 : vector<256x1xi1> to vector<256x1xi1>
    %23 = arith.xori %19, %22 : vector<256x1xi1>
    %24 = arith.andi %23, %17 : vector<256x1xi1>
    %25 = vector.broadcast %13 : i32 to vector<256x1xi32>
    %26 = arith.addi %15, %25 : vector<256x1xi32>
    %27 = arith.select %24, %26, %15 : vector<256x1xi1>, vector<256x1xi32>
    %c0_i32_11 = arith.constant 0 : i32
    %28 = vector.broadcast %c0_i32_11 : i32 to vector<256x1xi32>
    %29 = arith.cmpi eq, %27, %28 : vector<256x1xi32>
    %c15_i32 = arith.constant 15 : i32
    %30 = vector.broadcast %c15_i32 : i32 to vector<256x1xi32>
    %31 = arith.cmpi eq, %27, %30 : vector<256x1xi32>
    %cst_12 = arith.constant 0.000000e+00 : f32
    %32 = vector.broadcast %cst_12 : f32 to vector<1x32xf32>
    %33 = vector.extract_strided_slice %10 {offsets = [0, 0], sizes = [256, 32], strides = [1, 1]} : vector<288x32xf32> to vector<256x32xf32>
    %34 = vector.extract_strided_slice %33 {offsets = [0, 0], sizes = [255, 32], strides = [1, 1]} : vector<256x32xf32> to vector<255x32xf32>
    %35 = tpu.concatenate %32, %34 in 0 : vector<1x32xf32>, vector<255x32xf32> -> vector<256x32xf32>
    %cst_13 = arith.constant 0.000000e+00 : f32
    %36 = vector.shape_cast %29 : vector<256x1xi1> to vector<256x1xi1>
    %37 = vector.broadcast %36 : vector<256x1xi1> to vector<256x32xi1>
    %38 = vector.broadcast %cst_13 : f32 to vector<256x32xf32>
    %39 = arith.select %37, %38, %35 : vector<256x32xi1>, vector<256x32xf32>
    %40 = vector.extract_strided_slice %33 {offsets = [1, 0], sizes = [255, 32], strides = [1, 1]} : vector<256x32xf32> to vector<255x32xf32>
    %41 = tpu.concatenate %40, %32 in 0 : vector<255x32xf32>, vector<1x32xf32> -> vector<256x32xf32>
    %cst_14 = arith.constant 0.000000e+00 : f32
    %42 = vector.shape_cast %31 : vector<256x1xi1> to vector<256x1xi1>
    %43 = vector.broadcast %42 : vector<256x1xi1> to vector<256x32xi1>
    %44 = vector.broadcast %cst_14 : f32 to vector<256x32xf32>
    %45 = arith.select %43, %44, %41 : vector<256x32xi1>, vector<256x32xf32>
    %46 = vector.extract_strided_slice %10 {offsets = [16, 0], sizes = [256, 32], strides = [1, 1]} : vector<288x32xf32> to vector<256x32xf32>
    %47 = vector.extract_strided_slice %46 {offsets = [0, 0], sizes = [255, 32], strides = [1, 1]} : vector<256x32xf32> to vector<255x32xf32>
    %48 = tpu.concatenate %32, %47 in 0 : vector<1x32xf32>, vector<255x32xf32> -> vector<256x32xf32>
    %cst_15 = arith.constant 0.000000e+00 : f32
    %49 = vector.shape_cast %29 : vector<256x1xi1> to vector<256x1xi1>
    %50 = vector.broadcast %49 : vector<256x1xi1> to vector<256x32xi1>
    %51 = vector.broadcast %cst_15 : f32 to vector<256x32xf32>
    %52 = arith.select %50, %51, %48 : vector<256x32xi1>, vector<256x32xf32>
    %53 = vector.extract_strided_slice %46 {offsets = [1, 0], sizes = [255, 32], strides = [1, 1]} : vector<256x32xf32> to vector<255x32xf32>
    %54 = tpu.concatenate %53, %32 in 0 : vector<255x32xf32>, vector<1x32xf32> -> vector<256x32xf32>
    %cst_16 = arith.constant 0.000000e+00 : f32
    %55 = vector.shape_cast %31 : vector<256x1xi1> to vector<256x1xi1>
    %56 = vector.broadcast %55 : vector<256x1xi1> to vector<256x32xi1>
    %57 = vector.broadcast %cst_16 : f32 to vector<256x32xf32>
    %58 = arith.select %56, %57, %54 : vector<256x32xi1>, vector<256x32xf32>
    %59 = vector.extract_strided_slice %10 {offsets = [32, 0], sizes = [256, 32], strides = [1, 1]} : vector<288x32xf32> to vector<256x32xf32>
    %60 = vector.extract_strided_slice %59 {offsets = [0, 0], sizes = [255, 32], strides = [1, 1]} : vector<256x32xf32> to vector<255x32xf32>
    %61 = tpu.concatenate %32, %60 in 0 : vector<1x32xf32>, vector<255x32xf32> -> vector<256x32xf32>
    %cst_17 = arith.constant 0.000000e+00 : f32
    %62 = vector.shape_cast %29 : vector<256x1xi1> to vector<256x1xi1>
    %63 = vector.broadcast %62 : vector<256x1xi1> to vector<256x32xi1>
    %64 = vector.broadcast %cst_17 : f32 to vector<256x32xf32>
    %65 = arith.select %63, %64, %61 : vector<256x32xi1>, vector<256x32xf32>
    %66 = vector.extract_strided_slice %59 {offsets = [1, 0], sizes = [255, 32], strides = [1, 1]} : vector<256x32xf32> to vector<255x32xf32>
    %67 = tpu.concatenate %66, %32 in 0 : vector<255x32xf32>, vector<1x32xf32> -> vector<256x32xf32>
    %cst_18 = arith.constant 0.000000e+00 : f32
    %68 = vector.shape_cast %31 : vector<256x1xi1> to vector<256x1xi1>
    %69 = vector.broadcast %68 : vector<256x1xi1> to vector<256x32xi1>
    %70 = vector.broadcast %cst_18 : f32 to vector<256x32xf32>
    %71 = arith.select %69, %70, %67 : vector<256x32xi1>, vector<256x32xf32>
    %72 = tpu.concatenate %39, %33, %45, %52, %46, %58, %65, %59, %71 in 1 : vector<256x32xf32>, vector<256x32xf32>, vector<256x32xf32>, vector<256x32xf32>, vector<256x32xf32>, vector<256x32xf32>, vector<256x32xf32>, vector<256x32xf32>, vector<256x32xf32> -> vector<256x288xf32>
    %c0_19 = arith.constant 0 : index
    %c0_20 = arith.constant 0 : index
    %73 = vector.load %arg4[%c0_19, %c0_20] : memref<288x64xf32, #tpu.memory_space<vmem>>, vector<288x64xf32>
    %cst_21 = arith.constant dense<0.000000e+00> : vector<256x64xf32>
    %74 = tpu.matmul %72, %73, %cst_21 {dimension_numbers = #tpu.dot_dimension_numbers<[1], [0], [0], [1], [0, 0, 1, 1], [], []>} : vector<256x288xf32>, vector<288x64xf32>, vector<256x64xf32> -> vector<256x64xf32>
    %75 = vector.shape_cast %74 : vector<256x64xf32> to vector<16x16x64xf32>
    %cst_22 = arith.constant dense<0xFF800000> : vector<16x64xf32>
    %76 = vector.multi_reduction <maximumf>, %75, %cst_22 [1] : vector<16x16x64xf32> to vector<16x64xf32>
    %c0_23 = arith.constant 0 : index
    %c0_24 = arith.constant 0 : index
    %77 = vector.load %arg5[%c0_23, %c0_24] : memref<1x64xf32, #tpu.memory_space<vmem>>, vector<1x64xf32>
    %78 = vector.broadcast %77 : vector<1x64xf32> to vector<16x64xf32>
    %79 = arith.addf %76, %78 : vector<16x64xf32>
    %80 = tpu.concatenate %8, %79 in 1 : vector<16x32xf32>, vector<16x64xf32> -> vector<16x96xf32>
    %c0_25 = arith.constant 0 : index
    %c0_26 = arith.constant 0 : index
    %c0_27 = arith.constant 0 : index
    %81 = vector.load %arg6[%c0_25, %c0_26, %c0_27] : memref<1x16x96xf32, #tpu.memory_space<vmem>>, vector<1x16x96xf32>
    %82 = vector.shape_cast %81 : vector<1x16x96xf32> to vector<16x96xf32>
    %83 = vector.shape_cast %80 : vector<16x96xf32> to vector<1x16x96xf32>
    tpu.vector_store %arg6[%c0_25, %c0_26, %c0_27], %83 {strides = array<i32>} : memref<1x16x96xf32, #tpu.memory_space<vmem>>, vector<1x16x96xf32>,
    return
  }
  func.func @transform_0(%arg0: i32) -> (i32, i32, i32) {
    %c0_i32 = arith.constant 0 : i32
    %c0_i32_0 = arith.constant 0 : i32
    %c0_i32_1 = arith.constant 0 : i32
    return %arg0, %c0_i32, %c0_i32_0 : i32, i32, i32
  }
  func.func @transform_1(%arg0: i32) -> (i32, i32) {
    %c0_i32 = arith.constant 0 : i32
    %c0_i32_0 = arith.constant 0 : i32
    %c0_i32_1 = arith.constant 0 : i32
    return %c0_i32, %c0_i32_0 : i32, i32
  }
  func.func @transform_2(%arg0: i32) -> (i32, i32) {
    %c0_i32 = arith.constant 0 : i32
    %c0_i32_0 = arith.constant 0 : i32
    %c0_i32_1 = arith.constant 0 : i32
    return %c0_i32, %c0_i32_0 : i32, i32
  }
  func.func @transform_3(%arg0: i32) -> (i32, i32) {
    %c0_i32 = arith.constant 0 : i32
    %c0_i32_0 = arith.constant 0 : i32
    %c0_i32_1 = arith.constant 0 : i32
    return %c0_i32, %c0_i32_0 : i32, i32
  }
  func.func @transform_4(%arg0: i32) -> (i32, i32) {
    %c0_i32 = arith.constant 0 : i32
    %c0_i32_0 = arith.constant 0 : i32
    %c0_i32_1 = arith.constant 0 : i32
    return %c0_i32, %c0_i32_0 : i32, i32
  }
  func.func @transform_5(%arg0: i32) -> (i32, i32, i32) {
    %c0_i32 = arith.constant 0 : i32
    %c0_i32_0 = arith.constant 0 : i32
    %c0_i32_1 = arith.constant 0 : i32
    return %arg0, %c0_i32, %c0_i32_0 : i32, i32, i32
  }
}

</mosaic_0001>

<llo_original>
// kernel: fused_forward.1
$region0: #{fused_forward.1}
  #allocation0 [shape = 'u32[]', space=smem, size = 0x4, offset = 0x4, fixed_abs, tag = 'smem constant byte address 0x4 - core index']
  #allocation1 [shape = 'u32[144,128]{1,0:T(1,128)}', space=vmem, size = 0x12000, scoped, tag = 'internal scratch']
  %s0 = inlined_call_operand.vmem [shape: f32[2,256,27], index: 0, kind: input, shape index: {}]
  %s1 = inlined_call_operand.vmem [shape: f32[27,32], index: 1, kind: input, shape index: {}]
  %s2 = inlined_call_operand.vmem [shape: f32[1,32], index: 2, kind: input, shape index: {}]
  %s3 = inlined_call_operand.vmem [shape: f32[288,64], index: 3, kind: input, shape index: {}]
  %s4 = inlined_call_operand.vmem [shape: f32[1,64], index: 4, kind: input, shape index: {}]
  %s5 = inlined_call_operand.hbm [shape: f32[2,16,96], index: 5, kind: output, shape index: {}]
  %s6 = sld [smem:[#allocation0]]
  $region53: #{fused_forward.1} parent=0
    _
  %s8 = ssub.s32 1, %s6
  %s9 = scalar_select 0, %s8, %s6
  $region1: #{fused_forward.1} parent=0
    #allocation2 [shape = 'u8[16384]{0}', space=vmem, size = 0x4000, scoped, tag = 'output window, operand 0']
    #allocation3 [shape = 's32[2]{0}', space=sflag, size = 0x8, scoped, tag = 'scoped memory for fused_forward.1']
    %10 = vsyncpa [#allocation3], 0
    %s11 = scalar_lea.sflag [#allocation3], 1
    %12 = vsyncpa %s11, 0
    loop: start=0, step=1, limit=4
    $region2: #{fused_forward.1} parent=1 // loop_pre_header
      _
    $region3: #{fused_forward.1} parent=1 // loop_header
      %s14 = sphi 0, %s18
      %p15 = scmp.ge.s32.totalorder %s14, 4
      %s24 = sphi 0, %s26
      %s27 = sphi 0, %s24
      %s28 = sphi 0, %s27
      %s44 = sphi 0, %s28
      %s48 = sphi 0, %s48
      %s50 = sphi 0, %s48
      %s51 = sphi 0, %s50
      %s65 = sphi 0, %s51
      %s69 = sphi 0, %s69
      %s71 = sphi 0, %s69
      %s72 = sphi 0, %s71
      %s86 = sphi 0, %s72
      %s90 = sphi 0, %s90
      %s92 = sphi 0, %s90
      %s93 = sphi 0, %s92
      %s107 = sphi 0, %s93
      %s111 = sphi 0, %s111
      %s113 = sphi 0, %s111
      %s114 = sphi 0, %s113
      %s128 = sphi 0, %s114
      %s134 = sphi 0, %s136
      %s137 = sphi 0, %s134
      %s138 = sphi 0, %s137
      %s154 = sphi 0, %s138
    $region4: #{fused_forward.1} parent=1 // loop_header_branch
      %17 = sbr.rel (%p15) target = $region8
    $region5: #{fused_forward.1} parent=1 // loop_body
      %s19 = ssub.s32 %s14, 1
      %s20 = ssub.s32 %s14, 2
      %s21 = sadd.s32 %s14, 1
      %s22 = ssub.s32 %s14, %s21
      %p23 = scmp.eq.s32.totalorder %s22, 0
      %s25 = sadd.s32 %s24, 1
      %s26 = scalar_select %p23, %s24, %s25
      %p29 = pneg %p23
      %p30 = scmp.eq.s32.totalorder %s14, 1
      %p31 = por %p29, %p30
      %p32 = scmp.ne.s32.totalorder %s24, %s27
      %p33 = scmp.eq.s32.totalorder %s14, 0
      %p34 = por %p32, %p33
      %p35 = scmp.ne.s32.totalorder %s24, %s27
      %p36 = scmp.eq.s32.totalorder %s19, 1
      %p37 = por %p35, %p36
      %p38 = scmp.ne.s32.totalorder %s27, %s28
      %p39 = scmp.eq.s32.totalorder %s19, 0
      %p40 = por %p38, %p39
      %p41 = scmp.ne.s32.totalorder %s27, %s28
      %p42 = scmp.eq.s32.totalorder %s20, 1
      %p43 = por %p41, %p42
      %p45 = scmp.ne.s32.totalorder %s28, %s44
      %p46 = scmp.eq.s32.totalorder %s20, 0
      %p47 = por %p45, %p46
      %s49 = sadd.s32 %s48, 1
      %p52 = scmp.eq.s32.totalorder %s14, 1
      %p53 = scmp.ne.s32.totalorder %s48, %s50
      %p54 = scmp.eq.s32.totalorder %s14, 0
      %p55 = por %p53, %p54
      %p56 = scmp.ne.s32.totalorder %s48, %s50
      %p57 = scmp.eq.s32.totalorder %s19, 1
      %p58 = por %p56, %p57
      %p59 = scmp.ne.s32.totalorder %s50, %s51
      %p60 = scmp.eq.s32.totalorder %s19, 0
      %p61 = por %p59, %p60
      %p62 = scmp.ne.s32.totalorder %s50, %s51
      %p63 = scmp.eq.s32.totalorder %s20, 1
      %p64 = por %p62, %p63
      %p66 = scmp.ne.s32.totalorder %s51, %s65
      %p67 = scmp.eq.s32.totalorder %s20, 0
      %p68 = por %p66, %p67
      %s70 = sadd.s32 %s69, 1
      %p73 = scmp.eq.s32.totalorder %s14, 1
      %p74 = scmp.ne.s32.totalorder %s69, %s71
      %p75 = scmp.eq.s32.totalorder %s14, 0
      %p76 = por %p74, %p75
      %p77 = scmp.ne.s32.totalorder %s69, %s71
      %p78 = scmp.eq.s32.totalorder %s19, 1
      %p79 = por %p77, %p78
      %p80 = scmp.ne.s32.totalorder %s71, %s72
      %p81 = scmp.eq.s32.totalorder %s19, 0
      %p82 = por %p80, %p81
      %p83 = scmp.ne.s32.totalorder %s71, %s72
      %p84 = scmp.eq.s32.totalorder %s20, 1
      %p85 = por %p83, %p84
      %p87 = scmp.ne.s32.totalorder %s72, %s86
      %p88 = scmp.eq.s32.totalorder %s20, 0
      %p89 = por %p87, %p88
      %s91 = sadd.s32 %s90, 1
      %p94 = scmp.eq.s32.totalorder %s14, 1
      %p95 = scmp.ne.s32.totalorder %s90, %s92
      %p96 = scmp.eq.s32.totalorder %s14, 0
      %p97 = por %p95, %p96
      %p98 = scmp.ne.s32.totalorder %s90, %s92
      %p99 = scmp.eq.s32.totalorder %s19, 1
      %p100 = por %p98, %p99
      %p101 = scmp.ne.s32.totalorder %s92, %s93
      %p102 = scmp.eq.s32.totalorder %s19, 0
      %p103 = por %p101, %p102
      %p104 = scmp.ne.s32.totalorder %s92, %s93
      %p105 = scmp.eq.s32.totalorder %s20, 1
      %p106 = por %p104, %p105
      %p108 = scmp.ne.s32.totalorder %s93, %s107
      %p109 = scmp.eq.s32.totalorder %s20, 0
      %p110 = por %p108, %p109
      %s112 = sadd.s32 %s111, 1
      %p115 = scmp.eq.s32.totalorder %s14, 1
      %p116 = scmp.ne.s32.totalorder %s111, %s113
      %p117 = scmp.eq.s32.totalorder %s14, 0
      %p118 = por %p116, %p117
      %p119 = scmp.ne.s32.totalorder %s111, %s113
      %p120 = scmp.eq.s32.totalorder %s19, 1
      %p121 = por %p119, %p120
      %p122 = scmp.ne.s32.totalorder %s113, %s114
      %p123 = scmp.eq.s32.totalorder %s19, 0
      %p124 = por %p122, %p123
      %p125 = scmp.ne.s32.totalorder %s113, %s114
      %p126 = scmp.eq.s32.totalorder %s20, 1
      %p127 = por %p125, %p126
      %p129 = scmp.ne.s32.totalorder %s114, %s128
      %p130 = scmp.eq.s32.totalorder %s20, 0
      %p131 = por %p129, %p130
      %s132 = ssub.s32 %s14, %s21
      %p133 = scmp.eq.s32.totalorder %s132, 0
      %s135 = sadd.s32 %s134, 1
      %s136 = scalar_select %p133, %s134, %s135
      %p139 = pneg %p133
      %p140 = scmp.eq.s32.totalorder %s14, 1
      %p141 = por %p139, %p140
      %p142 = scmp.ne.s32.totalorder %s134, %s137
      %p143 = scmp.eq.s32.totalorder %s14, 0
      %p144 = por %p142, %p143
      %p145 = scmp.ne.s32.totalorder %s134, %s137
      %p146 = scmp.eq.s32.totalorder %s19, 1
      %p147 = por %p145, %p146
      %p148 = scmp.ne.s32.totalorder %s137, %s138
      %p149 = scmp.eq.s32.totalorder %s19, 0
      %p150 = por %p148, %p149
      %p151 = scmp.ne.s32.totalorder %s137, %s138
      %p152 = scmp.eq.s32.totalorder %s20, 1
      %p153 = por %p151, %p152
      %p155 = scmp.ne.s32.totalorder %s138, %s154
      %p156 = scmp.eq.s32.totalorder %s20, 0
      %p157 = por %p155, %p156
      %p158 = scmp.le.s32.totalorder 1, %s14
      %p159 = scmp.lt.s32.totalorder %s14, 3
      %p160 = pnand %p158, %p159
      %p161 = pneg %p160
      // Predicated region
      $region9: #{fused_forward.1} parent=5 // pred_check
        _
      $region10: #{fused_forward.1} parent=5 // pred_check_branch
        %163 = sbr.rel (%p160) target = $region12
      $region11: #{fused_forward.1} parent=5 // pred_region
        %s164 = ssub.s32 %s14, 1
        // Predicated region
        $region13: #{fused_forward.1} parent=11 // pred_check
          %p165 = pneg %p61
        $region14: #{fused_forward.1} parent=11 // pred_check_branch
          %167 = sbr.rel (%p165) target = $region16
        $region15: #{fused_forward.1} parent=11 // pred_region
          _
        $region16: #{fused_forward.1} parent=11 // pred_fallthru
          _
        // Predicated region
        $region17: #{fused_forward.1} parent=11 // pred_check
          %p168 = pneg %p82
        $region18: #{fused_forward.1} parent=11 // pred_check_branch
          %170 = sbr.rel (%p168) target = $region20
        $region19: #{fused_forward.1} parent=11 // pred_region
          _
        $region20: #{fused_forward.1} parent=11 // pred_fallthru
          _
        // Predicated region
        $region21: #{fused_forward.1} parent=11 // pred_check
          %p171 = pneg %p103
        $region22: #{fused_forward.1} parent=11 // pred_check_branch
          %173 = sbr.rel (%p171) target = $region24
        $region23: #{fused_forward.1} parent=11 // pred_region
          _
        $region24: #{fused_forward.1} parent=11 // pred_fallthru
          _
        // Predicated region
        $region25: #{fused_forward.1} parent=11 // pred_check
          %p174 = pneg %p124
        $region26: #{fused_forward.1} parent=11 // pred_check_branch
          %176 = sbr.rel (%p174) target = $region28
        $region27: #{fused_forward.1} parent=11 // pred_region
          _
        $region28: #{fused_forward.1} parent=11 // pred_fallthru
          _
      $region12: #{fused_forward.1} parent=5 // pred_fallthru
        _
      %p177 = scmp.lt.s32.totalorder %s14, 2
      // Predicated region
      $region29: #{fused_forward.1} parent=5 // pred_check
        %p178 = pneg %p177
      $region30: #{fused_forward.1} parent=5 // pred_check_branch
        %180 = sbr.rel (%p178) target = $region32
      $region31: #{fused_forward.1} parent=5 // pred_region
        // Predicated region
        $region33: #{fused_forward.1} parent=31 // pred_check
          %p181 = pneg %p34
        $region34: #{fused_forward.1} parent=31 // pred_check_branch
          %183 = sbr.rel (%p181) target = $region36
        $region35: #{fused_forward.1} parent=31 // pred_region
          %p184 = scmp.lt.s32.totalorder %s14, 1
          %s185 = scalar_select %p184, %s14, 1
          %s186 = smul.addr %s185, 32
          %s187 = smul.addr %s186, 8
          %s188 = scalar_lea.vmem %s0, %s187
        $region36: #{fused_forward.1} parent=31 // pred_fallthru
          _
      $region32: #{fused_forward.1} parent=5 // pred_fallthru
        _
      %p189 = scmp.le.s32.totalorder 1, %s14
      %p190 = scmp.lt.s32.totalorder %s14, 3
      %p191 = pnand %p189, %p190
      %p192 = pneg %p191
      // Predicated region
      $region37: #{fused_forward.1} parent=5 // pred_check
        _
      $region38: #{fused_forward.1} parent=5 // pred_check_branch
        %194 = sbr.rel (%p191) target = $region40
      $region39: #{fused_forward.1} parent=5 // pred_region
        %s195 = ssub.s32 %s14, 1
        %p196 = scmp.lt.s32.totalorder %s19, 1
        %s197 = scalar_select %p196, %s19, 1
        %s198 = smul.addr %s197, 32
        %s199 = smul.addr %s198, 8
        %s200 = scalar_lea.vmem %s0, %s199
        %p201 = pneg %p40
        %p202 = pneg %p37
        %p203 = pneg %p61
        %p204 = pneg %p58
        %p205 = pneg %p82
        %p206 = pneg %p79
        %p207 = pneg %p103
        %p208 = pneg %p100
        %p209 = pneg %p124
        %p210 = pneg %p121
        %p211 = pneg %p150
        %p212 = pneg %p147
        %s213 = sand.u32 %s137, 1
        %s214 = scalar_lea.sflag [#allocation3], %s213
        %s215 = sand.u32 %s137, 1
        %s216 = smul.addr %s215, 16
        %s217 = scalar_lea.vmem [#allocation2], %s216
        %p218 = scmp.lt.s32.totalorder %s19, 1
        %s219 = scalar_select %p218, %s19, 1
        %s220 = smul.addr %s219, 32
        %s221 = smul.addr %s220, 8
        %s222 = scalar_lea.vmem %s0, %s221
        %v223 = vld [vmem:[%s222] sm:$0xff]
        %v224 = vld [vmem:[%s222 + $0x8] sm:$0xff]
        %v225 = vld [vmem:[%s222 + $0x10] sm:$0xff]
        %v226 = vld [vmem:[%s222 + $0x18] sm:$0xff]
        %v227 = vld [vmem:[%s222 + $0x20] sm:$0xff]
        %v228 = vld [vmem:[%s222 + $0x28] sm:$0xff]
        %v229 = vld [vmem:[%s222 + $0x30] sm:$0xff]
        %v230 = vld [vmem:[%s222 + $0x38] sm:$0xff]
        %v231 = vld [vmem:[%s222 + $0x40] sm:$0xff]
        %v232 = vld [vmem:[%s222 + $0x48] sm:$0xff]
        %v233 = vld [vmem:[%s222 + $0x50] sm:$0xff]
        %v234 = vld [vmem:[%s222 + $0x58] sm:$0xff]
        %v235 = vld [vmem:[%s222 + $0x60] sm:$0xff]
        %v236 = vld [vmem:[%s222 + $0x68] sm:$0xff]
        %v237 = vld [vmem:[%s222 + $0x70] sm:$0xff]
        %v238 = vld [vmem:[%s222 + $0x78] sm:$0xff]
        %v239 = vld [vmem:[%s222 + $0x80] sm:$0xff]
        %v240 = vld [vmem:[%s222 + $0x88] sm:$0xff]
        %v241 = vld [vmem:[%s222 + $0x90] sm:$0xff]
        %v242 = vld [vmem:[%s222 + $0x98] sm:$0xff]
        %v243 = vld [vmem:[%s222 + $0xa0] sm:$0xff]
        %v244 = vld [vmem:[%s222 + $0xa8] sm:$0xff]
        %v245 = vld [vmem:[%s222 + $0xb0] sm:$0xff]
        %v246 = vld [vmem:[%s222 + $0xb8] sm:$0xff]
        %v247 = vld [vmem:[%s222 + $0xc0] sm:$0xff]
        %v248 = vld [vmem:[%s222 + $0xc8] sm:$0xff]
        %v249 = vld [vmem:[%s222 + $0xd0] sm:$0xff]
        %v250 = vld [vmem:[%s222 + $0xd8] sm:$0xff]
        %v251 = vld [vmem:[%s222 + $0xe0] sm:$0xff]
        %v252 = vld [vmem:[%s222 + $0xe8] sm:$0xff]
        %v253 = vld [vmem:[%s222 + $0xf0] sm:$0xff]
        %v254 = vld [vmem:[%s222 + $0xf8] sm:$0xff]
        %v255 = vld [vmem:[%s1] sm:$0xff]
        %v256 = vld [vmem:[%s1 + $0x8] sm:$0xff]
        %v257 = vld [vmem:[%s1 + $0x10] sm:$0xff]
        %v258 = vld [vmem:[%s1 + $0x18] sm:$0x7]
        %v259 = vld [vmem:[%s2] sm:$0x1]
        %v261 = vlaneseq
        %v262 = vshrl.u32 %v261, 7
        %v263 = vsub.s32 0, %v262
        %v264 = vrot.slane %v259, %v263
        %vm266 = vcmask 220160
        %v268 = vsel %vm266, %v223, 0
        %v271 = vsel %vm266, %v224, 0
        %v274 = vsel %vm266, %v225, 0
        %v277 = vsel %vm266, %v226, 0
        %v280 = vsel %vm266, %v227, 0
        %v283 = vsel %vm266, %v228, 0
        %v286 = vsel %vm266, %v229, 0
        %v289 = vsel %vm266, %v230, 0
        %v292 = vsel %vm266, %v231, 0
        %v295 = vsel %vm266, %v232, 0
        %v298 = vsel %vm266, %v233, 0
        %v301 = vsel %vm266, %v234, 0
        %v304 = vsel %vm266, %v235, 0
        %v307 = vsel %vm266, %v236, 0
        %v310 = vsel %vm266, %v237, 0
        %v313 = vsel %vm266, %v238, 0
        %v316 = vsel %vm266, %v239, 0
        %v319 = vsel %vm266, %v240, 0
        %v322 = vsel %vm266, %v241, 0
        %v325 = vsel %vm266, %v242, 0
        %v328 = vsel %vm266, %v243, 0
        %v331 = vsel %vm266, %v244, 0
        %v334 = vsel %vm266, %v245, 0
        %v337 = vsel %vm266, %v246, 0
        %v340 = vsel %vm266, %v247, 0
        %v343 = vsel %vm266, %v248, 0
        %v346 = vsel %vm266, %v249, 0
        %v349 = vsel %vm266, %v250, 0
        %v352 = vsel %vm266, %v251, 0
        %v355 = vsel %vm266, %v252, 0
        %v358 = vsel %vm266, %v253, 0
        %v361 = vsel %vm266, %v254, 0
        %vm363 = vcmask 1042432
        %v365 = vsel %vm363, %v258, 0
        %367 = vmatprep.subr.mxu0 0.0
        %368 = vmatpush1.msra.mxu0 %v255
        %369 = vmatprep.subr.mxu0 0.0
        %370 = vmatpush1.msra.mxu0 %v256
        %371 = vmatprep.subr.mxu0 0.0
        %372 = vmatpush1.msra.mxu0 %v257
        %373 = vmatprep.subr.mxu0 0.0
        %374 = vmatpush1.msra.mxu0 %v365
        %375 = vmatprep.subr.mxu0 0.0
        %376 = vmatpush1.msra.mxu0 0.0
        %377 = vmatprep.subr.mxu0 0.0
        %378 = vmatpush1.msra.mxu0 0.0
        %379 = vmatprep.subr.mxu0 0.0
        %380 = vmatpush1.msra.mxu0 0.0
        %381 = vmatprep.subr.mxu0 0.0
        %382 = vmatpush1.msra.mxu0 0.0
        %383 = vmatprep.subr.mxu0 0.0
        %384 = vmatpush1.msra.mxu0 0.0
        %385 = vmatprep.subr.mxu0 0.0
        %386 = vmatpush1.msra.mxu0 0.0
        %387 = vmatprep.subr.mxu0 0.0
        %388 = vmatpush1.msra.mxu0 0.0
        %389 = vmatprep.subr.mxu0 0.0
        %390 = vmatpush1.msra.mxu0 0.0
        %391 = vmatprep.subr.mxu0 0.0
        %392 = vmatpush1.msra.mxu0 0.0
        %393 = vmatprep.subr.mxu0 0.0
        %394 = vmatpush1.msra.mxu0 0.0
        %395 = vmatprep.subr.mxu0 0.0
        %396 = vmatpush1.msra.mxu0 0.0
        %397 = vmatprep.subr.mxu0 0.0
        %398 = vmatpush1.msra.mxu0 0.0
        %399 = vmatprep.subr.mxu0 0.0
        %400 = vmatpush1.msra.mxu0 0.0
        %401 = vmatprep.subr.mxu0 0.0
        %402 = vmatpush1.msra.mxu0 0.0
        %403 = vmatprep.subr.mxu0 0.0
        %404 = vmatpush1.msra.mxu0 0.0
        %405 = vmatprep.subr.mxu0 0.0
        %406 = vmatpush1.msra.mxu0 0.0
        %407 = vmatprep.subr.mxu0 0.0
        %408 = vmatpush1.msra.mxu0 0.0
        %409 = vmatprep.subr.mxu0 0.0
        %410 = vmatpush1.msra.mxu0 0.0
        %411 = vmatprep.subr.mxu0 0.0
        %412 = vmatpush1.msra.mxu0 0.0
        %413 = vmatprep.subr.mxu0 0.0
        %414 = vmatpush1.msra.mxu0 0.0
        %415 = vmatprep.subr.mxu0 0.0
        %416 = vmatpush1.msra.mxu0 0.0
        %417 = vmatprep.subr.mxu0 0.0
        %418 = vmatpush1.msra.mxu0 0.0
        %419 = vmatprep.subr.mxu0 0.0
        %420 = vmatpush1.msra.mxu0 0.0
        %421 = vmatprep.subr.mxu0 0.0
        %422 = vmatpush1.msra.mxu0 0.0
        %423 = vmatprep.subr.mxu0 0.0
        %424 = vmatpush1.msra.mxu0 0.0
        %425 = vmatprep.subr.mxu0 0.0
        %426 = vmatpush1.msra.mxu0 0.0
        %427 = vmatprep.subr.mxu0 0.0
        %428 = vmatpush1.msra.mxu0 0.0
        %429 = vmatprep.subr.mxu0 0.0
        %430 = vmatpush1.msra.mxu0 0.0
        %431 = vmatprep.mubr.f32.mxu0 0.0
        %432 = vmatmul.mubr.f32.gmra.mrb[0].mxu0 %v268
        %v433 = vpop.f32.mrb[0].mxu0
        %v434 = vadd.f32 %v264, %v433
        %v435 = vpop.f32.mrb[0].mxu0
        %436 = vmatprep.mubr.f32.mxu0 0.0
        %437 = vmatmul.mubr.f32.gmra.mrb[0].mxu0 %v271
        %v438 = vpop.f32.mrb[0].mxu0
        %v439 = vadd.f32 %v264, %v438
        %v440 = vpop.f32.mrb[0].mxu0
        %441 = vmatprep.mubr.f32.mxu0 0.0
        %442 = vmatmul.mubr.f32.gmra.mrb[0].mxu0 %v274
        %v443 = vpop.f32.mrb[0].mxu0
        %v444 = vadd.f32 %v264, %v443
        %v445 = vpop.f32.mrb[0].mxu0
        %446 = vmatprep.mubr.f32.mxu0 0.0
        %447 = vmatmul.mubr.f32.gmra.mrb[0].mxu0 %v277
        %v448 = vpop.f32.mrb[0].mxu0
        %v449 = vadd.f32 %v264, %v448
        %v450 = vpop.f32.mrb[0].mxu0
        %451 = vmatprep.mubr.f32.mxu0 0.0
        %452 = vmatmul.mubr.f32.gmra.mrb[0].mxu0 %v280
        %v453 = vpop.f32.mrb[0].mxu0
        %v454 = vadd.f32 %v264, %v453
        %v455 = vpop.f32.mrb[0].mxu0
        %456 = vmatprep.mubr.f32.mxu0 0.0
        %457 = vmatmul.mubr.f32.gmra.mrb[0].mxu0 %v283
        %v458 = vpop.f32.mrb[0].mxu0
        %v459 = vadd.f32 %v264, %v458
        %v460 = vpop.f32.mrb[0].mxu0
        %461 = vmatprep.mubr.f32.mxu0 0.0
        %462 = vmatmul.mubr.f32.gmra.mrb[0].mxu0 %v286
        %v463 = vpop.f32.mrb[0].mxu0
        %v464 = vadd.f32 %v264, %v463
        %v465 = vpop.f32.mrb[0].mxu0
        %466 = vmatprep.mubr.f32.mxu0 0.0
        %467 = vmatmul.mubr.f32.gmra.mrb[0].mxu0 %v289
        %v468 = vpop.f32.mrb[0].mxu0
        %v469 = vadd.f32 %v264, %v468
        %v470 = vpop.f32.mrb[0].mxu0
        %471 = vmatprep.mubr.f32.mxu0 0.0
        %472 = vmatmul.mubr.f32.gmra.mrb[0].mxu0 %v292
        %v473 = vpop.f32.mrb[0].mxu0
        %v474 = vadd.f32 %v264, %v473
        %v475 = vpop.f32.mrb[0].mxu0
        %476 = vmatprep.mubr.f32.mxu0 0.0
        %477 = vmatmul.mubr.f32.gmra.mrb[0].mxu0 %v295
        %v478 = vpop.f32.mrb[0].mxu0
        %v479 = vadd.f32 %v264, %v478
        %v480 = vpop.f32.mrb[0].mxu0
        %481 = vmatprep.mubr.f32.mxu0 0.0
        %482 = vmatmul.mubr.f32.gmra.mrb[0].mxu0 %v298
        %v483 = vpop.f32.mrb[0].mxu0
        %v484 = vadd.f32 %v264, %v483
        %v485 = vpop.f32.mrb[0].mxu0
        %486 = vmatprep.mubr.f32.mxu0 0.0
        %487 = vmatmul.mubr.f32.gmra.mrb[0].mxu0 %v301
        %v488 = vpop.f32.mrb[0].mxu0
        %v489 = vadd.f32 %v264, %v488
        %v490 = vpop.f32.mrb[0].mxu0
        %491 = vmatprep.mubr.f32.mxu0 0.0
        %492 = vmatmul.mubr.f32.gmra.mrb[0].mxu0 %v304
        %v493 = vpop.f32.mrb[0].mxu0
        %v494 = vadd.f32 %v264, %v493
        %v495 = vpop.f32.mrb[0].mxu0
        %496 = vmatprep.mubr.f32.mxu0 0.0
        %497 = vmatmul.mubr.f32.gmra.mrb[0].mxu0 %v307
        %v498 = vpop.f32.mrb[0].mxu0
        %v499 = vadd.f32 %v264, %v498
        %v500 = vpop.f32.mrb[0].mxu0
        %501 = vmatprep.mubr.f32.mxu0 0.0
        %502 = vmatmul.mubr.f32.gmra.mrb[0].mxu0 %v310
        %v503 = vpop.f32.mrb[0].mxu0
        %v504 = vadd.f32 %v264, %v503
        %v505 = vpop.f32.mrb[0].mxu0
        %506 = vmatprep.mubr.f32.mxu0 0.0
        %507 = vmatmul.mubr.f32.gmra.mrb[0].mxu0 %v313
        %v508 = vpop.f32.mrb[0].mxu0
        %v509 = vadd.f32 %v264, %v508
        %v510 = vpop.f32.mrb[0].mxu0
        %511 = vmatprep.mubr.f32.mxu0 0.0
        %512 = vmatmul.mubr.f32.gmra.mrb[0].mxu0 %v316
        %v513 = vpop.f32.mrb[0].mxu0
        %v514 = vadd.f32 %v264, %v513
        %v515 = vpop.f32.mrb[0].mxu0
        %516 = vmatprep.mubr.f32.mxu0 0.0
        %517 = vmatmul.mubr.f32.gmra.mrb[0].mxu0 %v319
        %v518 = vpop.f32.mrb[0].mxu0
        %v519 = vadd.f32 %v264, %v518
        %v520 = vpop.f32.mrb[0].mxu0
        %521 = vmatprep.mubr.f32.mxu0 0.0
        %522 = vmatmul.mubr.f32.gmra.mrb[0].mxu0 %v322
        %v523 = vpop.f32.mrb[0].mxu0
        %v524 = vadd.f32 %v264, %v523
        %v525 = vpop.f32.mrb[0].mxu0
        %526 = vmatprep.mubr.f32.mxu0 0.0
        %527 = vmatmul.mubr.f32.gmra.mrb[0].mxu0 %v325
        %v528 = vpop.f32.mrb[0].mxu0
        %v529 = vadd.f32 %v264, %v528
        %v530 = vpop.f32.mrb[0].mxu0
        %531 = vmatprep.mubr.f32.mxu0 0.0
        %532 = vmatmul.mubr.f32.gmra.mrb[0].mxu0 %v328
        %v533 = vpop.f32.mrb[0].mxu0
        %v534 = vadd.f32 %v264, %v533
        %v535 = vpop.f32.mrb[0].mxu0
        %536 = vmatprep.mubr.f32.mxu0 0.0
        %537 = vmatmul.mubr.f32.gmra.mrb[0].mxu0 %v331
        %v538 = vpop.f32.mrb[0].mxu0
        %v539 = vadd.f32 %v264, %v538
        %v540 = vpop.f32.mrb[0].mxu0
        %541 = vmatprep.mubr.f32.mxu0 0.0
        %542 = vmatmul.mubr.f32.gmra.mrb[0].mxu0 %v334
        %v543 = vpop.f32.mrb[0].mxu0
        %v544 = vadd.f32 %v264, %v543
        %v545 = vpop.f32.mrb[0].mxu0
        %546 = vmatprep.mubr.f32.mxu0 0.0
        %547 = vmatmul.mubr.f32.gmra.mrb[0].mxu0 %v337
        %v548 = vpop.f32.mrb[0].mxu0
        %v549 = vadd.f32 %v264, %v548
        %v550 = vpop.f32.mrb[0].mxu0
        %551 = vmatprep.mubr.f32.mxu0 0.0
        %552 = vmatmul.mubr.f32.gmra.mrb[0].mxu0 %v340
        %v553 = vpop.f32.mrb[0].mxu0
        %v554 = vadd.f32 %v264, %v553
        %v555 = vpop.f32.mrb[0].mxu0
        %556 = vmatprep.mubr.f32.mxu0 0.0
        %557 = vmatmul.mubr.f32.gmra.mrb[0].mxu0 %v343
        %v558 = vpop.f32.mrb[0].mxu0
        %v559 = vadd.f32 %v264, %v558
        %v560 = vpop.f32.mrb[0].mxu0
        %561 = vmatprep.mubr.f32.mxu0 0.0
        %562 = vmatmul.mubr.f32.gmra.mrb[0].mxu0 %v346
        %v563 = vpop.f32.mrb[0].mxu0
        %v564 = vadd.f32 %v264, %v563
        %v565 = vpop.f32.mrb[0].mxu0
        %566 = vmatprep.mubr.f32.mxu0 0.0
        %567 = vmatmul.mubr.f32.gmra.mrb[0].mxu0 %v349
        %v568 = vpop.f32.mrb[0].mxu0
        %v569 = vadd.f32 %v264, %v568
        %v570 = vpop.f32.mrb[0].mxu0
        %571 = vmatprep.mubr.f32.mxu0 0.0
        %572 = vmatmul.mubr.f32.gmra.mrb[0].mxu0 %v352
        %v573 = vpop.f32.mrb[0].mxu0
        %v574 = vadd.f32 %v264, %v573
        %v575 = vpop.f32.mrb[0].mxu0
        %576 = vmatprep.mubr.f32.mxu0 0.0
        %577 = vmatmul.mubr.f32.gmra.mrb[0].mxu0 %v355
        %v578 = vpop.f32.mrb[0].mxu0
        %v579 = vadd.f32 %v264, %v578
        %v580 = vpop.f32.mrb[0].mxu0
        %581 = vmatprep.mubr.f32.mxu0 0.0
        %582 = vmatmul.mubr.f32.gmra.mrb[0].mxu0 %v358
        %v583 = vpop.f32.mrb[0].mxu0
        %v584 = vadd.f32 %v264, %v583
        %v585 = vpop.f32.mrb[0].mxu0
        %586 = vmatprep.mubr.f32.mxu0 0.0
        %587 = vmatmul.mubr.f32.gmra.mrb[0].mxu0 %v361
        %v588 = vpop.f32.mrb[0].mxu0
        %v589 = vadd.f32 %v264, %v588
        %v590 = vpop.f32.mrb[0].mxu0
        %591 = vdwg.mxu0
        %vm592 = vcmask 261120
        %v593 = vsel %vm592, %v434, -inf
        %v594 = vsel %vm592, %v439, -inf
        %v595 = vmax.f32 %v593, %v594
        %v596 = vrot.slane %v595, 4
        %v597 = vmax.f32 %v595, %v596
        %v598 = vrot.slane %v597, 2
        %v599 = vmax.f32 %v597, %v598
        %v600 = vrot.slane %v599, 1
        %v601 = vmax.f32 %v599, %v600
        %v602 = vsel %vm592, %v444, -inf
        %v603 = vsel %vm592, %v449, -inf
        %v604 = vmax.f32 %v602, %v603
        %v605 = vrot.slane %v604, 4
        %v606 = vmax.f32 %v604, %v605
        %v607 = vrot.slane %v606, 2
        %v608 = vmax.f32 %v606, %v607
        %v609 = vrot.slane %v608, 1
        %v610 = vmax.f32 %v608, %v609
        %v611 = vsel %vm592, %v454, -inf
        %v612 = vsel %vm592, %v459, -inf
        %v613 = vmax.f32 %v611, %v612
        %v614 = vrot.slane %v613, 4
        %v615 = vmax.f32 %v613, %v614
        %v616 = vrot.slane %v615, 2
        %v617 = vmax.f32 %v615, %v616
        %v618 = vrot.slane %v617, 1
        %v619 = vmax.f32 %v617, %v618
        %v620 = vsel %vm592, %v464, -inf
        %v621 = vsel %vm592, %v469, -inf
        %v622 = vmax.f32 %v620, %v621
        %v623 = vrot.slane %v622, 4
        %v624 = vmax.f32 %v622, %v623
        %v625 = vrot.slane %v624, 2
        %v626 = vmax.f32 %v624, %v625
        %v627 = vrot.slane %v626, 1
        %v628 = vmax.f32 %v626, %v627
        %v629 = vsel %vm592, %v474, -inf
        %v630 = vsel %vm592, %v479, -inf
        %v631 = vmax.f32 %v629, %v630
        %v632 = vrot.slane %v631, 4
        %v633 = vmax.f32 %v631, %v632
        %v634 = vrot.slane %v633, 2
        %v635 = vmax.f32 %v633, %v634
        %v636 = vrot.slane %v635, 1
        %v637 = vmax.f32 %v635, %v636
        %v638 = vsel %vm592, %v484, -inf
        %v639 = vsel %vm592, %v489, -inf
        %v640 = vmax.f32 %v638, %v639
        %v641 = vrot.slane %v640, 4
        %v642 = vmax.f32 %v640, %v641
        %v643 = vrot.slane %v642, 2
        %v644 = vmax.f32 %v642, %v643
        %v645 = vrot.slane %v644, 1
        %v646 = vmax.f32 %v644, %v645
        %v647 = vsel %vm592, %v494, -inf
        %v648 = vsel %vm592, %v499, -inf
        %v649 = vmax.f32 %v647, %v648
        %v650 = vrot.slane %v649, 4
        %v651 = vmax.f32 %v649, %v650
        %v652 = vrot.slane %v651, 2
        %v653 = vmax.f32 %v651, %v652
        %v654 = vrot.slane %v653, 1
        %v655 = vmax.f32 %v653, %v654
        %v656 = vsel %vm592, %v504, -inf
        %v657 = vsel %vm592, %v509, -inf
        %v658 = vmax.f32 %v656, %v657
        %v659 = vrot.slane %v658, 4
        %v660 = vmax.f32 %v658, %v659
        %v661 = vrot.slane %v660, 2
        %v662 = vmax.f32 %v660, %v661
        %v663 = vrot.slane %v662, 1
        %v664 = vmax.f32 %v662, %v663
        %v665 = vsel %vm592, %v514, -inf
        %v666 = vsel %vm592, %v519, -inf
        %v667 = vmax.f32 %v665, %v666
        %v668 = vrot.slane %v667, 4
        %v669 = vmax.f32 %v667, %v668
        %v670 = vrot.slane %v669, 2
        %v671 = vmax.f32 %v669, %v670
        %v672 = vrot.slane %v671, 1
        %v673 = vmax.f32 %v671, %v672
        %v674 = vsel %vm592, %v524, -inf
        %v675 = vsel %vm592, %v529, -inf
        %v676 = vmax.f32 %v674, %v675
        %v677 = vrot.slane %v676, 4
        %v678 = vmax.f32 %v676, %v677
        %v679 = vrot.slane %v678, 2
        %v680 = vmax.f32 %v678, %v679
        %v681 = vrot.slane %v680, 1
        %v682 = vmax.f32 %v680, %v681
        %v683 = vsel %vm592, %v534, -inf
        %v684 = vsel %vm592, %v539, -inf
        %v685 = vmax.f32 %v683, %v684
        %v686 = vrot.slane %v685, 4
        %v687 = vmax.f32 %v685, %v686
        %v688 = vrot.slane %v687, 2
        %v689 = vmax.f32 %v687, %v688
        %v690 = vrot.slane %v689, 1
        %v691 = vmax.f32 %v689, %v690
        %v692 = vsel %vm592, %v544, -inf
        %v693 = vsel %vm592, %v549, -inf
        %v694 = vmax.f32 %v692, %v693
        %v695 = vrot.slane %v694, 4
        %v696 = vmax.f32 %v694, %v695
        %v697 = vrot.slane %v696, 2
        %v698 = vmax.f32 %v696, %v697
        %v699 = vrot.slane %v698, 1
        %v700 = vmax.f32 %v698, %v699
        %v701 = vsel %vm592, %v554, -inf
        %v702 = vsel %vm592, %v559, -inf
        %v703 = vmax.f32 %v701, %v702
        %v704 = vrot.slane %v703, 4
        %v705 = vmax.f32 %v703, %v704
        %v706 = vrot.slane %v705, 2
        %v707 = vmax.f32 %v705, %v706
        %v708 = vrot.slane %v707, 1
        %v709 = vmax.f32 %v707, %v708
        %v710 = vsel %vm592, %v564, -inf
        %v711 = vsel %vm592, %v569, -inf
        %v712 = vmax.f32 %v710, %v711
        %v713 = vrot.slane %v712, 4
        %v714 = vmax.f32 %v712, %v713
        %v715 = vrot.slane %v714, 2
        %v716 = vmax.f32 %v714, %v715
        %v717 = vrot.slane %v716, 1
        %v718 = vmax.f32 %v716, %v717
        %v719 = vsel %vm592, %v574, -inf
        %v720 = vsel %vm592, %v579, -inf
        %v721 = vmax.f32 %v719, %v720
        %v722 = vrot.slane %v721, 4
        %v723 = vmax.f32 %v721, %v722
        %v724 = vrot.slane %v723, 2
        %v725 = vmax.f32 %v723, %v724
        %v726 = vrot.slane %v725, 1
        %v727 = vmax.f32 %v725, %v726
        %v728 = vsel %vm592, %v584, -inf
        %v729 = vsel %vm592, %v589, -inf
        %v730 = vmax.f32 %v728, %v729
        %v731 = vrot.slane %v730, 4
        %v732 = vmax.f32 %v730, %v731
        %v733 = vrot.slane %v732, 2
        %v734 = vmax.f32 %v732, %v733
        %v735 = vrot.slane %v734, 1
        %v736 = vmax.f32 %v734, %v735
        %v737 = vlaneseq
        %v738 = vshrl.u32 %v737, 7
        %v739 = vadd.s32 %v738, 8
        %v740 = vadd.s32 %v738, 16
        %v741 = vadd.s32 %v738, 24
        %v742 = vadd.s32 %v738, 32
        %v743 = vadd.s32 %v738, 40
        %v744 = vadd.s32 %v738, 48
        %v745 = vadd.s32 %v738, 56
        %v746 = vadd.s32 %v738, 64
        %v747 = vadd.s32 %v738, 72
        %v748 = vadd.s32 %v738, 80
        %v749 = vadd.s32 %v738, 88
        %v750 = vadd.s32 %v738, 96
        %v751 = vadd.s32 %v738, 104
        %v752 = vadd.s32 %v738, 112
        %v753 = vadd.s32 %v738, 120
        %v754 = vadd.s32 %v738, 128
        %v755 = vadd.s32 %v738, 136
        %v756 = vadd.s32 %v738, 144
        %v757 = vadd.s32 %v738, 152
        %v758 = vadd.s32 %v738, 160
        %v759 = vadd.s32 %v738, 168
        %v760 = vadd.s32 %v738, 176
        %v761 = vadd.s32 %v738, 184
        %v762 = vadd.s32 %v738, 192
        %v763 = vadd.s32 %v738, 200
        %v764 = vadd.s32 %v738, 208
        %v765 = vadd.s32 %v738, 216
        %v766 = vadd.s32 %v738, 224
        %v767 = vadd.s32 %v738, 232
        %v768 = vadd.s32 %v738, 240
        %v769 = vadd.s32 %v738, 248
        %vm770 = vcmp.lt.s32.totalorder %v738, 0
        %v771 = vsub.s32 0, %v738
        %v772 = vsel %vm770, %v771, %v738
        %v773 = vshrl.u32 %v772, 4
        %v774 = vand.u32 %v772, 15
        %v775 = vsub.s32 0, %v774
        %v776 = vsel %vm770, %v775, %v774
        %vm777 = vcmp.lt.s32.totalorder %v739, 0
        %v778 = vsub.s32 0, %v739
        %v779 = vsel %vm777, %v778, %v739
        %v780 = vshrl.u32 %v779, 4
        %v781 = vand.u32 %v779, 15
        %v782 = vsub.s32 0, %v781
        %v783 = vsel %vm777, %v782, %v781
        %vm784 = vcmp.lt.s32.totalorder %v740, 0
        %v785 = vsub.s32 0, %v740
        %v786 = vsel %vm784, %v785, %v740
        %v787 = vshrl.u32 %v786, 4
        %v788 = vand.u32 %v786, 15
        %v789 = vsub.s32 0, %v788
        %v790 = vsel %vm784, %v789, %v788
        %vm791 = vcmp.lt.s32.totalorder %v741, 0
        %v792 = vsub.s32 0, %v741
        %v793 = vsel %vm791, %v792, %v741
        %v794 = vshrl.u32 %v793, 4
        %v795 = vand.u32 %v793, 15
        %v796 = vsub.s32 0, %v795
        %v797 = vsel %vm791, %v796, %v795
        %vm798 = vcmp.lt.s32.totalorder %v742, 0
        %v799 = vsub.s32 0, %v742
        %v800 = vsel %vm798, %v799, %v742
        %v801 = vshrl.u32 %v800, 4
        %v802 = vand.u32 %v800, 15
        %v803 = vsub.s32 0, %v802
        %v804 = vsel %vm798, %v803, %v802
        %vm805 = vcmp.lt.s32.totalorder %v743, 0
        %v806 = vsub.s32 0, %v743
        %v807 = vsel %vm805, %v806, %v743
        %v808 = vshrl.u32 %v807, 4
        %v809 = vand.u32 %v807, 15
        %v810 = vsub.s32 0, %v809
        %v811 = vsel %vm805, %v810, %v809
        %vm812 = vcmp.lt.s32.totalorder %v744, 0
        %v813 = vsub.s32 0, %v744
        %v814 = vsel %vm812, %v813, %v744
        %v815 = vshrl.u32 %v814, 4
        %v816 = vand.u32 %v814, 15
        %v817 = vsub.s32 0, %v816
        %v818 = vsel %vm812, %v817, %v816
        %vm819 = vcmp.lt.s32.totalorder %v745, 0
        %v820 = vsub.s32 0, %v745
        %v821 = vsel %vm819, %v820, %v745
        %v822 = vshrl.u32 %v821, 4
        %v823 = vand.u32 %v821, 15
        %v824 = vsub.s32 0, %v823
        %v825 = vsel %vm819, %v824, %v823
        %vm826 = vcmp.lt.s32.totalorder %v746, 0
        %v827 = vsub.s32 0, %v746
        %v828 = vsel %vm826, %v827, %v746
        %v829 = vshrl.u32 %v828, 4
        %v830 = vand.u32 %v828, 15
        %v831 = vsub.s32 0, %v830
        %v832 = vsel %vm826, %v831, %v830
        %vm833 = vcmp.lt.s32.totalorder %v747, 0
        %v834 = vsub.s32 0, %v747
        %v835 = vsel %vm833, %v834, %v747
        %v836 = vshrl.u32 %v835, 4
        %v837 = vand.u32 %v835, 15
        %v838 = vsub.s32 0, %v837
        %v839 = vsel %vm833, %v838, %v837
        %vm840 = vcmp.lt.s32.totalorder %v748, 0
        %v841 = vsub.s32 0, %v748
        %v842 = vsel %vm840, %v841, %v748
        %v843 = vshrl.u32 %v842, 4
        %v844 = vand.u32 %v842, 15
        %v845 = vsub.s32 0, %v844
        %v846 = vsel %vm840, %v845, %v844
        %vm847 = vcmp.lt.s32.totalorder %v749, 0
        %v848 = vsub.s32 0, %v749
        %v849 = vsel %vm847, %v848, %v749
        %v850 = vshrl.u32 %v849, 4
        %v851 = vand.u32 %v849, 15
        %v852 = vsub.s32 0, %v851
        %v853 = vsel %vm847, %v852, %v851
        %vm854 = vcmp.lt.s32.totalorder %v750, 0
        %v855 = vsub.s32 0, %v750
        %v856 = vsel %vm854, %v855, %v750
        %v857 = vshrl.u32 %v856, 4
        %v858 = vand.u32 %v856, 15
        %v859 = vsub.s32 0, %v858
        %v860 = vsel %vm854, %v859, %v858
        %vm861 = vcmp.lt.s32.totalorder %v751, 0
        %v862 = vsub.s32 0, %v751
        %v863 = vsel %vm861, %v862, %v751
        %v864 = vshrl.u32 %v863, 4
        %v865 = vand.u32 %v863, 15
        %v866 = vsub.s32 0, %v865
        %v867 = vsel %vm861, %v866, %v865
        %vm868 = vcmp.lt.s32.totalorder %v752, 0
        %v869 = vsub.s32 0, %v752
        %v870 = vsel %vm868, %v869, %v752
        %v871 = vshrl.u32 %v870, 4
        %v872 = vand.u32 %v870, 15
        %v873 = vsub.s32 0, %v872
        %v874 = vsel %vm868, %v873, %v872
        %vm875 = vcmp.lt.s32.totalorder %v753, 0
        %v876 = vsub.s32 0, %v753
        %v877 = vsel %vm875, %v876, %v753
        %v878 = vshrl.u32 %v877, 4
        %v879 = vand.u32 %v877, 15
        %v880 = vsub.s32 0, %v879
        %v881 = vsel %vm875, %v880, %v879
        %vm882 = vcmp.lt.s32.totalorder %v754, 0
        %v883 = vsub.s32 0, %v754
        %v884 = vsel %vm882, %v883, %v754
        %v885 = vshrl.u32 %v884, 4
        %v886 = vand.u32 %v884, 15
        %v887 = vsub.s32 0, %v886
        %v888 = vsel %vm882, %v887, %v886
        %vm889 = vcmp.lt.s32.totalorder %v755, 0
        %v890 = vsub.s32 0, %v755
        %v891 = vsel %vm889, %v890, %v755
        %v892 = vshrl.u32 %v891, 4
        %v893 = vand.u32 %v891, 15
        %v894 = vsub.s32 0, %v893
        %v895 = vsel %vm889, %v894, %v893
        %vm896 = vcmp.lt.s32.totalorder %v756, 0
        %v897 = vsub.s32 0, %v756
        %v898 = vsel %vm896, %v897, %v756
        %v899 = vshrl.u32 %v898, 4
        %v900 = vand.u32 %v898, 15
        %v901 = vsub.s32 0, %v900
        %v902 = vsel %vm896, %v901, %v900
        %vm903 = vcmp.lt.s32.totalorder %v757, 0
        %v904 = vsub.s32 0, %v757
        %v905 = vsel %vm903, %v904, %v757
        %v906 = vshrl.u32 %v905, 4
        %v907 = vand.u32 %v905, 15
        %v908 = vsub.s32 0, %v907
        %v909 = vsel %vm903, %v908, %v907
        %vm910 = vcmp.lt.s32.totalorder %v758, 0
        %v911 = vsub.s32 0, %v758
        %v912 = vsel %vm910, %v911, %v758
        %v913 = vshrl.u32 %v912, 4
        %v914 = vand.u32 %v912, 15
        %v915 = vsub.s32 0, %v914
        %v916 = vsel %vm910, %v915, %v914
        %vm917 = vcmp.lt.s32.totalorder %v759, 0
        %v918 = vsub.s32 0, %v759
        %v919 = vsel %vm917, %v918, %v759
        %v920 = vshrl.u32 %v919, 4
        %v921 = vand.u32 %v919, 15
        %v922 = vsub.s32 0, %v921
        %v923 = vsel %vm917, %v922, %v921
        %vm924 = vcmp.lt.s32.totalorder %v760, 0
        %v925 = vsub.s32 0, %v760
        %v926 = vsel %vm924, %v925, %v760
        %v927 = vshrl.u32 %v926, 4
        %v928 = vand.u32 %v926, 15
        %v929 = vsub.s32 0, %v928
        %v930 = vsel %vm924, %v929, %v928
        %vm931 = vcmp.lt.s32.totalorder %v761, 0
        %v932 = vsub.s32 0, %v761
        %v933 = vsel %vm931, %v932, %v761
        %v934 = vshrl.u32 %v933, 4
        %v935 = vand.u32 %v933, 15
        %v936 = vsub.s32 0, %v935
        %v937 = vsel %vm931, %v936, %v935
        %vm938 = vcmp.lt.s32.totalorder %v762, 0
        %v939 = vsub.s32 0, %v762
        %v940 = vsel %vm938, %v939, %v762
        %v941 = vshrl.u32 %v940, 4
        %v942 = vand.u32 %v940, 15
        %v943 = vsub.s32 0, %v942
        %v944 = vsel %vm938, %v943, %v942
        %vm945 = vcmp.lt.s32.totalorder %v763, 0
        %v946 = vsub.s32 0, %v763
        %v947 = vsel %vm945, %v946, %v763
        %v948 = vshrl.u32 %v947, 4
        %v949 = vand.u32 %v947, 15
        %v950 = vsub.s32 0, %v949
        %v951 = vsel %vm945, %v950, %v949
        %vm952 = vcmp.lt.s32.totalorder %v764, 0
        %v953 = vsub.s32 0, %v764
        %v954 = vsel %vm952, %v953, %v764
        %v955 = vshrl.u32 %v954, 4
        %v956 = vand.u32 %v954, 15
        %v957 = vsub.s32 0, %v956
        %v958 = vsel %vm952, %v957, %v956
        %vm959 = vcmp.lt.s32.totalorder %v765, 0
        %v960 = vsub.s32 0, %v765
        %v961 = vsel %vm959, %v960, %v765
        %v962 = vshrl.u32 %v961, 4
        %v963 = vand.u32 %v961, 15
        %v964 = vsub.s32 0, %v963
        %v965 = vsel %vm959, %v964, %v963
        %vm966 = vcmp.lt.s32.totalorder %v766, 0
        %v967 = vsub.s32 0, %v766
        %v968 = vsel %vm966, %v967, %v766
        %v969 = vshrl.u32 %v968, 4
        %v970 = vand.u32 %v968, 15
        %v971 = vsub.s32 0, %v970
        %v972 = vsel %vm966, %v971, %v970
        %vm973 = vcmp.lt.s32.totalorder %v767, 0
        %v974 = vsub.s32 0, %v767
        %v975 = vsel %vm973, %v974, %v767
        %v976 = vshrl.u32 %v975, 4
        %v977 = vand.u32 %v975, 15
        %v978 = vsub.s32 0, %v977
        %v979 = vsel %vm973, %v978, %v977
        %vm980 = vcmp.lt.s32.totalorder %v768, 0
        %v981 = vsub.s32 0, %v768
        %v982 = vsel %vm980, %v981, %v768
        %v983 = vshrl.u32 %v982, 4
        %v984 = vand.u32 %v982, 15
        %v985 = vsub.s32 0, %v984
        %v986 = vsel %vm980, %v985, %v984
        %vm987 = vcmp.lt.s32.totalorder %v769, 0
        %v988 = vsub.s32 0, %v769
        %v989 = vsel %vm987, %v988, %v769
        %v990 = vshrl.u32 %v989, 4
        %v991 = vand.u32 %v989, 15
        %v992 = vsub.s32 0, %v991
        %v993 = vsel %vm987, %v992, %v991
        %vm994 = vcmp.ne.s32.totalorder %v776, 0
        %vm995 = vcmp.ne.s32.totalorder %v783, 0
        %vm996 = vcmp.ne.s32.totalorder %v790, 0
        %vm997 = vcmp.ne.s32.totalorder %v797, 0
        %vm998 = vcmp.ne.s32.totalorder %v804, 0
        %vm999 = vcmp.ne.s32.totalorder %v811, 0
        %vm1000 = vcmp.ne.s32.totalorder %v818, 0
        %vm1001 = vcmp.ne.s32.totalorder %v825, 0
        %vm1002 = vcmp.ne.s32.totalorder %v832, 0
        %vm1003 = vcmp.ne.s32.totalorder %v839, 0
        %vm1004 = vcmp.ne.s32.totalorder %v846, 0
        %vm1005 = vcmp.ne.s32.totalorder %v853, 0
        %vm1006 = vcmp.ne.s32.totalorder %v860, 0
        %vm1007 = vcmp.ne.s32.totalorder %v867, 0
        %vm1008 = vcmp.ne.s32.totalorder %v874, 0
        %vm1009 = vcmp.ne.s32.totalorder %v881, 0
        %vm1010 = vcmp.ne.s32.totalorder %v888, 0
        %vm1011 = vcmp.ne.s32.totalorder %v895, 0
        %vm1012 = vcmp.ne.s32.totalorder %v902, 0
        %vm1013 = vcmp.ne.s32.totalorder %v909, 0
        %vm1014 = vcmp.ne.s32.totalorder %v916, 0
        %vm1015 = vcmp.ne.s32.totalorder %v923, 0
        %vm1016 = vcmp.ne.s32.totalorder %v930, 0
        %vm1017 = vcmp.ne.s32.totalorder %v937, 0
        %vm1018 = vcmp.ne.s32.totalorder %v944, 0
        %vm1019 = vcmp.ne.s32.totalorder %v951, 0
        %vm1020 = vcmp.ne.s32.totalorder %v958, 0
        %vm1021 = vcmp.ne.s32.totalorder %v965, 0
        %vm1022 = vcmp.ne.s32.totalorder %v972, 0
        %vm1023 = vcmp.ne.s32.totalorder %v979, 0
        %vm1024 = vcmp.ne.s32.totalorder %v986, 0
        %vm1025 = vcmp.ne.s32.totalorder %v993, 0
        %vm1026 = vcmp.lt.s32.totalorder %v776, 0
        %vm1027 = vcmp.lt.s32.totalorder %v783, 0
        %vm1028 = vcmp.lt.s32.totalorder %v790, 0
        %vm1029 = vcmp.lt.s32.totalorder %v797, 0
        %vm1030 = vcmp.lt.s32.totalorder %v804, 0
        %vm1031 = vcmp.lt.s32.totalorder %v811, 0
        %vm1032 = vcmp.lt.s32.totalorder %v818, 0
        %vm1033 = vcmp.lt.s32.totalorder %v825, 0
        %vm1034 = vcmp.lt.s32.totalorder %v832, 0
        %vm1035 = vcmp.lt.s32.totalorder %v839, 0
        %vm1036 = vcmp.lt.s32.totalorder %v846, 0
        %vm1037 = vcmp.lt.s32.totalorder %v853, 0
        %vm1038 = vcmp.lt.s32.totalorder %v860, 0
        %vm1039 = vcmp.lt.s32.totalorder %v867, 0
        %vm1040 = vcmp.lt.s32.totalorder %v874, 0
        %vm1041 = vcmp.lt.s32.totalorder %v881, 0
        %vm1042 = vcmp.lt.s32.totalorder %v888, 0
        %vm1043 = vcmp.lt.s32.totalorder %v895, 0
        %vm1044 = vcmp.lt.s32.totalorder %v902, 0
        %vm1045 = vcmp.lt.s32.totalorder %v909, 0
        %vm1046 = vcmp.lt.s32.totalorder %v916, 0
        %vm1047 = vcmp.lt.s32.totalorder %v923, 0
        %vm1048 = vcmp.lt.s32.totalorder %v930, 0
        %vm1049 = vcmp.lt.s32.totalorder %v937, 0
        %vm1050 = vcmp.lt.s32.totalorder %v944, 0
        %vm1051 = vcmp.lt.s32.totalorder %v951, 0
        %vm1052 = vcmp.lt.s32.totalorder %v958, 0
        %vm1053 = vcmp.lt.s32.totalorder %v965, 0
        %vm1054 = vcmp.lt.s32.totalorder %v972, 0
        %vm1055 = vcmp.lt.s32.totalorder %v979, 0
        %vm1056 = vcmp.lt.s32.totalorder %v986, 0
        %vm1057 = vcmp.lt.s32.totalorder %v993, 0
        %vm1058 = vmand %vm1026, %vm994
        %vm1059 = vmand %vm1027, %vm995
        %vm1060 = vmand %vm1028, %vm996
        %vm1061 = vmand %vm1029, %vm997
        %vm1062 = vmand %vm1030, %vm998
        %vm1063 = vmand %vm1031, %vm999
        %vm1064 = vmand %vm1032, %vm1000
        %vm1065 = vmand %vm1033, %vm1001
        %vm1066 = vmand %vm1034, %vm1002
        %vm1067 = vmand %vm1035, %vm1003
        %vm1068 = vmand %vm1036, %vm1004
        %vm1069 = vmand %vm1037, %vm1005
        %vm1070 = vmand %vm1038, %vm1006
        %vm1071 = vmand %vm1039, %vm1007
        %vm1072 = vmand %vm1040, %vm1008
        %vm1073 = vmand %vm1041, %vm1009
        %vm1074 = vmand %vm1042, %vm1010
        %vm1075 = vmand %vm1043, %vm1011
        %vm1076 = vmand %vm1044, %vm1012
        %vm1077 = vmand %vm1045, %vm1013
        %vm1078 = vmand %vm1046, %vm1014
        %vm1079 = vmand %vm1047, %vm1015
        %vm1080 = vmand %vm1048, %vm1016
        %vm1081 = vmand %vm1049, %vm1017
        %vm1082 = vmand %vm1050, %vm1018
        %vm1083 = vmand %vm1051, %vm1019
        %vm1084 = vmand %vm1052, %vm1020
        %vm1085 = vmand %vm1053, %vm1021
        %vm1086 = vmand %vm1054, %vm1022
        %vm1087 = vmand %vm1055, %vm1023
        %vm1088 = vmand %vm1056, %vm1024
        %vm1089 = vmand %vm1057, %vm1025
        %v1090 = vadd.s32 %v776, 16
        %v1091 = vadd.s32 %v783, 16
        %v1092 = vadd.s32 %v790, 16
        %v1093 = vadd.s32 %v797, 16
        %v1094 = vadd.s32 %v804, 16
        %v1095 = vadd.s32 %v811, 16
        %v1096 = vadd.s32 %v818, 16
        %v1097 = vadd.s32 %v825, 16
        %v1098 = vadd.s32 %v832, 16
        %v1099 = vadd.s32 %v839, 16
        %v1100 = vadd.s32 %v846, 16
        %v1101 = vadd.s32 %v853, 16
        %v1102 = vadd.s32 %v860, 16
        %v1103 = vadd.s32 %v867, 16
        %v1104 = vadd.s32 %v874, 16
        %v1105 = vadd.s32 %v881, 16
        %v1106 = vadd.s32 %v888, 16
        %v1107 = vadd.s32 %v895, 16
        %v1108 = vadd.s32 %v902, 16
        %v1109 = vadd.s32 %v909, 16
        %v1110 = vadd.s32 %v916, 16
        %v1111 = vadd.s32 %v923, 16
        %v1112 = vadd.s32 %v930, 16
        %v1113 = vadd.s32 %v937, 16
        %v1114 = vadd.s32 %v944, 16
        %v1115 = vadd.s32 %v951, 16
        %v1116 = vadd.s32 %v958, 16
        %v1117 = vadd.s32 %v965, 16
        %v1118 = vadd.s32 %v972, 16
        %v1119 = vadd.s32 %v979, 16
        %v1120 = vadd.s32 %v986, 16
        %v1121 = vadd.s32 %v993, 16
        %v1122 = vsel %vm1058, %v1090, %v776
        %v1123 = vsel %vm1059, %v1091, %v783
        %v1124 = vsel %vm1060, %v1092, %v790
        %v1125 = vsel %vm1061, %v1093, %v797
        %v1126 = vsel %vm1062, %v1094, %v804
        %v1127 = vsel %vm1063, %v1095, %v811
        %v1128 = vsel %vm1064, %v1096, %v818
        %v1129 = vsel %vm1065, %v1097, %v825
        %v1130 = vsel %vm1066, %v1098, %v832
        %v1131 = vsel %vm1067, %v1099, %v839
        %v1132 = vsel %vm1068, %v1100, %v846
        %v1133 = vsel %vm1069, %v1101, %v853
        %v1134 = vsel %vm1070, %v1102, %v860
        %v1135 = vsel %vm1071, %v1103, %v867
        %v1136 = vsel %vm1072, %v1104, %v874
        %v1137 = vsel %vm1073, %v1105, %v881
        %v1138 = vsel %vm1074, %v1106, %v888
        %v1139 = vsel %vm1075, %v1107, %v895
        %v1140 = vsel %vm1076, %v1108, %v902
        %v1141 = vsel %vm1077, %v1109, %v909
        %v1142 = vsel %vm1078, %v1110, %v916
        %v1143 = vsel %vm1079, %v1111, %v923
        %v1144 = vsel %vm1080, %v1112, %v930
        %v1145 = vsel %vm1081, %v1113, %v937
        %v1146 = vsel %vm1082, %v1114, %v944
        %v1147 = vsel %vm1083, %v1115, %v951
        %v1148 = vsel %vm1084, %v1116, %v958
        %v1149 = vsel %vm1085, %v1117, %v965
        %v1150 = vsel %vm1086, %v1118, %v972
        %v1151 = vsel %vm1087, %v1119, %v979
        %v1152 = vsel %vm1088, %v1120, %v986
        %v1153 = vsel %vm1089, %v1121, %v993
        %vm1154 = vcmp.eq.s32.totalorder %v1122, 0
        %vm1155 = vcmp.eq.s32.totalorder %v1123, 0
        %vm1156 = vcmp.eq.s32.totalorder %v1124, 0
        %vm1157 = vcmp.eq.s32.totalorder %v1125, 0
        %vm1158 = vcmp.eq.s32.totalorder %v1126, 0
        %vm1159 = vcmp.eq.s32.totalorder %v1127, 0
        %vm1160 = vcmp.eq.s32.totalorder %v1128, 0
        %vm1161 = vcmp.eq.s32.totalorder %v1129, 0
        %vm1162 = vcmp.eq.s32.totalorder %v1130, 0
        %vm1163 = vcmp.eq.s32.totalorder %v1131, 0
        %vm1164 = vcmp.eq.s32.totalorder %v1132, 0
        %vm1165 = vcmp.eq.s32.totalorder %v1133, 0
        %vm1166 = vcmp.eq.s32.totalorder %v1134, 0
        %vm1167 = vcmp.eq.s32.totalorder %v1135, 0
        %vm1168 = vcmp.eq.s32.totalorder %v1136, 0
        %vm1169 = vcmp.eq.s32.totalorder %v1137, 0
        %vm1170 = vcmp.eq.s32.totalorder %v1138, 0
        %vm1171 = vcmp.eq.s32.totalorder %v1139, 0
        %vm1172 = vcmp.eq.s32.totalorder %v1140, 0
        %vm1173 = vcmp.eq.s32.totalorder %v1141, 0
        %vm1174 = vcmp.eq.s32.totalorder %v1142, 0
        %vm1175 = vcmp.eq.s32.totalorder %v1143, 0
        %vm1176 = vcmp.eq.s32.totalorder %v1144, 0
        %vm1177 = vcmp.eq.s32.totalorder %v1145, 0
        %vm1178 = vcmp.eq.s32.totalorder %v1146, 0
        %vm1179 = vcmp.eq.s32.totalorder %v1147, 0
        %vm1180 = vcmp.eq.s32.totalorder %v1148, 0
        %vm1181 = vcmp.eq.s32.totalorder %v1149, 0
        %vm1182 = vcmp.eq.s32.totalorder %v1150, 0
        %vm1183 = vcmp.eq.s32.totalorder %v1151, 0
        %vm1184 = vcmp.eq.s32.totalorder %v1152, 0
        %vm1185 = vcmp.eq.s32.totalorder %v1153, 0
        %vm1186 = vcmp.eq.s32.totalorder %v1122, 15
        %vm1187 = vcmp.eq.s32.totalorder %v1123, 15
        %vm1188 = vcmp.eq.s32.totalorder %v1124, 15
        %vm1189 = vcmp.eq.s32.totalorder %v1125, 15
        %vm1190 = vcmp.eq.s32.totalorder %v1126, 15
        %vm1191 = vcmp.eq.s32.totalorder %v1127, 15
        %vm1192 = vcmp.eq.s32.totalorder %v1128, 15
        %vm1193 = vcmp.eq.s32.totalorder %v1129, 15
        %vm1194 = vcmp.eq.s32.totalorder %v1130, 15
        %vm1195 = vcmp.eq.s32.totalorder %v1131, 15
        %vm1196 = vcmp.eq.s32.totalorder %v1132, 15
        %vm1197 = vcmp.eq.s32.totalorder %v1133, 15
        %vm1198 = vcmp.eq.s32.totalorder %v1134, 15
        %vm1199 = vcmp.eq.s32.totalorder %v1135, 15
        %vm1200 = vcmp.eq.s32.totalorder %v1136, 15
        %vm1201 = vcmp.eq.s32.totalorder %v1137, 15
        %vm1202 = vcmp.eq.s32.totalorder %v1138, 15
        %vm1203 = vcmp.eq.s32.totalorder %v1139, 15
        %vm1204 = vcmp.eq.s32.totalorder %v1140, 15
        %vm1205 = vcmp.eq.s32.totalorder %v1141, 15
        %vm1206 = vcmp.eq.s32.totalorder %v1142, 15
        %vm1207 = vcmp.eq.s32.totalorder %v1143, 15
        %vm1208 = vcmp.eq.s32.totalorder %v1144, 15
        %vm1209 = vcmp.eq.s32.totalorder %v1145, 15
        %vm1210 = vcmp.eq.s32.totalorder %v1146, 15
        %vm1211 = vcmp.eq.s32.totalorder %v1147, 15
        %vm1212 = vcmp.eq.s32.totalorder %v1148, 15
        %vm1213 = vcmp.eq.s32.totalorder %v1149, 15
        %vm1214 = vcmp.eq.s32.totalorder %v1150, 15
        %vm1215 = vcmp.eq.s32.totalorder %v1151, 15
        %vm1216 = vcmp.eq.s32.totalorder %v1152, 15
        %vm1217 = vcmp.eq.s32.totalorder %v1153, 15
        %vm1249 = vcmask 1040384
        %v1250 = vrot.slane 0.0, 7
        %v1251 = vsel %vm1249, %v1250, %v1250
        %v1252 = vrot.slane %v434, 7
        %v1253 = vsel %vm1249, %v1250, %v1252
        %v1254 = vrot.slane %v439, 7
        %v1255 = vsel %vm1249, %v1252, %v1254
        %v1256 = vrot.slane %v444, 7
        %v1257 = vsel %vm1249, %v1254, %v1256
        %v1258 = vrot.slane %v449, 7
        %v1259 = vsel %vm1249, %v1256, %v1258
        %v1260 = vrot.slane %v454, 7
        %v1261 = vsel %vm1249, %v1258, %v1260
        %v1262 = vrot.slane %v459, 7
        %v1263 = vsel %vm1249, %v1260, %v1262
        %v1264 = vrot.slane %v464, 7
        %v1265 = vsel %vm1249, %v1262, %v1264
        %v1266 = vrot.slane %v469, 7
        %v1267 = vsel %vm1249, %v1264, %v1266
        %v1268 = vrot.slane %v474, 7
        %v1269 = vsel %vm1249, %v1266, %v1268
        %v1270 = vrot.slane %v479, 7
        %v1271 = vsel %vm1249, %v1268, %v1270
        %v1272 = vrot.slane %v484, 7
        %v1273 = vsel %vm1249, %v1270, %v1272
        %v1274 = vrot.slane %v489, 7
        %v1275 = vsel %vm1249, %v1272, %v1274
        %v1276 = vrot.slane %v494, 7
        %v1277 = vsel %vm1249, %v1274, %v1276
        %v1278 = vrot.slane %v499, 7
        %v1279 = vsel %vm1249, %v1276, %v1278
        %v1280 = vrot.slane %v504, 7
        %v1281 = vsel %vm1249, %v1278, %v1280
        %v1282 = vrot.slane %v509, 7
        %v1283 = vsel %vm1249, %v1280, %v1282
        %v1284 = vrot.slane %v514, 7
        %v1285 = vsel %vm1249, %v1282, %v1284
        %v1286 = vrot.slane %v519, 7
        %v1287 = vsel %vm1249, %v1284, %v1286
        %v1288 = vrot.slane %v524, 7
        %v1289 = vsel %vm1249, %v1286, %v1288
        %v1290 = vrot.slane %v529, 7
        %v1291 = vsel %vm1249, %v1288, %v1290
        %v1292 = vrot.slane %v534, 7
        %v1293 = vsel %vm1249, %v1290, %v1292
        %v1294 = vrot.slane %v539, 7
        %v1295 = vsel %vm1249, %v1292, %v1294
        %v1296 = vrot.slane %v544, 7
        %v1297 = vsel %vm1249, %v1294, %v1296
        %v1298 = vrot.slane %v549, 7
        %v1299 = vsel %vm1249, %v1296, %v1298
        %v1300 = vrot.slane %v554, 7
        %v1301 = vsel %vm1249, %v1298, %v1300
        %v1302 = vrot.slane %v559, 7
        %v1303 = vsel %vm1249, %v1300, %v1302
        %v1304 = vrot.slane %v564, 7
        %v1305 = vsel %vm1249, %v1302, %v1304
        %v1306 = vrot.slane %v569, 7
        %v1307 = vsel %vm1249, %v1304, %v1306
        %v1308 = vrot.slane %v574, 7
        %v1309 = vsel %vm1249, %v1306, %v1308
        %v1310 = vrot.slane %v579, 7
        %v1311 = vsel %vm1249, %v1308, %v1310
        %v1344 = vsel %vm1249, 0.0, %v1250
        %v1345 = vsel %vm1154, 1, 0
        %v1346 = vsel %vm1155, 1, 0
        %v1347 = vsel %vm1156, 1, 0
        %v1348 = vsel %vm1157, 1, 0
        %v1349 = vsel %vm1158, 1, 0
        %v1350 = vsel %vm1159, 1, 0
        %v1351 = vsel %vm1160, 1, 0
        %v1352 = vsel %vm1161, 1, 0
        %v1353 = vsel %vm1162, 1, 0
        %v1354 = vsel %vm1163, 1, 0
        %v1355 = vsel %vm1164, 1, 0
        %v1356 = vsel %vm1165, 1, 0
        %v1357 = vsel %vm1166, 1, 0
        %v1358 = vsel %vm1167, 1, 0
        %v1359 = vsel %vm1168, 1, 0
        %v1360 = vsel %vm1169, 1, 0
        %v1361 = vsel %vm1170, 1, 0
        %v1362 = vsel %vm1171, 1, 0
        %v1363 = vsel %vm1172, 1, 0
        %v1364 = vsel %vm1173, 1, 0
        %v1365 = vsel %vm1174, 1, 0
        %v1366 = vsel %vm1175, 1, 0
        %v1367 = vsel %vm1176, 1, 0
        %v1368 = vsel %vm1177, 1, 0
        %v1369 = vsel %vm1178, 1, 0
        %v1370 = vsel %vm1179, 1, 0
        %v1371 = vsel %vm1180, 1, 0
        %v1372 = vsel %vm1181, 1, 0
        %v1373 = vsel %vm1182, 1, 0
        %v1374 = vsel %vm1183, 1, 0
        %v1375 = vsel %vm1184, 1, 0
        %v1376 = vsel %vm1185, 1, 0
        %vm1377 = vcmp.eq.s32.totalorder %v1345, 1
        %vm1378 = vcmp.eq.s32.totalorder %v1346, 1
        %vm1379 = vcmp.eq.s32.totalorder %v1347, 1
        %vm1380 = vcmp.eq.s32.totalorder %v1348, 1
        %vm1381 = vcmp.eq.s32.totalorder %v1349, 1
        %vm1382 = vcmp.eq.s32.totalorder %v1350, 1
        %vm1383 = vcmp.eq.s32.totalorder %v1351, 1
        %vm1384 = vcmp.eq.s32.totalorder %v1352, 1
        %vm1385 = vcmp.eq.s32.totalorder %v1353, 1
        %vm1386 = vcmp.eq.s32.totalorder %v1354, 1
        %vm1387 = vcmp.eq.s32.totalorder %v1355, 1
        %vm1388 = vcmp.eq.s32.totalorder %v1356, 1
        %vm1389 = vcmp.eq.s32.totalorder %v1357, 1
        %vm1390 = vcmp.eq.s32.totalorder %v1358, 1
        %vm1391 = vcmp.eq.s32.totalorder %v1359, 1
        %vm1392 = vcmp.eq.s32.totalorder %v1360, 1
        %vm1393 = vcmp.eq.s32.totalorder %v1361, 1
        %vm1394 = vcmp.eq.s32.totalorder %v1362, 1
        %vm1395 = vcmp.eq.s32.totalorder %v1363, 1
        %vm1396 = vcmp.eq.s32.totalorder %v1364, 1
        %vm1397 = vcmp.eq.s32.totalorder %v1365, 1
        %vm1398 = vcmp.eq.s32.totalorder %v1366, 1
        %vm1399 = vcmp.eq.s32.totalorder %v1367, 1
        %vm1400 = vcmp.eq.s32.totalorder %v1368, 1
        %vm1401 = vcmp.eq.s32.totalorder %v1369, 1
        %vm1402 = vcmp.eq.s32.totalorder %v1370, 1
        %vm1403 = vcmp.eq.s32.totalorder %v1371, 1
        %vm1404 = vcmp.eq.s32.totalorder %v1372, 1
        %vm1405 = vcmp.eq.s32.totalorder %v1373, 1
        %vm1406 = vcmp.eq.s32.totalorder %v1374, 1
        %vm1407 = vcmp.eq.s32.totalorder %v1375, 1
        %vm1408 = vcmp.eq.s32.totalorder %v1376, 1
        %v1409 = vsel %vm1377, 0.0, %v1344
        %v1410 = vsel %vm1378, 0.0, %v1251
        %v1411 = vsel %vm1379, 0.0, %v1253
        %v1412 = vsel %vm1380, 0.0, %v1255
        %v1413 = vsel %vm1381, 0.0, %v1257
        %v1414 = vsel %vm1382, 0.0, %v1259
        %v1415 = vsel %vm1383, 0.0, %v1261
        %v1416 = vsel %vm1384, 0.0, %v1263
        %v1417 = vsel %vm1385, 0.0, %v1265
        %v1418 = vsel %vm1386, 0.0, %v1267
        %v1419 = vsel %vm1387, 0.0, %v1269
        %v1420 = vsel %vm1388, 0.0, %v1271
        %v1421 = vsel %vm1389, 0.0, %v1273
        %v1422 = vsel %vm1390, 0.0, %v1275
        %v1423 = vsel %vm1391, 0.0, %v1277
        %v1424 = vsel %vm1392, 0.0, %v1279
        %v1425 = vsel %vm1393, 0.0, %v1281
        %v1426 = vsel %vm1394, 0.0, %v1283
        %v1427 = vsel %vm1395, 0.0, %v1285
        %v1428 = vsel %vm1396, 0.0, %v1287
        %v1429 = vsel %vm1397, 0.0, %v1289
        %v1430 = vsel %vm1398, 0.0, %v1291
        %v1431 = vsel %vm1399, 0.0, %v1293
        %v1432 = vsel %vm1400, 0.0, %v1295
        %v1433 = vsel %vm1401, 0.0, %v1297
        %v1434 = vsel %vm1402, 0.0, %v1299
        %v1435 = vsel %vm1403, 0.0, %v1301
        %v1436 = vsel %vm1404, 0.0, %v1303
        %v1437 = vsel %vm1405, 0.0, %v1305
        %v1438 = vsel %vm1406, 0.0, %v1307
        %v1439 = vsel %vm1407, 0.0, %v1309
        %v1440 = vsel %vm1408, 0.0, %v1311
        %vm1441 = vcmask 1046528
        %v1442 = vrot.slane 0.0, 1
        %v1443 = vsel %vm1441, %v1442, %v1442
        %v1444 = vrot.slane %v434, 1
        %v1445 = vsel %vm1441, %v1442, %v1444
        %v1446 = vrot.slane %v439, 1
        %v1447 = vsel %vm1441, %v1444, %v1446
        %v1448 = vrot.slane %v444, 1
        %v1449 = vsel %vm1441, %v1446, %v1448
        %v1450 = vrot.slane %v449, 1
        %v1451 = vsel %vm1441, %v1448, %v1450
        %v1452 = vrot.slane %v454, 1
        %v1453 = vsel %vm1441, %v1450, %v1452
        %v1454 = vrot.slane %v459, 1
        %v1455 = vsel %vm1441, %v1452, %v1454
        %v1456 = vrot.slane %v464, 1
        %v1457 = vsel %vm1441, %v1454, %v1456
        %v1458 = vrot.slane %v469, 1
        %v1459 = vsel %vm1441, %v1456, %v1458
        %v1460 = vrot.slane %v474, 1
        %v1461 = vsel %vm1441, %v1458, %v1460
        %v1462 = vrot.slane %v479, 1
        %v1463 = vsel %vm1441, %v1460, %v1462
        %v1464 = vrot.slane %v484, 1
        %v1465 = vsel %vm1441, %v1462, %v1464
        %v1466 = vrot.slane %v489, 1
        %v1467 = vsel %vm1441, %v1464, %v1466
        %v1468 = vrot.slane %v494, 1
        %v1469 = vsel %vm1441, %v1466, %v1468
        %v1470 = vrot.slane %v499, 1
        %v1471 = vsel %vm1441, %v1468, %v1470
        %v1472 = vrot.slane %v504, 1
        %v1473 = vsel %vm1441, %v1470, %v1472
        %v1474 = vrot.slane %v509, 1
        %v1475 = vsel %vm1441, %v1472, %v1474
        %v1476 = vrot.slane %v514, 1
        %v1477 = vsel %vm1441, %v1474, %v1476
        %v1478 = vrot.slane %v519, 1
        %v1479 = vsel %vm1441, %v1476, %v1478
        %v1480 = vrot.slane %v524, 1
        %v1481 = vsel %vm1441, %v1478, %v1480
        %v1482 = vrot.slane %v529, 1
        %v1483 = vsel %vm1441, %v1480, %v1482
        %v1484 = vrot.slane %v534, 1
        %v1485 = vsel %vm1441, %v1482, %v1484
        %v1486 = vrot.slane %v539, 1
        %v1487 = vsel %vm1441, %v1484, %v1486
        %v1488 = vrot.slane %v544, 1
        %v1489 = vsel %vm1441, %v1486, %v1488
        %v1490 = vrot.slane %v549, 1
        %v1491 = vsel %vm1441, %v1488, %v1490
        %v1492 = vrot.slane %v554, 1
        %v1493 = vsel %vm1441, %v1490, %v1492
        %v1494 = vrot.slane %v559, 1
        %v1495 = vsel %vm1441, %v1492, %v1494
        %v1496 = vrot.slane %v564, 1
        %v1497 = vsel %vm1441, %v1494, %v1496
        %v1498 = vrot.slane %v569, 1
        %v1499 = vsel %vm1441, %v1496, %v1498
        %v1500 = vrot.slane %v574, 1
        %v1501 = vsel %vm1441, %v1498, %v1500
        %v1502 = vrot.slane %v579, 1
        %v1503 = vsel %vm1441, %v1500, %v1502
        %v1536 = vsel %vm1441, %v1502, 0.0
        %v1537 = vsel %vm1186, 1, 0
        %v1538 = vsel %vm1187, 1, 0
        %v1539 = vsel %vm1188, 1, 0
        %v1540 = vsel %vm1189, 1, 0
        %v1541 = vsel %vm1190, 1, 0
        %v1542 = vsel %vm1191, 1, 0
        %v1543 = vsel %vm1192, 1, 0
        %v1544 = vsel %vm1193, 1, 0
        %v1545 = vsel %vm1194, 1, 0
        %v1546 = vsel %vm1195, 1, 0
        %v1547 = vsel %vm1196, 1, 0
        %v1548 = vsel %vm1197, 1, 0
        %v1549 = vsel %vm1198, 1, 0
        %v1550 = vsel %vm1199, 1, 0
        %v1551 = vsel %vm1200, 1, 0
        %v1552 = vsel %vm1201, 1, 0
        %v1553 = vsel %vm1202, 1, 0
        %v1554 = vsel %vm1203, 1, 0
        %v1555 = vsel %vm1204, 1, 0
        %v1556 = vsel %vm1205, 1, 0
        %v1557 = vsel %vm1206, 1, 0
        %v1558 = vsel %vm1207, 1, 0
        %v1559 = vsel %vm1208, 1, 0
        %v1560 = vsel %vm1209, 1, 0
        %v1561 = vsel %vm1210, 1, 0
        %v1562 = vsel %vm1211, 1, 0
        %v1563 = vsel %vm1212, 1, 0
        %v1564 = vsel %vm1213, 1, 0
        %v1565 = vsel %vm1214, 1, 0
        %v1566 = vsel %vm1215, 1, 0
        %v1567 = vsel %vm1216, 1, 0
        %v1568 = vsel %vm1217, 1, 0
        %vm1569 = vcmp.eq.s32.totalorder %v1537, 1
        %vm1570 = vcmp.eq.s32.totalorder %v1538, 1
        %vm1571 = vcmp.eq.s32.totalorder %v1539, 1
        %vm1572 = vcmp.eq.s32.totalorder %v1540, 1
        %vm1573 = vcmp.eq.s32.totalorder %v1541, 1
        %vm1574 = vcmp.eq.s32.totalorder %v1542, 1
        %vm1575 = vcmp.eq.s32.totalorder %v1543, 1
        %vm1576 = vcmp.eq.s32.totalorder %v1544, 1
        %vm1577 = vcmp.eq.s32.totalorder %v1545, 1
        %vm1578 = vcmp.eq.s32.totalorder %v1546, 1
        %vm1579 = vcmp.eq.s32.totalorder %v1547, 1
        %vm1580 = vcmp.eq.s32.totalorder %v1548, 1
        %vm1581 = vcmp.eq.s32.totalorder %v1549, 1
        %vm1582 = vcmp.eq.s32.totalorder %v1550, 1
        %vm1583 = vcmp.eq.s32.totalorder %v1551, 1
        %vm1584 = vcmp.eq.s32.totalorder %v1552, 1
        %vm1585 = vcmp.eq.s32.totalorder %v1553, 1
        %vm1586 = vcmp.eq.s32.totalorder %v1554, 1
        %vm1587 = vcmp.eq.s32.totalorder %v1555, 1
        %vm1588 = vcmp.eq.s32.totalorder %v1556, 1
        %vm1589 = vcmp.eq.s32.totalorder %v1557, 1
        %vm1590 = vcmp.eq.s32.totalorder %v1558, 1
        %vm1591 = vcmp.eq.s32.totalorder %v1559, 1
        %vm1592 = vcmp.eq.s32.totalorder %v1560, 1
        %vm1593 = vcmp.eq.s32.totalorder %v1561, 1
        %vm1594 = vcmp.eq.s32.totalorder %v1562, 1
        %vm1595 = vcmp.eq.s32.totalorder %v1563, 1
        %vm1596 = vcmp.eq.s32.totalorder %v1564, 1
        %vm1597 = vcmp.eq.s32.totalorder %v1565, 1
        %vm1598 = vcmp.eq.s32.totalorder %v1566, 1
        %vm1599 = vcmp.eq.s32.totalorder %v1567, 1
        %vm1600 = vcmp.eq.s32.totalorder %v1568, 1
        %v1601 = vsel %vm1569, 0.0, %v1443
        %v1602 = vsel %vm1570, 0.0, %v1445
        %v1603 = vsel %vm1571, 0.0, %v1447
        %v1604 = vsel %vm1572, 0.0, %v1449
        %v1605 = vsel %vm1573, 0.0, %v1451
        %v1606 = vsel %vm1574, 0.0, %v1453
        %v1607 = vsel %vm1575, 0.0, %v1455
        %v1608 = vsel %vm1576, 0.0, %v1457
        %v1609 = vsel %vm1577, 0.0, %v1459
        %v1610 = vsel %vm1578, 0.0, %v1461
        %v1611 = vsel %vm1579, 0.0, %v1463
        %v1612 = vsel %vm1580, 0.0, %v1465
        %v1613 = vsel %vm1581, 0.0, %v1467
        %v1614 = vsel %vm1582, 0.0, %v1469
        %v1615 = vsel %vm1583, 0.0, %v1471
        %v1616 = vsel %vm1584, 0.0, %v1473
        %v1617 = vsel %vm1585, 0.0, %v1475
        %v1618 = vsel %vm1586, 0.0, %v1477
        %v1619 = vsel %vm1587, 0.0, %v1479
        %v1620 = vsel %vm1588, 0.0, %v1481
        %v1621 = vsel %vm1589, 0.0, %v1483
        %v1622 = vsel %vm1590, 0.0, %v1485
        %v1623 = vsel %vm1591, 0.0, %v1487
        %v1624 = vsel %vm1592, 0.0, %v1489
        %v1625 = vsel %vm1593, 0.0, %v1491
        %v1626 = vsel %vm1594, 0.0, %v1493
        %v1627 = vsel %vm1595, 0.0, %v1495
        %v1628 = vsel %vm1596, 0.0, %v1497
        %v1629 = vsel %vm1597, 0.0, %v1499
        %v1630 = vsel %vm1598, 0.0, %v1501
        %v1631 = vsel %vm1599, 0.0, %v1503
        %v1632 = vsel %vm1600, 0.0, %v1536
        %v1635 = vrot.slane %v584, 7
        %v1636 = vsel %vm1249, %v1310, %v1635
        %v1637 = vrot.slane %v589, 7
        %v1638 = vsel %vm1249, %v1635, %v1637
        %v1642 = vsel %vm1249, 0.0, %v1252
        %v1643 = vsel %vm1377, 0.0, %v1642
        %v1644 = vsel %vm1378, 0.0, %v1255
        %v1645 = vsel %vm1379, 0.0, %v1257
        %v1646 = vsel %vm1380, 0.0, %v1259
        %v1647 = vsel %vm1381, 0.0, %v1261
        %v1648 = vsel %vm1382, 0.0, %v1263
        %v1649 = vsel %vm1383, 0.0, %v1265
        %v1650 = vsel %vm1384, 0.0, %v1267
        %v1651 = vsel %vm1385, 0.0, %v1269
        %v1652 = vsel %vm1386, 0.0, %v1271
        %v1653 = vsel %vm1387, 0.0, %v1273
        %v1654 = vsel %vm1388, 0.0, %v1275
        %v1655 = vsel %vm1389, 0.0, %v1277
        %v1656 = vsel %vm1390, 0.0, %v1279
        %v1657 = vsel %vm1391, 0.0, %v1281
        %v1658 = vsel %vm1392, 0.0, %v1283
        %v1659 = vsel %vm1393, 0.0, %v1285
        %v1660 = vsel %vm1394, 0.0, %v1287
        %v1661 = vsel %vm1395, 0.0, %v1289
        %v1662 = vsel %vm1396, 0.0, %v1291
        %v1663 = vsel %vm1397, 0.0, %v1293
        %v1664 = vsel %vm1398, 0.0, %v1295
        %v1665 = vsel %vm1399, 0.0, %v1297
        %v1666 = vsel %vm1400, 0.0, %v1299
        %v1667 = vsel %vm1401, 0.0, %v1301
        %v1668 = vsel %vm1402, 0.0, %v1303
        %v1669 = vsel %vm1403, 0.0, %v1305
        %v1670 = vsel %vm1404, 0.0, %v1307
        %v1671 = vsel %vm1405, 0.0, %v1309
        %v1672 = vsel %vm1406, 0.0, %v1311
        %v1673 = vsel %vm1407, 0.0, %v1636
        %v1674 = vsel %vm1408, 0.0, %v1638
        %v1675 = vrot.slane %v584, 1
        %v1676 = vsel %vm1441, %v1502, %v1675
        %v1677 = vrot.slane %v589, 1
        %v1678 = vsel %vm1441, %v1675, %v1677
        %v1682 = vsel %vm1441, %v1677, 0.0
        %v1683 = vsel %vm1569, 0.0, %v1447
        %v1684 = vsel %vm1570, 0.0, %v1449
        %v1685 = vsel %vm1571, 0.0, %v1451
        %v1686 = vsel %vm1572, 0.0, %v1453
        %v1687 = vsel %vm1573, 0.0, %v1455
        %v1688 = vsel %vm1574, 0.0, %v1457
        %v1689 = vsel %vm1575, 0.0, %v1459
        %v1690 = vsel %vm1576, 0.0, %v1461
        %v1691 = vsel %vm1577, 0.0, %v1463
        %v1692 = vsel %vm1578, 0.0, %v1465
        %v1693 = vsel %vm1579, 0.0, %v1467
        %v1694 = vsel %vm1580, 0.0, %v1469
        %v1695 = vsel %vm1581, 0.0, %v1471
        %v1696 = vsel %vm1582, 0.0, %v1473
        %v1697 = vsel %vm1583, 0.0, %v1475
        %v1698 = vsel %vm1584, 0.0, %v1477
        %v1699 = vsel %vm1585, 0.0, %v1479
        %v1700 = vsel %vm1586, 0.0, %v1481
        %v1701 = vsel %vm1587, 0.0, %v1483
        %v1702 = vsel %vm1588, 0.0, %v1485
        %v1703 = vsel %vm1589, 0.0, %v1487
        %v1704 = vsel %vm1590, 0.0, %v1489
        %v1705 = vsel %vm1591, 0.0, %v1491
        %v1706 = vsel %vm1592, 0.0, %v1493
        %v1707 = vsel %vm1593, 0.0, %v1495
        %v1708 = vsel %vm1594, 0.0, %v1497
        %v1709 = vsel %vm1595, 0.0, %v1499
        %v1710 = vsel %vm1596, 0.0, %v1501
        %v1711 = vsel %vm1597, 0.0, %v1503
        %v1712 = vsel %vm1598, 0.0, %v1676
        %v1713 = vsel %vm1599, 0.0, %v1678
        %v1714 = vsel %vm1600, 0.0, %v1682
        %v1715 = vsel %vm1249, %v1637, %v1250
        %v1718 = vsel %vm1249, 0.0, %v1256
        %v1719 = vsel %vm1377, 0.0, %v1718
        %v1720 = vsel %vm1378, 0.0, %v1259
        %v1721 = vsel %vm1379, 0.0, %v1261
        %v1722 = vsel %vm1380, 0.0, %v1263
        %v1723 = vsel %vm1381, 0.0, %v1265
        %v1724 = vsel %vm1382, 0.0, %v1267
        %v1725 = vsel %vm1383, 0.0, %v1269
        %v1726 = vsel %vm1384, 0.0, %v1271
        %v1727 = vsel %vm1385, 0.0, %v1273
        %v1728 = vsel %vm1386, 0.0, %v1275
        %v1729 = vsel %vm1387, 0.0, %v1277
        %v1730 = vsel %vm1388, 0.0, %v1279
        %v1731 = vsel %vm1389, 0.0, %v1281
        %v1732 = vsel %vm1390, 0.0, %v1283
        %v1733 = vsel %vm1391, 0.0, %v1285
        %v1734 = vsel %vm1392, 0.0, %v1287
        %v1735 = vsel %vm1393, 0.0, %v1289
        %v1736 = vsel %vm1394, 0.0, %v1291
        %v1737 = vsel %vm1395, 0.0, %v1293
        %v1738 = vsel %vm1396, 0.0, %v1295
        %v1739 = vsel %vm1397, 0.0, %v1297
        %v1740 = vsel %vm1398, 0.0, %v1299
        %v1741 = vsel %vm1399, 0.0, %v1301
        %v1742 = vsel %vm1400, 0.0, %v1303
        %v1743 = vsel %vm1401, 0.0, %v1305
        %v1744 = vsel %vm1402, 0.0, %v1307
        %v1745 = vsel %vm1403, 0.0, %v1309
        %v1746 = vsel %vm1404, 0.0, %v1311
        %v1747 = vsel %vm1405, 0.0, %v1636
        %v1748 = vsel %vm1406, 0.0, %v1638
        %v1749 = vsel %vm1407, 0.0, %v1715
        %v1750 = vsel %vm1408, 0.0, %v1251
        %v1751 = vsel %vm1441, %v1677, %v1442
        %v1754 = vsel %vm1441, %v1442, 0.0
        %v1755 = vsel %vm1569, 0.0, %v1451
        %v1756 = vsel %vm1570, 0.0, %v1453
        %v1757 = vsel %vm1571, 0.0, %v1455
        %v1758 = vsel %vm1572, 0.0, %v1457
        %v1759 = vsel %vm1573, 0.0, %v1459
        %v1760 = vsel %vm1574, 0.0, %v1461
        %v1761 = vsel %vm1575, 0.0, %v1463
        %v1762 = vsel %vm1576, 0.0, %v1465
        %v1763 = vsel %vm1577, 0.0, %v1467
        %v1764 = vsel %vm1578, 0.0, %v1469
        %v1765 = vsel %vm1579, 0.0, %v1471
        %v1766 = vsel %vm1580, 0.0, %v1473
        %v1767 = vsel %vm1581, 0.0, %v1475
        %v1768 = vsel %vm1582, 0.0, %v1477
        %v1769 = vsel %vm1583, 0.0, %v1479
        %v1770 = vsel %vm1584, 0.0, %v1481
        %v1771 = vsel %vm1585, 0.0, %v1483
        %v1772 = vsel %vm1586, 0.0, %v1485
        %v1773 = vsel %vm1587, 0.0, %v1487
        %v1774 = vsel %vm1588, 0.0, %v1489
        %v1775 = vsel %vm1589, 0.0, %v1491
        %v1776 = vsel %vm1590, 0.0, %v1493
        %v1777 = vsel %vm1591, 0.0, %v1495
        %v1778 = vsel %vm1592, 0.0, %v1497
        %v1779 = vsel %vm1593, 0.0, %v1499
        %v1780 = vsel %vm1594, 0.0, %v1501
        %v1781 = vsel %vm1595, 0.0, %v1503
        %v1782 = vsel %vm1596, 0.0, %v1676
        %v1783 = vsel %vm1597, 0.0, %v1678
        %v1784 = vsel %vm1598, 0.0, %v1751
        %v1785 = vsel %vm1599, 0.0, %v1443
        %v1786 = vsel %vm1600, 0.0, %v1754
        %1787 = vrot.lane.b32.xlu0 0.0, 32
        %v1788 = vpop.permute.xlu0 %1787
        %1789 = vrot.lane.b32.xlu0 %v434, 32
        %v1790 = vpop.permute.xlu0 %1789
        %1791 = vrot.lane.b32.xlu0 %v439, 32
        %v1792 = vpop.permute.xlu0 %1791
        %1793 = vrot.lane.b32.xlu0 %v444, 32
        %v1794 = vpop.permute.xlu0 %1793
        %1795 = vrot.lane.b32.xlu0 %v449, 32
        %v1796 = vpop.permute.xlu0 %1795
        %1797 = vrot.lane.b32.xlu0 %v454, 32
        %v1798 = vpop.permute.xlu0 %1797
        %1799 = vrot.lane.b32.xlu0 %v459, 32
        %v1800 = vpop.permute.xlu0 %1799
        %1801 = vrot.lane.b32.xlu0 %v464, 32
        %v1802 = vpop.permute.xlu0 %1801
        %1803 = vrot.lane.b32.xlu0 %v469, 32
        %v1804 = vpop.permute.xlu0 %1803
        %1805 = vrot.lane.b32.xlu0 %v474, 32
        %v1806 = vpop.permute.xlu0 %1805
        %1807 = vrot.lane.b32.xlu0 %v479, 32
        %v1808 = vpop.permute.xlu0 %1807
        %1809 = vrot.lane.b32.xlu0 %v484, 32
        %v1810 = vpop.permute.xlu0 %1809
        %1811 = vrot.lane.b32.xlu0 %v489, 32
        %v1812 = vpop.permute.xlu0 %1811
        %1813 = vrot.lane.b32.xlu0 %v494, 32
        %v1814 = vpop.permute.xlu0 %1813
        %1815 = vrot.lane.b32.xlu0 %v499, 32
        %v1816 = vpop.permute.xlu0 %1815
        %1817 = vrot.lane.b32.xlu0 %v504, 32
        %v1818 = vpop.permute.xlu0 %1817
        %1819 = vrot.lane.b32.xlu0 %v509, 32
        %v1820 = vpop.permute.xlu0 %1819
        %1821 = vrot.lane.b32.xlu0 %v514, 32
        %v1822 = vpop.permute.xlu0 %1821
        %1823 = vrot.lane.b32.xlu0 %v519, 32
        %v1824 = vpop.permute.xlu0 %1823
        %1825 = vrot.lane.b32.xlu0 %v524, 32
        %v1826 = vpop.permute.xlu0 %1825
        %1827 = vrot.lane.b32.xlu0 %v529, 32
        %v1828 = vpop.permute.xlu0 %1827
        %1829 = vrot.lane.b32.xlu0 %v534, 32
        %v1830 = vpop.permute.xlu0 %1829
        %1831 = vrot.lane.b32.xlu0 %v539, 32
        %v1832 = vpop.permute.xlu0 %1831
        %1833 = vrot.lane.b32.xlu0 %v544, 32
        %v1834 = vpop.permute.xlu0 %1833
        %1835 = vrot.lane.b32.xlu0 %v549, 32
        %v1836 = vpop.permute.xlu0 %1835
        %1837 = vrot.lane.b32.xlu0 %v554, 32
        %v1838 = vpop.permute.xlu0 %1837
        %1839 = vrot.lane.b32.xlu0 %v559, 32
        %v1840 = vpop.permute.xlu0 %1839
        %1841 = vrot.lane.b32.xlu0 %v564, 32
        %v1842 = vpop.permute.xlu0 %1841
        %1843 = vrot.lane.b32.xlu0 %v569, 32
        %v1844 = vpop.permute.xlu0 %1843
        %1845 = vrot.lane.b32.xlu0 %v574, 32
        %v1846 = vpop.permute.xlu0 %1845
        %1847 = vrot.lane.b32.xlu0 %v579, 32
        %v1848 = vpop.permute.xlu0 %1847
        %1912 = vrot.lane.b32.xlu0 %v1601, 64
        %v1913 = vpop.permute.xlu0 %1912
        %1914 = vrot.lane.b32.xlu0 %v1602, 64
        %v1915 = vpop.permute.xlu0 %1914
        %1916 = vrot.lane.b32.xlu0 %v1603, 64
        %v1917 = vpop.permute.xlu0 %1916
        %1918 = vrot.lane.b32.xlu0 %v1604, 64
        %v1919 = vpop.permute.xlu0 %1918
        %1920 = vrot.lane.b32.xlu0 %v1605, 64
        %v1921 = vpop.permute.xlu0 %1920
        %1922 = vrot.lane.b32.xlu0 %v1606, 64
        %v1923 = vpop.permute.xlu0 %1922
        %1924 = vrot.lane.b32.xlu0 %v1607, 64
        %v1925 = vpop.permute.xlu0 %1924
        %1926 = vrot.lane.b32.xlu0 %v1608, 64
        %v1927 = vpop.permute.xlu0 %1926
        %1928 = vrot.lane.b32.xlu0 %v1609, 64
        %v1929 = vpop.permute.xlu0 %1928
        %1930 = vrot.lane.b32.xlu0 %v1610, 64
        %v1931 = vpop.permute.xlu0 %1930
        %1932 = vrot.lane.b32.xlu0 %v1611, 64
        %v1933 = vpop.permute.xlu0 %1932
        %1934 = vrot.lane.b32.xlu0 %v1612, 64
        %v1935 = vpop.permute.xlu0 %1934
        %1936 = vrot.lane.b32.xlu0 %v1613, 64
        %v1937 = vpop.permute.xlu0 %1936
        %1938 = vrot.lane.b32.xlu0 %v1614, 64
        %v1939 = vpop.permute.xlu0 %1938
        %1940 = vrot.lane.b32.xlu0 %v1615, 64
        %v1941 = vpop.permute.xlu0 %1940
        %1942 = vrot.lane.b32.xlu0 %v1616, 64
        %v1943 = vpop.permute.xlu0 %1942
        %1944 = vrot.lane.b32.xlu0 %v1617, 64
        %v1945 = vpop.permute.xlu0 %1944
        %1946 = vrot.lane.b32.xlu0 %v1618, 64
        %v1947 = vpop.permute.xlu0 %1946
        %1948 = vrot.lane.b32.xlu0 %v1619, 64
        %v1949 = vpop.permute.xlu0 %1948
        %1950 = vrot.lane.b32.xlu0 %v1620, 64
        %v1951 = vpop.permute.xlu0 %1950
        %1952 = vrot.lane.b32.xlu0 %v1621, 64
        %v1953 = vpop.permute.xlu0 %1952
        %1954 = vrot.lane.b32.xlu0 %v1622, 64
        %v1955 = vpop.permute.xlu0 %1954
        %1956 = vrot.lane.b32.xlu0 %v1623, 64
        %v1957 = vpop.permute.xlu0 %1956
        %1958 = vrot.lane.b32.xlu0 %v1624, 64
        %v1959 = vpop.permute.xlu0 %1958
        %1960 = vrot.lane.b32.xlu0 %v1625, 64
        %v1961 = vpop.permute.xlu0 %1960
        %1962 = vrot.lane.b32.xlu0 %v1626, 64
        %v1963 = vpop.permute.xlu0 %1962
        %1964 = vrot.lane.b32.xlu0 %v1627, 64
        %v1965 = vpop.permute.xlu0 %1964
        %1966 = vrot.lane.b32.xlu0 %v1628, 64
        %v1967 = vpop.permute.xlu0 %1966
        %1968 = vrot.lane.b32.xlu0 %v1629, 64
        %v1969 = vpop.permute.xlu0 %1968
        %1970 = vrot.lane.b32.xlu0 %v1630, 64
        %v1971 = vpop.permute.xlu0 %1970
        %1972 = vrot.lane.b32.xlu0 %v1631, 64
        %v1973 = vpop.permute.xlu0 %1972
        %1974 = vrot.lane.b32.xlu0 %v1632, 64
        %v1975 = vpop.permute.xlu0 %1974
        %2040 = vrot.lane.b32.xlu0 %v1643, 96
        %v2041 = vpop.permute.xlu0 %2040
        %2042 = vrot.lane.b32.xlu0 %v1644, 96
        %v2043 = vpop.permute.xlu0 %2042
        %2044 = vrot.lane.b32.xlu0 %v1645, 96
        %v2045 = vpop.permute.xlu0 %2044
        %2046 = vrot.lane.b32.xlu0 %v1646, 96
        %v2047 = vpop.permute.xlu0 %2046
        %2048 = vrot.lane.b32.xlu0 %v1647, 96
        %v2049 = vpop.permute.xlu0 %2048
        %2050 = vrot.lane.b32.xlu0 %v1648, 96
        %v2051 = vpop.permute.xlu0 %2050
        %2052 = vrot.lane.b32.xlu0 %v1649, 96
        %v2053 = vpop.permute.xlu0 %2052
        %2054 = vrot.lane.b32.xlu0 %v1650, 96
        %v2055 = vpop.permute.xlu0 %2054
        %2056 = vrot.lane.b32.xlu0 %v1651, 96
        %v2057 = vpop.permute.xlu0 %2056
        %2058 = vrot.lane.b32.xlu0 %v1652, 96
        %v2059 = vpop.permute.xlu0 %2058
        %2060 = vrot.lane.b32.xlu0 %v1653, 96
        %v2061 = vpop.permute.xlu0 %2060
        %2062 = vrot.lane.b32.xlu0 %v1654, 96
        %v2063 = vpop.permute.xlu0 %2062
        %2064 = vrot.lane.b32.xlu0 %v1655, 96
        %v2065 = vpop.permute.xlu0 %2064
        %2066 = vrot.lane.b32.xlu0 %v1656, 96
        %v2067 = vpop.permute.xlu0 %2066
        %2068 = vrot.lane.b32.xlu0 %v1657, 96
        %v2069 = vpop.permute.xlu0 %2068
        %2070 = vrot.lane.b32.xlu0 %v1658, 96
        %v2071 = vpop.permute.xlu0 %2070
        %2072 = vrot.lane.b32.xlu0 %v1659, 96
        %v2073 = vpop.permute.xlu0 %2072
        %2074 = vrot.lane.b32.xlu0 %v1660, 96
        %v2075 = vpop.permute.xlu0 %2074
        %2076 = vrot.lane.b32.xlu0 %v1661, 96
        %v2077 = vpop.permute.xlu0 %2076
        %2078 = vrot.lane.b32.xlu0 %v1662, 96
        %v2079 = vpop.permute.xlu0 %2078
        %2080 = vrot.lane.b32.xlu0 %v1663, 96
        %v2081 = vpop.permute.xlu0 %2080
        %2082 = vrot.lane.b32.xlu0 %v1664, 96
        %v2083 = vpop.permute.xlu0 %2082
        %2084 = vrot.lane.b32.xlu0 %v1665, 96
        %v2085 = vpop.permute.xlu0 %2084
        %2086 = vrot.lane.b32.xlu0 %v1666, 96
        %v2087 = vpop.permute.xlu0 %2086
        %2088 = vrot.lane.b32.xlu0 %v1667, 96
        %v2089 = vpop.permute.xlu0 %2088
        %2090 = vrot.lane.b32.xlu0 %v1668, 96
        %v2091 = vpop.permute.xlu0 %2090
        %2092 = vrot.lane.b32.xlu0 %v1669, 96
        %v2093 = vpop.permute.xlu0 %2092
        %2094 = vrot.lane.b32.xlu0 %v1670, 96
        %v2095 = vpop.permute.xlu0 %2094
        %2096 = vrot.lane.b32.xlu0 %v1671, 96
        %v2097 = vpop.permute.xlu0 %2096
        %2098 = vrot.lane.b32.xlu0 %v1672, 96
        %v2099 = vpop.permute.xlu0 %2098
        %2100 = vrot.lane.b32.xlu0 %v1673, 96
        %v2101 = vpop.permute.xlu0 %2100
        %2102 = vrot.lane.b32.xlu0 %v1674, 96
        %v2103 = vpop.permute.xlu0 %2102
        %2168 = vrot.lane.b32.xlu0 %v1683, 32
        %v2169 = vpop.permute.xlu0 %2168
        %2170 = vrot.lane.b32.xlu0 %v1684, 32
        %v2171 = vpop.permute.xlu0 %2170
        %2172 = vrot.lane.b32.xlu0 %v1685, 32
        %v2173 = vpop.permute.xlu0 %2172
        %2174 = vrot.lane.b32.xlu0 %v1686, 32
        %v2175 = vpop.permute.xlu0 %2174
        %2176 = vrot.lane.b32.xlu0 %v1687, 32
        %v2177 = vpop.permute.xlu0 %2176
        %2178 = vrot.lane.b32.xlu0 %v1688, 32
        %v2179 = vpop.permute.xlu0 %2178
        %2180 = vrot.lane.b32.xlu0 %v1689, 32
        %v2181 = vpop.permute.xlu0 %2180
        %2182 = vrot.lane.b32.xlu0 %v1690, 32
        %v2183 = vpop.permute.xlu0 %2182
        %2184 = vrot.lane.b32.xlu0 %v1691, 32
        %v2185 = vpop.permute.xlu0 %2184
        %2186 = vrot.lane.b32.xlu0 %v1692, 32
        %v2187 = vpop.permute.xlu0 %2186
        %2188 = vrot.lane.b32.xlu0 %v1693, 32
        %v2189 = vpop.permute.xlu0 %2188
        %2190 = vrot.lane.b32.xlu0 %v1694, 32
        %v2191 = vpop.permute.xlu0 %2190
        %2192 = vrot.lane.b32.xlu0 %v1695, 32
        %v2193 = vpop.permute.xlu0 %2192
        %2194 = vrot.lane.b32.xlu0 %v1696, 32
        %v2195 = vpop.permute.xlu0 %2194
        %2196 = vrot.lane.b32.xlu0 %v1697, 32
        %v2197 = vpop.permute.xlu0 %2196
        %2198 = vrot.lane.b32.xlu0 %v1698, 32
        %v2199 = vpop.permute.xlu0 %2198
        %2200 = vrot.lane.b32.xlu0 %v1699, 32
        %v2201 = vpop.permute.xlu0 %2200
        %2202 = vrot.lane.b32.xlu0 %v1700, 32
        %v2203 = vpop.permute.xlu0 %2202
        %2204 = vrot.lane.b32.xlu0 %v1701, 32
        %v2205 = vpop.permute.xlu0 %2204
        %2206 = vrot.lane.b32.xlu0 %v1702, 32
        %v2207 = vpop.permute.xlu0 %2206
        %2208 = vrot.lane.b32.xlu0 %v1703, 32
        %v2209 = vpop.permute.xlu0 %2208
        %2210 = vrot.lane.b32.xlu0 %v1704, 32
        %v2211 = vpop.permute.xlu0 %2210
        %2212 = vrot.lane.b32.xlu0 %v1705, 32
        %v2213 = vpop.permute.xlu0 %2212
        %2214 = vrot.lane.b32.xlu0 %v1706, 32
        %v2215 = vpop.permute.xlu0 %2214
        %2216 = vrot.lane.b32.xlu0 %v1707, 32
        %v2217 = vpop.permute.xlu0 %2216
        %2218 = vrot.lane.b32.xlu0 %v1708, 32
        %v2219 = vpop.permute.xlu0 %2218
        %2220 = vrot.lane.b32.xlu0 %v1709, 32
        %v2221 = vpop.permute.xlu0 %2220
        %2222 = vrot.lane.b32.xlu0 %v1710, 32
        %v2223 = vpop.permute.xlu0 %2222
        %2224 = vrot.lane.b32.xlu0 %v1711, 32
        %v2225 = vpop.permute.xlu0 %2224
        %2226 = vrot.lane.b32.xlu0 %v1712, 32
        %v2227 = vpop.permute.xlu0 %2226
        %2228 = vrot.lane.b32.xlu0 %v1713, 32
        %v2229 = vpop.permute.xlu0 %2228
        %2230 = vrot.lane.b32.xlu0 %v1714, 32
        %v2231 = vpop.permute.xlu0 %2230
        %2296 = vrot.lane.b32.xlu0 %v1719, 64
        %v2297 = vpop.permute.xlu0 %2296
        %2298 = vrot.lane.b32.xlu0 %v1720, 64
        %v2299 = vpop.permute.xlu0 %2298
        %2300 = vrot.lane.b32.xlu0 %v1721, 64
        %v2301 = vpop.permute.xlu0 %2300
        %2302 = vrot.lane.b32.xlu0 %v1722, 64
        %v2303 = vpop.permute.xlu0 %2302
        %2304 = vrot.lane.b32.xlu0 %v1723, 64
        %v2305 = vpop.permute.xlu0 %2304
        %2306 = vrot.lane.b32.xlu0 %v1724, 64
        %v2307 = vpop.permute.xlu0 %2306
        %2308 = vrot.lane.b32.xlu0 %v1725, 64
        %v2309 = vpop.permute.xlu0 %2308
        %2310 = vrot.lane.b32.xlu0 %v1726, 64
        %v2311 = vpop.permute.xlu0 %2310
        %2312 = vrot.lane.b32.xlu0 %v1727, 64
        %v2313 = vpop.permute.xlu0 %2312
        %2314 = vrot.lane.b32.xlu0 %v1728, 64
        %v2315 = vpop.permute.xlu0 %2314
        %2316 = vrot.lane.b32.xlu0 %v1729, 64
        %v2317 = vpop.permute.xlu0 %2316
        %2318 = vrot.lane.b32.xlu0 %v1730, 64
        %v2319 = vpop.permute.xlu0 %2318
        %2320 = vrot.lane.b32.xlu0 %v1731, 64
        %v2321 = vpop.permute.xlu0 %2320
        %2322 = vrot.lane.b32.xlu0 %v1732, 64
        %v2323 = vpop.permute.xlu0 %2322
        %2324 = vrot.lane.b32.xlu0 %v1733, 64
        %v2325 = vpop.permute.xlu0 %2324
        %2326 = vrot.lane.b32.xlu0 %v1734, 64
        %v2327 = vpop.permute.xlu0 %2326
        %2328 = vrot.lane.b32.xlu0 %v1735, 64
        %v2329 = vpop.permute.xlu0 %2328
        %2330 = vrot.lane.b32.xlu0 %v1736, 64
        %v2331 = vpop.permute.xlu0 %2330
        %2332 = vrot.lane.b32.xlu0 %v1737, 64
        %v2333 = vpop.permute.xlu0 %2332
        %2334 = vrot.lane.b32.xlu0 %v1738, 64
        %v2335 = vpop.permute.xlu0 %2334
        %2336 = vrot.lane.b32.xlu0 %v1739, 64
        %v2337 = vpop.permute.xlu0 %2336
        %2338 = vrot.lane.b32.xlu0 %v1740, 64
        %v2339 = vpop.permute.xlu0 %2338
        %2340 = vrot.lane.b32.xlu0 %v1741, 64
        %v2341 = vpop.permute.xlu0 %2340
        %2342 = vrot.lane.b32.xlu0 %v1742, 64
        %v2343 = vpop.permute.xlu0 %2342
        %2344 = vrot.lane.b32.xlu0 %v1743, 64
        %v2345 = vpop.permute.xlu0 %2344
        %2346 = vrot.lane.b32.xlu0 %v1744, 64
        %v2347 = vpop.permute.xlu0 %2346
        %2348 = vrot.lane.b32.xlu0 %v1745, 64
        %v2349 = vpop.permute.xlu0 %2348
        %2350 = vrot.lane.b32.xlu0 %v1746, 64
        %v2351 = vpop.permute.xlu0 %2350
        %2352 = vrot.lane.b32.xlu0 %v1747, 64
        %v2353 = vpop.permute.xlu0 %2352
        %2354 = vrot.lane.b32.xlu0 %v1748, 64
        %v2355 = vpop.permute.xlu0 %2354
        %2356 = vrot.lane.b32.xlu0 %v1749, 64
        %v2357 = vpop.permute.xlu0 %2356
        %2358 = vrot.lane.b32.xlu0 %v1750, 64
        %v2359 = vpop.permute.xlu0 %2358
        %2392 = vrot.lane.b32.xlu0 %v444, 96
        %v2393 = vpop.permute.xlu0 %2392
        %2394 = vrot.lane.b32.xlu0 %v449, 96
        %v2395 = vpop.permute.xlu0 %2394
        %2396 = vrot.lane.b32.xlu0 %v454, 96
        %v2397 = vpop.permute.xlu0 %2396
        %2398 = vrot.lane.b32.xlu0 %v459, 96
        %v2399 = vpop.permute.xlu0 %2398
        %2400 = vrot.lane.b32.xlu0 %v464, 96
        %v2401 = vpop.permute.xlu0 %2400
        %2402 = vrot.lane.b32.xlu0 %v469, 96
        %v2403 = vpop.permute.xlu0 %2402
        %2404 = vrot.lane.b32.xlu0 %v474, 96
        %v2405 = vpop.permute.xlu0 %2404
        %2406 = vrot.lane.b32.xlu0 %v479, 96
        %v2407 = vpop.permute.xlu0 %2406
        %2408 = vrot.lane.b32.xlu0 %v484, 96
        %v2409 = vpop.permute.xlu0 %2408
        %2410 = vrot.lane.b32.xlu0 %v489, 96
        %v2411 = vpop.permute.xlu0 %2410
        %2412 = vrot.lane.b32.xlu0 %v494, 96
        %v2413 = vpop.permute.xlu0 %2412
        %2414 = vrot.lane.b32.xlu0 %v499, 96
        %v2415 = vpop.permute.xlu0 %2414
        %2416 = vrot.lane.b32.xlu0 %v504, 96
        %v2417 = vpop.permute.xlu0 %2416
        %2418 = vrot.lane.b32.xlu0 %v509, 96
        %v2419 = vpop.permute.xlu0 %2418
        %2420 = vrot.lane.b32.xlu0 %v514, 96
        %v2421 = vpop.permute.xlu0 %2420
        %2422 = vrot.lane.b32.xlu0 %v519, 96
        %v2423 = vpop.permute.xlu0 %2422
        %2424 = vrot.lane.b32.xlu0 %v524, 96
        %v2425 = vpop.permute.xlu0 %2424
        %2426 = vrot.lane.b32.xlu0 %v529, 96
        %v2427 = vpop.permute.xlu0 %2426
        %2428 = vrot.lane.b32.xlu0 %v534, 96
        %v2429 = vpop.permute.xlu0 %2428
        %2430 = vrot.lane.b32.xlu0 %v539, 96
        %v2431 = vpop.permute.xlu0 %2430
        %2432 = vrot.lane.b32.xlu0 %v544, 96
        %v2433 = vpop.permute.xlu0 %2432
        %2434 = vrot.lane.b32.xlu0 %v549, 96
        %v2435 = vpop.permute.xlu0 %2434
        %2436 = vrot.lane.b32.xlu0 %v554, 96
        %v2437 = vpop.permute.xlu0 %2436
        %2438 = vrot.lane.b32.xlu0 %v559, 96
        %v2439 = vpop.permute.xlu0 %2438
        %2440 = vrot.lane.b32.xlu0 %v564, 96
        %v2441 = vpop.permute.xlu0 %2440
        %2442 = vrot.lane.b32.xlu0 %v569, 96
        %v2443 = vpop.permute.xlu0 %2442
        %2444 = vrot.lane.b32.xlu0 %v574, 96
        %v2445 = vpop.permute.xlu0 %2444
        %2446 = vrot.lane.b32.xlu0 %v579, 96
        %v2447 = vpop.permute.xlu0 %2446
        %2448 = vrot.lane.b32.xlu0 %v584, 96
        %v2449 = vpop.permute.xlu0 %2448
        %2450 = vrot.lane.b32.xlu0 %v589, 96
        %v2451 = vpop.permute.xlu0 %2450
        %2452 = vrot.lane.b32.xlu0 0.0, 96
        %v2453 = vpop.permute.xlu0 %2452
        %v2485 = vsel %vm592, %v1409, %v1788
        %v2486 = vsel %vm592, %v1410, %v1788
        %v2487 = vsel %vm592, %v1411, %v1790
        %v2488 = vsel %vm592, %v1412, %v1792
        %v2489 = vsel %vm592, %v1413, %v1794
        %v2490 = vsel %vm592, %v1414, %v1796
        %v2491 = vsel %vm592, %v1415, %v1798
        %v2492 = vsel %vm592, %v1416, %v1800
        %v2493 = vsel %vm592, %v1417, %v1802
        %v2494 = vsel %vm592, %v1418, %v1804
        %v2495 = vsel %vm592, %v1419, %v1806
        %v2496 = vsel %vm592, %v1420, %v1808
        %v2497 = vsel %vm592, %v1421, %v1810
        %v2498 = vsel %vm592, %v1422, %v1812
        %v2499 = vsel %vm592, %v1423, %v1814
        %v2500 = vsel %vm592, %v1424, %v1816
        %v2501 = vsel %vm592, %v1425, %v1818
        %v2502 = vsel %vm592, %v1426, %v1820
        %v2503 = vsel %vm592, %v1427, %v1822
        %v2504 = vsel %vm592, %v1428, %v1824
        %v2505 = vsel %vm592, %v1429, %v1826
        %v2506 = vsel %vm592, %v1430, %v1828
        %v2507 = vsel %vm592, %v1431, %v1830
        %v2508 = vsel %vm592, %v1432, %v1832
        %v2509 = vsel %vm592, %v1433, %v1834
        %v2510 = vsel %vm592, %v1434, %v1836
        %v2511 = vsel %vm592, %v1435, %v1838
        %v2512 = vsel %vm592, %v1436, %v1840
        %v2513 = vsel %vm592, %v1437, %v1842
        %v2514 = vsel %vm592, %v1438, %v1844
        %v2515 = vsel %vm592, %v1439, %v1846
        %v2516 = vsel %vm592, %v1440, %v1848
        %vm2517 = vcmask 523264
        %v2518 = vsel %vm2517, %v2485, %v1913
        %v2519 = vsel %vm2517, %v2486, %v1915
        %v2520 = vsel %vm2517, %v2487, %v1917
        %v2521 = vsel %vm2517, %v2488, %v1919
        %v2522 = vsel %vm2517, %v2489, %v1921
        %v2523 = vsel %vm2517, %v2490, %v1923
        %v2524 = vsel %vm2517, %v2491, %v1925
        %v2525 = vsel %vm2517, %v2492, %v1927
        %v2526 = vsel %vm2517, %v2493, %v1929
        %v2527 = vsel %vm2517, %v2494, %v1931
        %v2528 = vsel %vm2517, %v2495, %v1933
        %v2529 = vsel %vm2517, %v2496, %v1935
        %v2530 = vsel %vm2517, %v2497, %v1937
        %v2531 = vsel %vm2517, %v2498, %v1939
        %v2532 = vsel %vm2517, %v2499, %v1941
        %v2533 = vsel %vm2517, %v2500, %v1943
        %v2534 = vsel %vm2517, %v2501, %v1945
        %v2535 = vsel %vm2517, %v2502, %v1947
        %v2536 = vsel %vm2517, %v2503, %v1949
        %v2537 = vsel %vm2517, %v2504, %v1951
        %v2538 = vsel %vm2517, %v2505, %v1953
        %v2539 = vsel %vm2517, %v2506, %v1955
        %v2540 = vsel %vm2517, %v2507, %v1957
        %v2541 = vsel %vm2517, %v2508, %v1959
        %v2542 = vsel %vm2517, %v2509, %v1961
        %v2543 = vsel %vm2517, %v2510, %v1963
        %v2544 = vsel %vm2517, %v2511, %v1965
        %v2545 = vsel %vm2517, %v2512, %v1967
        %v2546 = vsel %vm2517, %v2513, %v1969
        %v2547 = vsel %vm2517, %v2514, %v1971
        %v2548 = vsel %vm2517, %v2515, %v1973
        %v2549 = vsel %vm2517, %v2516, %v1975
        %vm2550 = vcmask 785408
        %v2551 = vsel %vm2550, %v2518, %v2041
        %v2552 = vsel %vm2550, %v2519, %v2043
        %v2553 = vsel %vm2550, %v2520, %v2045
        %v2554 = vsel %vm2550, %v2521, %v2047
        %v2555 = vsel %vm2550, %v2522, %v2049
        %v2556 = vsel %vm2550, %v2523, %v2051
        %v2557 = vsel %vm2550, %v2524, %v2053
        %v2558 = vsel %vm2550, %v2525, %v2055
        %v2559 = vsel %vm2550, %v2526, %v2057
        %v2560 = vsel %vm2550, %v2527, %v2059
        %v2561 = vsel %vm2550, %v2528, %v2061
        %v2562 = vsel %vm2550, %v2529, %v2063
        %v2563 = vsel %vm2550, %v2530, %v2065
        %v2564 = vsel %vm2550, %v2531, %v2067
        %v2565 = vsel %vm2550, %v2532, %v2069
        %v2566 = vsel %vm2550, %v2533, %v2071
        %v2567 = vsel %vm2550, %v2534, %v2073
        %v2568 = vsel %vm2550, %v2535, %v2075
        %v2569 = vsel %vm2550, %v2536, %v2077
        %v2570 = vsel %vm2550, %v2537, %v2079
        %v2571 = vsel %vm2550, %v2538, %v2081
        %v2572 = vsel %vm2550, %v2539, %v2083
        %v2573 = vsel %vm2550, %v2540, %v2085
        %v2574 = vsel %vm2550, %v2541, %v2087
        %v2575 = vsel %vm2550, %v2542, %v2089
        %v2576 = vsel %vm2550, %v2543, %v2091
        %v2577 = vsel %vm2550, %v2544, %v2093
        %v2578 = vsel %vm2550, %v2545, %v2095
        %v2579 = vsel %vm2550, %v2546, %v2097
        %v2580 = vsel %vm2550, %v2547, %v2099
        %v2581 = vsel %vm2550, %v2548, %v2101
        %v2582 = vsel %vm2550, %v2549, %v2103
        %v2583 = vsel %vm592, %v434, %v2169
        %v2584 = vsel %vm592, %v439, %v2171
        %v2585 = vsel %vm592, %v444, %v2173
        %v2586 = vsel %vm592, %v449, %v2175
        %v2587 = vsel %vm592, %v454, %v2177
        %v2588 = vsel %vm592, %v459, %v2179
        %v2589 = vsel %vm592, %v464, %v2181
        %v2590 = vsel %vm592, %v469, %v2183
        %v2591 = vsel %vm592, %v474, %v2185
        %v2592 = vsel %vm592, %v479, %v2187
        %v2593 = vsel %vm592, %v484, %v2189
        %v2594 = vsel %vm592, %v489, %v2191
        %v2595 = vsel %vm592, %v494, %v2193
        %v2596 = vsel %vm592, %v499, %v2195
        %v2597 = vsel %vm592, %v504, %v2197
        %v2598 = vsel %vm592, %v509, %v2199
        %v2599 = vsel %vm592, %v514, %v2201
        %v2600 = vsel %vm592, %v519, %v2203
        %v2601 = vsel %vm592, %v524, %v2205
        %v2602 = vsel %vm592, %v529, %v2207
        %v2603 = vsel %vm592, %v534, %v2209
        %v2604 = vsel %vm592, %v539, %v2211
        %v2605 = vsel %vm592, %v544, %v2213
        %v2606 = vsel %vm592, %v549, %v2215
        %v2607 = vsel %vm592, %v554, %v2217
        %v2608 = vsel %vm592, %v559, %v2219
        %v2609 = vsel %vm592, %v564, %v2221
        %v2610 = vsel %vm592, %v569, %v2223
        %v2611 = vsel %vm592, %v574, %v2225
        %v2612 = vsel %vm592, %v579, %v2227
        %v2613 = vsel %vm592, %v584, %v2229
        %v2614 = vsel %vm592, %v589, %v2231
        %v2615 = vsel %vm2517, %v2583, %v2297
        %v2616 = vsel %vm2517, %v2584, %v2299
        %v2617 = vsel %vm2517, %v2585, %v2301
        %v2618 = vsel %vm2517, %v2586, %v2303
        %v2619 = vsel %vm2517, %v2587, %v2305
        %v2620 = vsel %vm2517, %v2588, %v2307
        %v2621 = vsel %vm2517, %v2589, %v2309
        %v2622 = vsel %vm2517, %v2590, %v2311
        %v2623 = vsel %vm2517, %v2591, %v2313
        %v2624 = vsel %vm2517, %v2592, %v2315
        %v2625 = vsel %vm2517, %v2593, %v2317
        %v2626 = vsel %vm2517, %v2594, %v2319
        %v2627 = vsel %vm2517, %v2595, %v2321
        %v2628 = vsel %vm2517, %v2596, %v2323
        %v2629 = vsel %vm2517, %v2597, %v2325
        %v2630 = vsel %vm2517, %v2598, %v2327
        %v2631 = vsel %vm2517, %v2599, %v2329
        %v2632 = vsel %vm2517, %v2600, %v2331
        %v2633 = vsel %vm2517, %v2601, %v2333
        %v2634 = vsel %vm2517, %v2602, %v2335
        %v2635 = vsel %vm2517, %v2603, %v2337
        %v2636 = vsel %vm2517, %v2604, %v2339
        %v2637 = vsel %vm2517, %v2605, %v2341
        %v2638 = vsel %vm2517, %v2606, %v2343
        %v2639 = vsel %vm2517, %v2607, %v2345
        %v2640 = vsel %vm2517, %v2608, %v2347
        %v2641 = vsel %vm2517, %v2609, %v2349
        %v2642 = vsel %vm2517, %v2610, %v2351
        %v2643 = vsel %vm2517, %v2611, %v2353
        %v2644 = vsel %vm2517, %v2612, %v2355
        %v2645 = vsel %vm2517, %v2613, %v2357
        %v2646 = vsel %vm2517, %v2614, %v2359
        %v2647 = vsel %vm2550, %v2615, %v2393
        %v2648 = vsel %vm2550, %v2616, %v2395
        %v2649 = vsel %vm2550, %v2617, %v2397
        %v2650 = vsel %vm2550, %v2618, %v2399
        %v2651 = vsel %vm2550, %v2619, %v2401
        %v2652 = vsel %vm2550, %v2620, %v2403
        %v2653 = vsel %vm2550, %v2621, %v2405
        %v2654 = vsel %vm2550, %v2622, %v2407
        %v2655 = vsel %vm2550, %v2623, %v2409
        %v2656 = vsel %vm2550, %v2624, %v2411
        %v2657 = vsel %vm2550, %v2625, %v2413
        %v2658 = vsel %vm2550, %v2626, %v2415
        %v2659 = vsel %vm2550, %v2627, %v2417
        %v2660 = vsel %vm2550, %v2628, %v2419
        %v2661 = vsel %vm2550, %v2629, %v2421
        %v2662 = vsel %vm2550, %v2630, %v2423
        %v2663 = vsel %vm2550, %v2631, %v2425
        %v2664 = vsel %vm2550, %v2632, %v2427
        %v2665 = vsel %vm2550, %v2633, %v2429
        %v2666 = vsel %vm2550, %v2634, %v2431
        %v2667 = vsel %vm2550, %v2635, %v2433
        %v2668 = vsel %vm2550, %v2636, %v2435
        %v2669 = vsel %vm2550, %v2637, %v2437
        %v2670 = vsel %vm2550, %v2638, %v2439
        %v2671 = vsel %vm2550, %v2639, %v2441
        %v2672 = vsel %vm2550, %v2640, %v2443
        %v2673 = vsel %vm2550, %v2641, %v2445
        %v2674 = vsel %vm2550, %v2642, %v2447
        %v2675 = vsel %vm2550, %v2643, %v2449
        %v2676 = vsel %vm2550, %v2644, %v2451
        %v2677 = vsel %vm2550, %v2645, %v2453
        %v2678 = vsel %vm2550, %v2646, %v2453
        %v2679 = vld [vmem:[%s3] sm:$0xff]
        %v2680 = vld [vmem:[%s3 + $0x8] sm:$0xff]
        %v2681 = vld [vmem:[%s3 + $0x10] sm:$0xff]
        %v2682 = vld [vmem:[%s3 + $0x18] sm:$0xff]
        %v2683 = vld [vmem:[%s3 + $0x20] sm:$0xff]
        %v2684 = vld [vmem:[%s3 + $0x28] sm:$0xff]
        %v2685 = vld [vmem:[%s3 + $0x30] sm:$0xff]
        %v2686 = vld [vmem:[%s3 + $0x38] sm:$0xff]
        %v2687 = vld [vmem:[%s3 + $0x40] sm:$0xff]
        %v2688 = vld [vmem:[%s3 + $0x48] sm:$0xff]
        %v2689 = vld [vmem:[%s3 + $0x50] sm:$0xff]
        %v2690 = vld [vmem:[%s3 + $0x58] sm:$0xff]
        %v2691 = vld [vmem:[%s3 + $0x60] sm:$0xff]
        %v2692 = vld [vmem:[%s3 + $0x68] sm:$0xff]
        %v2693 = vld [vmem:[%s3 + $0x70] sm:$0xff]
        %v2694 = vld [vmem:[%s3 + $0x78] sm:$0xff]
        %v2695 = vld [vmem:[%s3 + $0x80] sm:$0xff]
        %v2696 = vld [vmem:[%s3 + $0x88] sm:$0xff]
        %v2697 = vld [vmem:[%s3 + $0x90] sm:$0xff]
        %v2698 = vld [vmem:[%s3 + $0x98] sm:$0xff]
        %v2699 = vld [vmem:[%s3 + $0xa0] sm:$0xff]
        %v2700 = vld [vmem:[%s3 + $0xa8] sm:$0xff]
        %v2701 = vld [vmem:[%s3 + $0xb0] sm:$0xff]
        %v2702 = vld [vmem:[%s3 + $0xb8] sm:$0xff]
        %v2703 = vld [vmem:[%s3 + $0xc0] sm:$0xff]
        %v2704 = vld [vmem:[%s3 + $0xc8] sm:$0xff]
        %v2705 = vld [vmem:[%s3 + $0xd0] sm:$0xff]
        %v2706 = vld [vmem:[%s3 + $0xd8] sm:$0xff]
        %v2707 = vld [vmem:[%s3 + $0xe0] sm:$0xff]
        %v2708 = vld [vmem:[%s3 + $0xe8] sm:$0xff]
        %v2709 = vld [vmem:[%s3 + $0xf0] sm:$0xff]
        %v2710 = vld [vmem:[%s3 + $0xf8] sm:$0xff]
        %v2711 = vld [vmem:[%s3 + $0x100] sm:$0xff]
        %v2712 = vld [vmem:[%s3 + $0x108] sm:$0xff]
        %v2713 = vld [vmem:[%s3 + $0x110] sm:$0xff]
        %v2714 = vld [vmem:[%s3 + $0x118] sm:$0xff]
        %v2716 = vsel %vm592, %v1755, 0
        %v2719 = vsel %vm592, %v1756, 0
        %v2722 = vsel %vm592, %v1757, 0
        %v2725 = vsel %vm592, %v1758, 0
        %v2728 = vsel %vm592, %v1759, 0
        %v2731 = vsel %vm592, %v1760, 0
        %v2734 = vsel %vm592, %v1761, 0
        %v2737 = vsel %vm592, %v1762, 0
        %v2740 = vsel %vm592, %v1763, 0
        %v2743 = vsel %vm592, %v1764, 0
        %v2746 = vsel %vm592, %v1765, 0
        %v2749 = vsel %vm592, %v1766, 0
        %v2752 = vsel %vm592, %v1767, 0
        %v2755 = vsel %vm592, %v1768, 0
        %v2758 = vsel %vm592, %v1769, 0
        %v2761 = vsel %vm592, %v1770, 0
        %v2764 = vsel %vm592, %v1771, 0
        %v2767 = vsel %vm592, %v1772, 0
        %v2770 = vsel %vm592, %v1773, 0
        %v2773 = vsel %vm592, %v1774, 0
        %v2776 = vsel %vm592, %v1775, 0
        %v2779 = vsel %vm592, %v1776, 0
        %v2782 = vsel %vm592, %v1777, 0
        %v2785 = vsel %vm592, %v1778, 0
        %v2788 = vsel %vm592, %v1779, 0
        %v2791 = vsel %vm592, %v1780, 0
        %v2794 = vsel %vm592, %v1781, 0
        %v2797 = vsel %vm592, %v1782, 0
        %v2800 = vsel %vm592, %v1783, 0
        %v2803 = vsel %vm592, %v1784, 0
        %v2806 = vsel %vm592, %v1785, 0
        %v2809 = vsel %vm592, %v1786, 0
        %2811 = vmatprep.subr.mxu0 0.0
        %2812 = vmatpush1.msra.mxu0 %v2679
        %2813 = vmatprep.subr.mxu0 0.0
        %2814 = vmatpush1.msra.mxu0 %v2680
        %2815 = vmatprep.subr.mxu0 0.0
        %2816 = vmatpush1.msra.mxu0 %v2681
        %2817 = vmatprep.subr.mxu0 0.0
        %2818 = vmatpush1.msra.mxu0 %v2682
        %2819 = vmatprep.subr.mxu0 0.0
        %2820 = vmatpush1.msra.mxu0 %v2683
        %2821 = vmatprep.subr.mxu0 0.0
        %2822 = vmatpush1.msra.mxu0 %v2684
        %2823 = vmatprep.subr.mxu0 0.0
        %2824 = vmatpush1.msra.mxu0 %v2685
        %2825 = vmatprep.subr.mxu0 0.0
        %2826 = vmatpush1.msra.mxu0 %v2686
        %2827 = vmatprep.subr.mxu0 0.0
        %2828 = vmatpush1.msra.mxu0 %v2687
        %2829 = vmatprep.subr.mxu0 0.0
        %2830 = vmatpush1.msra.mxu0 %v2688
        %2831 = vmatprep.subr.mxu0 0.0
        %2832 = vmatpush1.msra.mxu0 %v2689
        %2833 = vmatprep.subr.mxu0 0.0
        %2834 = vmatpush1.msra.mxu0 %v2690
        %2835 = vmatprep.subr.mxu0 0.0
        %2836 = vmatpush1.msra.mxu0 %v2691
        %2837 = vmatprep.subr.mxu0 0.0
        %2838 = vmatpush1.msra.mxu0 %v2692
        %2839 = vmatprep.subr.mxu0 0.0
        %2840 = vmatpush1.msra.mxu0 %v2693
        %2841 = vmatprep.subr.mxu0 0.0
        %2842 = vmatpush1.msra.mxu0 %v2694
        %2843 = vmatprep.subr.mxu0 0.0
        %2844 = vmatpush1.msra.mxu0 %v2695
        %2845 = vmatprep.subr.mxu0 0.0
        %2846 = vmatpush1.msra.mxu0 %v2696
        %2847 = vmatprep.subr.mxu0 0.0
        %2848 = vmatpush1.msra.mxu0 %v2697
        %2849 = vmatprep.subr.mxu0 0.0
        %2850 = vmatpush1.msra.mxu0 %v2698
        %2851 = vmatprep.subr.mxu0 0.0
        %2852 = vmatpush1.msra.mxu0 %v2699
        %2853 = vmatprep.subr.mxu0 0.0
        %2854 = vmatpush1.msra.mxu0 %v2700
        %2855 = vmatprep.subr.mxu0 0.0
        %2856 = vmatpush1.msra.mxu0 %v2701
        %2857 = vmatprep.subr.mxu0 0.0
        %2858 = vmatpush1.msra.mxu0 %v2702
        %2859 = vmatprep.subr.mxu0 0.0
        %2860 = vmatpush1.msra.mxu0 %v2703
        %2861 = vmatprep.subr.mxu0 0.0
        %2862 = vmatpush1.msra.mxu0 %v2704
        %2863 = vmatprep.subr.mxu0 0.0
        %2864 = vmatpush1.msra.mxu0 %v2705
        %2865 = vmatprep.subr.mxu0 0.0
        %2866 = vmatpush1.msra.mxu0 %v2706
        %2867 = vmatprep.subr.mxu0 0.0
        %2868 = vmatpush1.msra.mxu0 %v2707
        %2869 = vmatprep.subr.mxu0 0.0
        %2870 = vmatpush1.msra.mxu0 %v2708
        %2871 = vmatprep.subr.mxu0 0.0
        %2872 = vmatpush1.msra.mxu0 %v2709
        %2873 = vmatprep.subr.mxu0 0.0
        %2874 = vmatpush1.msra.mxu0 %v2710
        %2875 = vmatprep.mubr.f32.mxu0 %v2647
        %2876 = vmatmul.mubr.f32.gmra.mrb[0].mxu0 %v2551
        %v2877 = vpop.f32.mrb[0].mxu0
        %v2878 = vadd.f32 0.0, %v2877
        %v2879 = vpop.f32.mrb[0].mxu0
        %2880 = vmatprep.mubr.f32.mxu0 %v2648
        %2881 = vmatmul.mubr.f32.gmra.mrb[0].mxu0 %v2552
        %v2882 = vpop.f32.mrb[0].mxu0
        %v2883 = vadd.f32 0.0, %v2882
        %v2884 = vpop.f32.mrb[0].mxu0
        %2885 = vmatprep.mubr.f32.mxu0 %v2649
        %2886 = vmatmul.mubr.f32.gmra.mrb[0].mxu0 %v2553
        %v2887 = vpop.f32.mrb[0].mxu0
        %v2888 = vadd.f32 0.0, %v2887
        %v2889 = vpop.f32.mrb[0].mxu0
        %2890 = vmatprep.mubr.f32.mxu0 %v2650
        %2891 = vmatmul.mubr.f32.gmra.mrb[0].mxu0 %v2554
        %v2892 = vpop.f32.mrb[0].mxu0
        %v2893 = vadd.f32 0.0, %v2892
        %v2894 = vpop.f32.mrb[0].mxu0
        %2895 = vmatprep.mubr.f32.mxu0 %v2651
        %2896 = vmatmul.mubr.f32.gmra.mrb[0].mxu0 %v2555
        %v2897 = vpop.f32.mrb[0].mxu0
        %v2898 = vadd.f32 0.0, %v2897
        %v2899 = vpop.f32.mrb[0].mxu0
        %2900 = vmatprep.mubr.f32.mxu0 %v2652
        %2901 = vmatmul.mubr.f32.gmra.mrb[0].mxu0 %v2556
        %v2902 = vpop.f32.mrb[0].mxu0
        %v2903 = vadd.f32 0.0, %v2902
        %v2904 = vpop.f32.mrb[0].mxu0
        %2905 = vmatprep.mubr.f32.mxu0 %v2653
        %2906 = vmatmul.mubr.f32.gmra.mrb[0].mxu0 %v2557
        %v2907 = vpop.f32.mrb[0].mxu0
        %v2908 = vadd.f32 0.0, %v2907
        %v2909 = vpop.f32.mrb[0].mxu0
        %2910 = vmatprep.mubr.f32.mxu0 %v2654
        %2911 = vmatmul.mubr.f32.gmra.mrb[0].mxu0 %v2558
        %v2912 = vpop.f32.mrb[0].mxu0
        %v2913 = vadd.f32 0.0, %v2912
        %v2914 = vpop.f32.mrb[0].mxu0
        %2915 = vmatprep.mubr.f32.mxu0 %v2655
        %2916 = vmatmul.mubr.f32.gmra.mrb[0].mxu0 %v2559
        %v2917 = vpop.f32.mrb[0].mxu0
        %v2918 = vadd.f32 0.0, %v2917
        %v2919 = vpop.f32.mrb[0].mxu0
        %2920 = vmatprep.mubr.f32.mxu0 %v2656
        %2921 = vmatmul.mubr.f32.gmra.mrb[0].mxu0 %v2560
        %v2922 = vpop.f32.mrb[0].mxu0
        %v2923 = vadd.f32 0.0, %v2922
        %v2924 = vpop.f32.mrb[0].mxu0
        %2925 = vmatprep.mubr.f32.mxu0 %v2657
        %2926 = vmatmul.mubr.f32.gmra.mrb[0].mxu0 %v2561
        %v2927 = vpop.f32.mrb[0].mxu0
        %v2928 = vadd.f32 0.0, %v2927
        %v2929 = vpop.f32.mrb[0].mxu0
        %2930 = vmatprep.mubr.f32.mxu0 %v2658
        %2931 = vmatmul.mubr.f32.gmra.mrb[0].mxu0 %v2562
        %v2932 = vpop.f32.mrb[0].mxu0
        %v2933 = vadd.f32 0.0, %v2932
        %v2934 = vpop.f32.mrb[0].mxu0
        %2935 = vmatprep.mubr.f32.mxu0 %v2659
        %2936 = vmatmul.mubr.f32.gmra.mrb[0].mxu0 %v2563
        %v2937 = vpop.f32.mrb[0].mxu0
        %v2938 = vadd.f32 0.0, %v2937
        %v2939 = vpop.f32.mrb[0].mxu0
        %2940 = vmatprep.mubr.f32.mxu0 %v2660
        %2941 = vmatmul.mubr.f32.gmra.mrb[0].mxu0 %v2564
        %v2942 = vpop.f32.mrb[0].mxu0
        %v2943 = vadd.f32 0.0, %v2942
        %v2944 = vpop.f32.mrb[0].mxu0
        %2945 = vmatprep.mubr.f32.mxu0 %v2661
        %2946 = vmatmul.mubr.f32.gmra.mrb[0].mxu0 %v2565
        %v2947 = vpop.f32.mrb[0].mxu0
        %v2948 = vadd.f32 0.0, %v2947
        %v2949 = vpop.f32.mrb[0].mxu0
        %2950 = vmatprep.mubr.f32.mxu0 %v2662
        %2951 = vmatmul.mubr.f32.gmra.mrb[0].mxu0 %v2566
        %v2952 = vpop.f32.mrb[0].mxu0
        %v2953 = vadd.f32 0.0, %v2952
        %v2954 = vpop.f32.mrb[0].mxu0
        %2955 = vmatprep.mubr.f32.mxu0 %v2663
        %2956 = vmatmul.mubr.f32.gmra.mrb[0].mxu0 %v2567
        %v2957 = vpop.f32.mrb[0].mxu0
        %v2958 = vadd.f32 0.0, %v2957
        %v2959 = vpop.f32.mrb[0].mxu0
        %2960 = vmatprep.mubr.f32.mxu0 %v2664
        %2961 = vmatmul.mubr.f32.gmra.mrb[0].mxu0 %v2568
        %v2962 = vpop.f32.mrb[0].mxu0
        %v2963 = vadd.f32 0.0, %v2962
        %v2964 = vpop.f32.mrb[0].mxu0
        %2965 = vmatprep.mubr.f32.mxu0 %v2665
        %2966 = vmatmul.mubr.f32.gmra.mrb[0].mxu0 %v2569
        %v2967 = vpop.f32.mrb[0].mxu0
        %v2968 = vadd.f32 0.0, %v2967
        %v2969 = vpop.f32.mrb[0].mxu0
        %2970 = vmatprep.mubr.f32.mxu0 %v2666
        %2971 = vmatmul.mubr.f32.gmra.mrb[0].mxu0 %v2570
        %v2972 = vpop.f32.mrb[0].mxu0
        %v2973 = vadd.f32 0.0, %v2972
        %v2974 = vpop.f32.mrb[0].mxu0
        %2975 = vmatprep.mubr.f32.mxu0 %v2667
        %2976 = vmatmul.mubr.f32.gmra.mrb[0].mxu0 %v2571
        %v2977 = vpop.f32.mrb[0].mxu0
        %v2978 = vadd.f32 0.0, %v2977
        %v2979 = vpop.f32.mrb[0].mxu0
        %2980 = vmatprep.mubr.f32.mxu0 %v2668
        %2981 = vmatmul.mubr.f32.gmra.mrb[0].mxu0 %v2572
        %v2982 = vpop.f32.mrb[0].mxu0
        %v2983 = vadd.f32 0.0, %v2982
        %v2984 = vpop.f32.mrb[0].mxu0
        %2985 = vmatprep.mubr.f32.mxu0 %v2669
        %2986 = vmatmul.mubr.f32.gmra.mrb[0].mxu0 %v2573
        %v2987 = vpop.f32.mrb[0].mxu0
        %v2988 = vadd.f32 0.0, %v2987
        %v2989 = vpop.f32.mrb[0].mxu0
        %2990 = vmatprep.mubr.f32.mxu0 %v2670
        %2991 = vmatmul.mubr.f32.gmra.mrb[0].mxu0 %v2574
        %v2992 = vpop.f32.mrb[0].mxu0
        %v2993 = vadd.f32 0.0, %v2992
        %v2994 = vpop.f32.mrb[0].mxu0
        %2995 = vmatprep.mubr.f32.mxu0 %v2671
        %2996 = vmatmul.mubr.f32.gmra.mrb[0].mxu0 %v2575
        %v2997 = vpop.f32.mrb[0].mxu0
        %v2998 = vadd.f32 0.0, %v2997
        %v2999 = vpop.f32.mrb[0].mxu0
        %3000 = vmatprep.mubr.f32.mxu0 %v2672
        %3001 = vmatmul.mubr.f32.gmra.mrb[0].mxu0 %v2576
        %v3002 = vpop.f32.mrb[0].mxu0
        %v3003 = vadd.f32 0.0, %v3002
        %v3004 = vpop.f32.mrb[0].mxu0
        %3005 = vmatprep.mubr.f32.mxu0 %v2673
        %3006 = vmatmul.mubr.f32.gmra.mrb[0].mxu0 %v2577
        %v3007 = vpop.f32.mrb[0].mxu0
        %v3008 = vadd.f32 0.0, %v3007
        %v3009 = vpop.f32.mrb[0].mxu0
        %3010 = vmatprep.mubr.f32.mxu0 %v2674
        %3011 = vmatmul.mubr.f32.gmra.mrb[0].mxu0 %v2578
        %v3012 = vpop.f32.mrb[0].mxu0
        %v3013 = vadd.f32 0.0, %v3012
        %v3014 = vpop.f32.mrb[0].mxu0
        %3015 = vmatprep.mubr.f32.mxu0 %v2675
        %3016 = vmatmul.mubr.f32.gmra.mrb[0].mxu0 %v2579
        %v3017 = vpop.f32.mrb[0].mxu0
        %v3018 = vadd.f32 0.0, %v3017
        %v3019 = vpop.f32.mrb[0].mxu0
        %3020 = vmatprep.mubr.f32.mxu0 %v2676
        %3021 = vmatmul.mubr.f32.gmra.mrb[0].mxu0 %v2580
        %v3022 = vpop.f32.mrb[0].mxu0
        %v3023 = vadd.f32 0.0, %v3022
        %v3024 = vpop.f32.mrb[0].mxu0
        %3025 = vmatprep.mubr.f32.mxu0 %v2677
        %3026 = vmatmul.mubr.f32.gmra.mrb[0].mxu0 %v2581
        %v3027 = vpop.f32.mrb[0].mxu0
        %v3028 = vadd.f32 0.0, %v3027
        %v3029 = vpop.f32.mrb[0].mxu0
        %3030 = vmatprep.mubr.f32.mxu0 %v2678
        %3031 = vmatmul.mubr.f32.gmra.mrb[0].mxu0 %v2582
        %v3032 = vpop.f32.mrb[0].mxu0
        %v3033 = vadd.f32 0.0, %v3032
        %v3034 = vpop.f32.mrb[0].mxu0
        %3035 = vdwg.mxu0
        %3036 = vmatprep.subr.mxu0 0.0
        %3037 = vmatpush1.msra.mxu0 %v2711
        %3038 = vmatprep.subr.mxu0 0.0
        %3039 = vmatpush1.msra.mxu0 %v2712
        %3040 = vmatprep.subr.mxu0 0.0
        %3041 = vmatpush1.msra.mxu0 %v2713
        %3042 = vmatprep.subr.mxu0 0.0
        %3043 = vmatpush1.msra.mxu0 %v2714
        %3044 = vmatprep.subr.mxu0 0.0
        %3045 = vmatpush1.msra.mxu0 0.0
        %3046 = vmatprep.subr.mxu0 0.0
        %3047 = vmatpush1.msra.mxu0 0.0
        %3048 = vmatprep.subr.mxu0 0.0
        %3049 = vmatpush1.msra.mxu0 0.0
        %3050 = vmatprep.subr.mxu0 0.0
        %3051 = vmatpush1.msra.mxu0 0.0
        %3052 = vmatprep.subr.mxu0 0.0
        %3053 = vmatpush1.msra.mxu0 0.0
        %3054 = vmatprep.subr.mxu0 0.0
        %3055 = vmatpush1.msra.mxu0 0.0
        %3056 = vmatprep.subr.mxu0 0.0
        %3057 = vmatpush1.msra.mxu0 0.0
        %3058 = vmatprep.subr.mxu0 0.0
        %3059 = vmatpush1.msra.mxu0 0.0
        %3060 = vmatprep.subr.mxu0 0.0
        %3061 = vmatpush1.msra.mxu0 0.0
        %3062 = vmatprep.subr.mxu0 0.0
        %3063 = vmatpush1.msra.mxu0 0.0
        %3064 = vmatprep.subr.mxu0 0.0
        %3065 = vmatpush1.msra.mxu0 0.0
        %3066 = vmatprep.subr.mxu0 0.0
        %3067 = vmatpush1.msra.mxu0 0.0
        %3068 = vmatprep.subr.mxu0 0.0
        %3069 = vmatpush1.msra.mxu0 0.0
        %3070 = vmatprep.subr.mxu0 0.0
        %3071 = vmatpush1.msra.mxu0 0.0
        %3072 = vmatprep.subr.mxu0 0.0
        %3073 = vmatpush1.msra.mxu0 0.0
        %3074 = vmatprep.subr.mxu0 0.0
        %3075 = vmatpush1.msra.mxu0 0.0
        %3076 = vmatprep.subr.mxu0 0.0
        %3077 = vmatpush1.msra.mxu0 0.0
        %3078 = vmatprep.subr.mxu0 0.0
        %3079 = vmatpush1.msra.mxu0 0.0
        %3080 = vmatprep.subr.mxu0 0.0
        %3081 = vmatpush1.msra.mxu0 0.0
        %3082 = vmatprep.subr.mxu0 0.0
        %3083 = vmatpush1.msra.mxu0 0.0
        %3084 = vmatprep.subr.mxu0 0.0
        %3085 = vmatpush1.msra.mxu0 0.0
        %3086 = vmatprep.subr.mxu0 0.0
        %3087 = vmatpush1.msra.mxu0 0.0
        %3088 = vmatprep.subr.mxu0 0.0
        %3089 = vmatpush1.msra.mxu0 0.0
        %3090 = vmatprep.subr.mxu0 0.0
        %3091 = vmatpush1.msra.mxu0 0.0
        %3092 = vmatprep.subr.mxu0 0.0
        %3093 = vmatpush1.msra.mxu0 0.0
        %3094 = vmatprep.subr.mxu0 0.0
        %3095 = vmatpush1.msra.mxu0 0.0
        %3096 = vmatprep.subr.mxu0 0.0
        %3097 = vmatpush1.msra.mxu0 0.0
        %3098 = vmatprep.subr.mxu0 0.0
        %3099 = vmatpush1.msra.mxu0 0.0
        %3100 = vmatprep.mubr.f32.mxu0 0.0
        %3101 = vmatmul.mubr.f32.gmra.mrb[0].mxu0 %v2716
        %v3102 = vpop.f32.mrb[0].mxu0
        %v3103 = vadd.f32 %v2878, %v3102
        %v3104 = vpop.f32.mrb[0].mxu0
        %3105 = vmatprep.mubr.f32.mxu0 0.0
        %3106 = vmatmul.mubr.f32.gmra.mrb[0].mxu0 %v2719
        %v3107 = vpop.f32.mrb[0].mxu0
        %v3108 = vadd.f32 %v2883, %v3107
        %v3109 = vpop.f32.mrb[0].mxu0
        %3110 = vmatprep.mubr.f32.mxu0 0.0
        %3111 = vmatmul.mubr.f32.gmra.mrb[0].mxu0 %v2722
        %v3112 = vpop.f32.mrb[0].mxu0
        %v3113 = vadd.f32 %v2888, %v3112
        %v3114 = vpop.f32.mrb[0].mxu0
        %3115 = vmatprep.mubr.f32.mxu0 0.0
        %3116 = vmatmul.mubr.f32.gmra.mrb[0].mxu0 %v2725
        %v3117 = vpop.f32.mrb[0].mxu0
        %v3118 = vadd.f32 %v2893, %v3117
        %v3119 = vpop.f32.mrb[0].mxu0
        %3120 = vmatprep.mubr.f32.mxu0 0.0
        %3121 = vmatmul.mubr.f32.gmra.mrb[0].mxu0 %v2728
        %v3122 = vpop.f32.mrb[0].mxu0
        %v3123 = vadd.f32 %v2898, %v3122
        %v3124 = vpop.f32.mrb[0].mxu0
        %3125 = vmatprep.mubr.f32.mxu0 0.0
        %3126 = vmatmul.mubr.f32.gmra.mrb[0].mxu0 %v2731
        %v3127 = vpop.f32.mrb[0].mxu0
        %v3128 = vadd.f32 %v2903, %v3127
        %v3129 = vpop.f32.mrb[0].mxu0
        %3130 = vmatprep.mubr.f32.mxu0 0.0
        %3131 = vmatmul.mubr.f32.gmra.mrb[0].mxu0 %v2734
        %v3132 = vpop.f32.mrb[0].mxu0
        %v3133 = vadd.f32 %v2908, %v3132
        %v3134 = vpop.f32.mrb[0].mxu0
        %3135 = vmatprep.mubr.f32.mxu0 0.0
        %3136 = vmatmul.mubr.f32.gmra.mrb[0].mxu0 %v2737
        %v3137 = vpop.f32.mrb[0].mxu0
        %v3138 = vadd.f32 %v2913, %v3137
        %v3139 = vpop.f32.mrb[0].mxu0
        %3140 = vmatprep.mubr.f32.mxu0 0.0
        %3141 = vmatmul.mubr.f32.gmra.mrb[0].mxu0 %v2740
        %v3142 = vpop.f32.mrb[0].mxu0
        %v3143 = vadd.f32 %v2918, %v3142
        %v3144 = vpop.f32.mrb[0].mxu0
        %3145 = vmatprep.mubr.f32.mxu0 0.0
        %3146 = vmatmul.mubr.f32.gmra.mrb[0].mxu0 %v2743
        %v3147 = vpop.f32.mrb[0].mxu0
        %v3148 = vadd.f32 %v2923, %v3147
        %v3149 = vpop.f32.mrb[0].mxu0
        %3150 = vmatprep.mubr.f32.mxu0 0.0
        %3151 = vmatmul.mubr.f32.gmra.mrb[0].mxu0 %v2746
        %v3152 = vpop.f32.mrb[0].mxu0
        %v3153 = vadd.f32 %v2928, %v3152
        %v3154 = vpop.f32.mrb[0].mxu0
        %3155 = vmatprep.mubr.f32.mxu0 0.0
        %3156 = vmatmul.mubr.f32.gmra.mrb[0].mxu0 %v2749
        %v3157 = vpop.f32.mrb[0].mxu0
        %v3158 = vadd.f32 %v2933, %v3157
        %v3159 = vpop.f32.mrb[0].mxu0
        %3160 = vmatprep.mubr.f32.mxu0 0.0
        %3161 = vmatmul.mubr.f32.gmra.mrb[0].mxu0 %v2752
        %v3162 = vpop.f32.mrb[0].mxu0
        %v3163 = vadd.f32 %v2938, %v3162
        %v3164 = vpop.f32.mrb[0].mxu0
        %3165 = vmatprep.mubr.f32.mxu0 0.0
        %3166 = vmatmul.mubr.f32.gmra.mrb[0].mxu0 %v2755
        %v3167 = vpop.f32.mrb[0].mxu0
        %v3168 = vadd.f32 %v2943, %v3167
        %v3169 = vpop.f32.mrb[0].mxu0
        %3170 = vmatprep.mubr.f32.mxu0 0.0
        %3171 = vmatmul.mubr.f32.gmra.mrb[0].mxu0 %v2758
        %v3172 = vpop.f32.mrb[0].mxu0
        %v3173 = vadd.f32 %v2948, %v3172
        %v3174 = vpop.f32.mrb[0].mxu0
        %3175 = vmatprep.mubr.f32.mxu0 0.0
        %3176 = vmatmul.mubr.f32.gmra.mrb[0].mxu0 %v2761
        %v3177 = vpop.f32.mrb[0].mxu0
        %v3178 = vadd.f32 %v2953, %v3177
        %v3179 = vpop.f32.mrb[0].mxu0
        %3180 = vmatprep.mubr.f32.mxu0 0.0
        %3181 = vmatmul.mubr.f32.gmra.mrb[0].mxu0 %v2764
        %v3182 = vpop.f32.mrb[0].mxu0
        %v3183 = vadd.f32 %v2958, %v3182
        %v3184 = vpop.f32.mrb[0].mxu0
        %3185 = vmatprep.mubr.f32.mxu0 0.0
        %3186 = vmatmul.mubr.f32.gmra.mrb[0].mxu0 %v2767
        %v3187 = vpop.f32.mrb[0].mxu0
        %v3188 = vadd.f32 %v2963, %v3187
        %v3189 = vpop.f32.mrb[0].mxu0
        %3190 = vmatprep.mubr.f32.mxu0 0.0
        %3191 = vmatmul.mubr.f32.gmra.mrb[0].mxu0 %v2770
        %v3192 = vpop.f32.mrb[0].mxu0
        %v3193 = vadd.f32 %v2968, %v3192
        %v3194 = vpop.f32.mrb[0].mxu0
        %3195 = vmatprep.mubr.f32.mxu0 0.0
        %3196 = vmatmul.mubr.f32.gmra.mrb[0].mxu0 %v2773
        %v3197 = vpop.f32.mrb[0].mxu0
        %v3198 = vadd.f32 %v2973, %v3197
        %v3199 = vpop.f32.mrb[0].mxu0
        %3200 = vmatprep.mubr.f32.mxu0 0.0
        %3201 = vmatmul.mubr.f32.gmra.mrb[0].mxu0 %v2776
        %v3202 = vpop.f32.mrb[0].mxu0
        %v3203 = vadd.f32 %v2978, %v3202
        %v3204 = vpop.f32.mrb[0].mxu0
        %3205 = vmatprep.mubr.f32.mxu0 0.0
        %3206 = vmatmul.mubr.f32.gmra.mrb[0].mxu0 %v2779
        %v3207 = vpop.f32.mrb[0].mxu0
        %v3208 = vadd.f32 %v2983, %v3207
        %v3209 = vpop.f32.mrb[0].mxu0
        %3210 = vmatprep.mubr.f32.mxu0 0.0
        %3211 = vmatmul.mubr.f32.gmra.mrb[0].mxu0 %v2782
        %v3212 = vpop.f32.mrb[0].mxu0
        %v3213 = vadd.f32 %v2988, %v3212
        %v3214 = vpop.f32.mrb[0].mxu0
        %3215 = vmatprep.mubr.f32.mxu0 0.0
        %3216 = vmatmul.mubr.f32.gmra.mrb[0].mxu0 %v2785
        %v3217 = vpop.f32.mrb[0].mxu0
        %v3218 = vadd.f32 %v2993, %v3217
        %v3219 = vpop.f32.mrb[0].mxu0
        %3220 = vmatprep.mubr.f32.mxu0 0.0
        %3221 = vmatmul.mubr.f32.gmra.mrb[0].mxu0 %v2788
        %v3222 = vpop.f32.mrb[0].mxu0
        %v3223 = vadd.f32 %v2998, %v3222
        %v3224 = vpop.f32.mrb[0].mxu0
        %3225 = vmatprep.mubr.f32.mxu0 0.0
        %3226 = vmatmul.mubr.f32.gmra.mrb[0].mxu0 %v2791
        %v3227 = vpop.f32.mrb[0].mxu0
        %v3228 = vadd.f32 %v3003, %v3227
        %v3229 = vpop.f32.mrb[0].mxu0
        %3230 = vmatprep.mubr.f32.mxu0 0.0
        %3231 = vmatmul.mubr.f32.gmra.mrb[0].mxu0 %v2794
        %v3232 = vpop.f32.mrb[0].mxu0
        %v3233 = vadd.f32 %v3008, %v3232
        %v3234 = vpop.f32.mrb[0].mxu0
        %3235 = vmatprep.mubr.f32.mxu0 0.0
        %3236 = vmatmul.mubr.f32.gmra.mrb[0].mxu0 %v2797
        %v3237 = vpop.f32.mrb[0].mxu0
        %v3238 = vadd.f32 %v3013, %v3237
        %v3239 = vpop.f32.mrb[0].mxu0
        %3240 = vmatprep.mubr.f32.mxu0 0.0
        %3241 = vmatmul.mubr.f32.gmra.mrb[0].mxu0 %v2800
        %v3242 = vpop.f32.mrb[0].mxu0
        %v3243 = vadd.f32 %v3018, %v3242
        %v3244 = vpop.f32.mrb[0].mxu0
        %3245 = vmatprep.mubr.f32.mxu0 0.0
        %3246 = vmatmul.mubr.f32.gmra.mrb[0].mxu0 %v2803
        %v3247 = vpop.f32.mrb[0].mxu0
        %v3248 = vadd.f32 %v3023, %v3247
        %v3249 = vpop.f32.mrb[0].mxu0
        %3250 = vmatprep.mubr.f32.mxu0 0.0
        %3251 = vmatmul.mubr.f32.gmra.mrb[0].mxu0 %v2806
        %v3252 = vpop.f32.mrb[0].mxu0
        %v3253 = vadd.f32 %v3028, %v3252
        %v3254 = vpop.f32.mrb[0].mxu0
        %3255 = vmatprep.mubr.f32.mxu0 0.0
        %3256 = vmatmul.mubr.f32.gmra.mrb[0].mxu0 %v2809
        %v3257 = vpop.f32.mrb[0].mxu0
        %v3258 = vadd.f32 %v3033, %v3257
        %v3259 = vpop.f32.mrb[0].mxu0
        %3260 = vdwg.mxu0
        %v3261 = vsel %vm2517, %v3103, -inf
        %v3262 = vsel %vm2517, %v3108, -inf
        %v3263 = vmax.f32 %v3261, %v3262
        %v3264 = vrot.slane %v3263, 4
        %v3265 = vmax.f32 %v3263, %v3264
        %v3266 = vrot.slane %v3265, 2
        %v3267 = vmax.f32 %v3265, %v3266
        %v3268 = vrot.slane %v3267, 1
        %v3269 = vmax.f32 %v3267, %v3268
        %v3270 = vsel %vm2517, %v3113, -inf
        %v3271 = vsel %vm2517, %v3118, -inf
        %v3272 = vmax.f32 %v3270, %v3271
        %v3273 = vrot.slane %v3272, 4
        %v3274 = vmax.f32 %v3272, %v3273
        %v3275 = vrot.slane %v3274, 2
        %v3276 = vmax.f32 %v3274, %v3275
        %v3277 = vrot.slane %v3276, 1
        %v3278 = vmax.f32 %v3276, %v3277
        %v3279 = vsel %vm2517, %v3123, -inf
        %v3280 = vsel %vm2517, %v3128, -inf
        %v3281 = vmax.f32 %v3279, %v3280
        %v3282 = vrot.slane %v3281, 4
        %v3283 = vmax.f32 %v3281, %v3282
        %v3284 = vrot.slane %v3283, 2
        %v3285 = vmax.f32 %v3283, %v3284
        %v3286 = vrot.slane %v3285, 1
        %v3287 = vmax.f32 %v3285, %v3286
        %v3288 = vsel %vm2517, %v3133, -inf
        %v3289 = vsel %vm2517, %v3138, -inf
        %v3290 = vmax.f32 %v3288, %v3289
        %v3291 = vrot.slane %v3290, 4
        %v3292 = vmax.f32 %v3290, %v3291
        %v3293 = vrot.slane %v3292, 2
        %v3294 = vmax.f32 %v3292, %v3293
        %v3295 = vrot.slane %v3294, 1
        %v3296 = vmax.f32 %v3294, %v3295
        %v3297 = vsel %vm2517, %v3143, -inf
        %v3298 = vsel %vm2517, %v3148, -inf
        %v3299 = vmax.f32 %v3297, %v3298
        %v3300 = vrot.slane %v3299, 4
        %v3301 = vmax.f32 %v3299, %v3300
        %v3302 = vrot.slane %v3301, 2
        %v3303 = vmax.f32 %v3301, %v3302
        %v3304 = vrot.slane %v3303, 1
        %v3305 = vmax.f32 %v3303, %v3304
        %v3306 = vsel %vm2517, %v3153, -inf
        %v3307 = vsel %vm2517, %v3158, -inf
        %v3308 = vmax.f32 %v3306, %v3307
        %v3309 = vrot.slane %v3308, 4
        %v3310 = vmax.f32 %v3308, %v3309
        %v3311 = vrot.slane %v3310, 2
        %v3312 = vmax.f32 %v3310, %v3311
        %v3313 = vrot.slane %v3312, 1
        %v3314 = vmax.f32 %v3312, %v3313
        %v3315 = vsel %vm2517, %v3163, -inf
        %v3316 = vsel %vm2517, %v3168, -inf
        %v3317 = vmax.f32 %v3315, %v3316
        %v3318 = vrot.slane %v3317, 4
        %v3319 = vmax.f32 %v3317, %v3318
        %v3320 = vrot.slane %v3319, 2
        %v3321 = vmax.f32 %v3319, %v3320
        %v3322 = vrot.slane %v3321, 1
        %v3323 = vmax.f32 %v3321, %v3322
        %v3324 = vsel %vm2517, %v3173, -inf
        %v3325 = vsel %vm2517, %v3178, -inf
        %v3326 = vmax.f32 %v3324, %v3325
        %v3327 = vrot.slane %v3326, 4
        %v3328 = vmax.f32 %v3326, %v3327
        %v3329 = vrot.slane %v3328, 2
        %v3330 = vmax.f32 %v3328, %v3329
        %v3331 = vrot.slane %v3330, 1
        %v3332 = vmax.f32 %v3330, %v3331
        %v3333 = vsel %vm2517, %v3183, -inf
        %v3334 = vsel %vm2517, %v3188, -inf
        %v3335 = vmax.f32 %v3333, %v3334
        %v3336 = vrot.slane %v3335, 4
        %v3337 = vmax.f32 %v3335, %v3336
        %v3338 = vrot.slane %v3337, 2
        %v3339 = vmax.f32 %v3337, %v3338
        %v3340 = vrot.slane %v3339, 1
        %v3341 = vmax.f32 %v3339, %v3340
        %v3342 = vsel %vm2517, %v3193, -inf
        %v3343 = vsel %vm2517, %v3198, -inf
        %v3344 = vmax.f32 %v3342, %v3343
        %v3345 = vrot.slane %v3344, 4
        %v3346 = vmax.f32 %v3344, %v3345
        %v3347 = vrot.slane %v3346, 2
        %v3348 = vmax.f32 %v3346, %v3347
        %v3349 = vrot.slane %v3348, 1
        %v3350 = vmax.f32 %v3348, %v3349
        %v3351 = vsel %vm2517, %v3203, -inf
        %v3352 = vsel %vm2517, %v3208, -inf
        %v3353 = vmax.f32 %v3351, %v3352
        %v3354 = vrot.slane %v3353, 4
        %v3355 = vmax.f32 %v3353, %v3354
        %v3356 = vrot.slane %v3355, 2
        %v3357 = vmax.f32 %v3355, %v3356
        %v3358 = vrot.slane %v3357, 1
        %v3359 = vmax.f32 %v3357, %v3358
        %v3360 = vsel %vm2517, %v3213, -inf
        %v3361 = vsel %vm2517, %v3218, -inf
        %v3362 = vmax.f32 %v3360, %v3361
        %v3363 = vrot.slane %v3362, 4
        %v3364 = vmax.f32 %v3362, %v3363
        %v3365 = vrot.slane %v3364, 2
        %v3366 = vmax.f32 %v3364, %v3365
        %v3367 = vrot.slane %v3366, 1
        %v3368 = vmax.f32 %v3366, %v3367
        %v3369 = vsel %vm2517, %v3223, -inf
        %v3370 = vsel %vm2517, %v3228, -inf
        %v3371 = vmax.f32 %v3369, %v3370
        %v3372 = vrot.slane %v3371, 4
        %v3373 = vmax.f32 %v3371, %v3372
        %v3374 = vrot.slane %v3373, 2
        %v3375 = vmax.f32 %v3373, %v3374
        %v3376 = vrot.slane %v3375, 1
        %v3377 = vmax.f32 %v3375, %v3376
        %v3378 = vsel %vm2517, %v3233, -inf
        %v3379 = vsel %vm2517, %v3238, -inf
        %v3380 = vmax.f32 %v3378, %v3379
        %v3381 = vrot.slane %v3380, 4
        %v3382 = vmax.f32 %v3380, %v3381
        %v3383 = vrot.slane %v3382, 2
        %v3384 = vmax.f32 %v3382, %v3383
        %v3385 = vrot.slane %v3384, 1
        %v3386 = vmax.f32 %v3384, %v3385
        %v3387 = vsel %vm2517, %v3243, -inf
        %v3388 = vsel %vm2517, %v3248, -inf
        %v3389 = vmax.f32 %v3387, %v3388
        %v3390 = vrot.slane %v3389, 4
        %v3391 = vmax.f32 %v3389, %v3390
        %v3392 = vrot.slane %v3391, 2
        %v3393 = vmax.f32 %v3391, %v3392
        %v3394 = vrot.slane %v3393, 1
        %v3395 = vmax.f32 %v3393, %v3394
        %v3396 = vsel %vm2517, %v3253, -inf
        %v3397 = vsel %vm2517, %v3258, -inf
        %v3398 = vmax.f32 %v3396, %v3397
        %v3399 = vrot.slane %v3398, 4
        %v3400 = vmax.f32 %v3398, %v3399
        %v3401 = vrot.slane %v3400, 2
        %v3402 = vmax.f32 %v3400, %v3401
        %v3403 = vrot.slane %v3402, 1
        %v3404 = vmax.f32 %v3402, %v3403
        %v3405 = vld [vmem:[%s4] sm:$0x1]
        %v3407 = vlaneseq
        %v3408 = vshrl.u32 %v3407, 7
        %v3409 = vsub.s32 0, %v3408
        %v3410 = vrot.slane %v3405, %v3409
        %v3412 = vadd.f32 %v3269, %v3410
        %v3413 = vadd.f32 %v3278, %v3410
        %v3414 = vadd.f32 %v3287, %v3410
        %v3415 = vadd.f32 %v3296, %v3410
        %v3416 = vadd.f32 %v3305, %v3410
        %v3417 = vadd.f32 %v3314, %v3410
        %v3418 = vadd.f32 %v3323, %v3410
        %v3419 = vadd.f32 %v3332, %v3410
        %v3420 = vadd.f32 %v3341, %v3410
        %v3421 = vadd.f32 %v3350, %v3410
        %v3422 = vadd.f32 %v3359, %v3410
        %v3423 = vadd.f32 %v3368, %v3410
        %v3424 = vadd.f32 %v3377, %v3410
        %v3425 = vadd.f32 %v3386, %v3410
        %v3426 = vadd.f32 %v3395, %v3410
        %v3427 = vadd.f32 %v3404, %v3410
        %vm3444 = vcmask 1041409
        %v3445 = vsel %vm3444, %v610, %v601
        %vm3446 = vcmask 1042434
        %v3447 = vsel %vm3446, %v619, %v3445
        %vm3448 = vcmask 1043459
        %v3449 = vsel %vm3448, %v628, %v3447
        %vm3450 = vcmask 1044484
        %v3451 = vsel %vm3450, %v637, %v3449
        %vm3452 = vcmask 1045509
        %v3453 = vsel %vm3452, %v646, %v3451
        %vm3454 = vcmask 1046534
        %v3455 = vsel %vm3454, %v655, %v3453
        %vm3456 = vcmask 1047559
        %v3457 = vsel %vm3456, %v664, %v3455
        %v3458 = vsel %vm3444, %v682, %v673
        %v3459 = vsel %vm3446, %v691, %v3458
        %v3460 = vsel %vm3448, %v700, %v3459
        %v3461 = vsel %vm3450, %v709, %v3460
        %v3462 = vsel %vm3452, %v718, %v3461
        %v3463 = vsel %vm3454, %v727, %v3462
        %v3464 = vsel %vm3456, %v736, %v3463
        %v3483 = vrot.slane %v3413, 7
        %v3484 = vsel %vm3444, %v3483, %v3412
        %v3485 = vrot.slane %v3414, 6
        %v3486 = vsel %vm3446, %v3485, %v3484
        %v3487 = vrot.slane %v3415, 5
        %v3488 = vsel %vm3448, %v3487, %v3486
        %v3489 = vrot.slane %v3416, 4
        %v3490 = vsel %vm3450, %v3489, %v3488
        %v3491 = vrot.slane %v3417, 3
        %v3492 = vsel %vm3452, %v3491, %v3490
        %v3493 = vrot.slane %v3418, 2
        %v3494 = vsel %vm3454, %v3493, %v3492
        %v3495 = vrot.slane %v3419, 1
        %v3496 = vsel %vm3456, %v3495, %v3494
        %v3497 = vrot.slane %v3421, 7
        %v3498 = vsel %vm3444, %v3497, %v3420
        %v3499 = vrot.slane %v3422, 6
        %v3500 = vsel %vm3446, %v3499, %v3498
        %v3501 = vrot.slane %v3423, 5
        %v3502 = vsel %vm3448, %v3501, %v3500
        %v3503 = vrot.slane %v3424, 4
        %v3504 = vsel %vm3450, %v3503, %v3502
        %v3505 = vrot.slane %v3425, 3
        %v3506 = vsel %vm3452, %v3505, %v3504
        %v3507 = vrot.slane %v3426, 2
        %v3508 = vsel %vm3454, %v3507, %v3506
        %v3509 = vrot.slane %v3427, 1
        %v3510 = vsel %vm3456, %v3509, %v3508
        %3511 = vrot.lane.b32.xlu0 %v3496, 32
        %v3512 = vpop.permute.xlu0 %3511
        %3513 = vrot.lane.b32.xlu0 %v3510, 32
        %v3514 = vpop.permute.xlu0 %3513
        %v3517 = vsel %vm592, %v3457, %v3512
        %v3518 = vsel %vm592, %v3464, %v3514
        %3519 = vst.msk [vmem:[%s217] sm:$0xff] %vm2550, %v3517
        %3520 = vst.msk [vmem:[%s217 + $0x8] sm:$0xff] %vm2550, %v3518
        %s3521 = sand.u32 %s137, 1
        %s3522 = scalar_lea.sflag [#allocation3], %s3521
        %s3523 = sand.u32 %s137, 1
        %s3524 = smul.addr %s3523, 16
        %s3525 = scalar_lea.vmem [#allocation2], %s3524
        // Predicated region
        $region41: #{fused_forward.1} parent=39 // pred_check
          %p3526 = pneg %p147
        $region42: #{fused_forward.1} parent=39 // pred_check_branch
          %3528 = sbr.rel (%p3526) target = $region44
        $region43: #{fused_forward.1} parent=39 // pred_region
          %s3530 = ssub.s32 256, 256
          %3531 = vsyncadd %s3522, %s3530
          %s3532 = smul.addr %s19, 2
          %s3533 = smul.addr %s3532, 128
          %s3534 = scalar_lea.hbm %s5, %s3533
          %s3535 = sshll.u32 %s3525, 4
          %s3536 = int_to_ptr.vmem [resolvable:$true] %s3535
          %3541 = dma.vmem_to_hbm [thread:$0]  %s3536, 256, %s3534, %s3522, 128, 128, 8
        $region44: #{fused_forward.1} parent=39 // pred_fallthru
          _
      $region40: #{fused_forward.1} parent=5 // pred_fallthru
        _
      %p3542 = scmp.le.s32.totalorder 2, %s14
      // Predicated region
      $region45: #{fused_forward.1} parent=5 // pred_check
        %p3543 = pneg %p3542
      $region46: #{fused_forward.1} parent=5 // pred_check_branch
        %3545 = sbr.rel (%p3543) target = $region48
      $region47: #{fused_forward.1} parent=5 // pred_region
        %s3546 = ssub.s32 %s14, 2
        // Predicated region
        $region49: #{fused_forward.1} parent=47 // pred_check
          %p3547 = pneg %p153
        $region50: #{fused_forward.1} parent=47 // pred_check_branch
          %3549 = sbr.rel (%p3547) target = $region52
        $region51: #{fused_forward.1} parent=47 // pred_region
          %s3550 = sand.u32 %s138, 1
          %s3551 = scalar_lea.sflag [#allocation3], %s3550
          %s3552 = sand.u32 %s138, 1
          %s3553 = smul.addr %s3552, 16
          %s3554 = scalar_lea.vmem [#allocation2], %s3553
          %3555 = dma.done %s3551, 256
        $region52: #{fused_forward.1} parent=47 // pred_fallthru
          _
      $region48: #{fused_forward.1} parent=5 // pred_fallthru
        _
    $region6: #{fused_forward.1} parent=1 // loop_footer
      %s18 = sadd.s32 1, %s14
    $region7: #{fused_forward.1} parent=1 // loop_footer_branch
      %13 = sbr.rel target = $region3
    $region8: #{fused_forward.1} parent=1 // loop_exit
      _
    %3556 = vsyncpa [#allocation3], 1
    %s3557 = scalar_lea.sflag [#allocation3], 1
    %3558 = vsyncpa %s3557, 1

</llo_original>
